<compile_context>
chip_gen: v5e
topology: v5e:2x2
jax: 0.10.0
libtpu: 0.0.40
codegen_flags: <defaults>
</compile_context>

<pallas_src>
import jax
import jax.numpy as jnp
from jax import lax
from jax.experimental import pallas as pl
from jax.experimental.pallas import tpu as pltpu

# ----------------------------- configuration -----------------------------
B = 2                 # batch
T = 1                 # temporal frames
N_CAMS = 2            # cameras in the single camera group
C_IN = 4              # image channels
H = W = 16            # image spatial size
OUT_CH = 32           # feature extractor output channels
DOWN_SCALES = [4, 8]  # multi-scale feature down scales
NUM_QUERIES = 16      # anchor / query count
QUERY_DIM = 32        # query embedding dim
TRAJ_DIM = 8          # [x, y, z, l, w, h, vx, vy]
NUM_HEADS = 4
HEAD_DIM = QUERY_DIM // NUM_HEADS
FFN_HIDDEN = 4 * QUERY_DIM
NUM_LAYERS = 2
N_TOKENS = N_CAMS * len(DOWN_SCALES)   # feature tokens seen by the aggregator
PACK_PER_LAYER = 16                    # [trajs(8) | quality(2) | pixels(4) | pad]

CAMERA_GROUPS = {"front": ["CAM_FRONT", "CAM_FRONT_RIGHT"]}
FUSED_LAYER_OPS = ["mts_feature_aggregator", "self_attention", "ffn", "refine"]
DECODER_OP_ORDERS = [list(FUSED_LAYER_OPS)] * NUM_LAYERS


# ----------------------------- in-kernel helpers -----------------------------
def _mm(a, w):
    """MXU matmul: bf16 operands, f32 accumulation."""
    return jnp.dot(a.astype(jnp.bfloat16), w.astype(jnp.bfloat16),
                   preferred_element_type=jnp.float32)


def _mm_t(a, b):
    """a @ b.T with the transpose folded into dimension_numbers (MXU native)."""
    return lax.dot_general(a.astype(jnp.bfloat16), b.astype(jnp.bfloat16),
                           dimension_numbers=(((1,), (1,)), ((), ())),
                           preferred_element_type=jnp.float32)


def _softmax_rows(s):
    """Numerically-stable softmax along the last axis (EUP reciprocal)."""
    m = jnp.max(s, axis=-1, keepdims=True)
    p = jnp.exp(s - m)
    return p * pl.reciprocal(jnp.sum(p, axis=-1, keepdims=True), approx=True)


def _mha(q, k, v, scale):
    """Multi-head attention on full-width [*, D] rows.

    Heads are static 8-lane slices; per-head score matrices are stacked along
    sublanes so a single XLU max/sum reduce serves all heads."""
    nq = q.shape[0]
    scores = []
    for h in range(NUM_HEADS):
        sl = slice(h * HEAD_DIM, (h + 1) * HEAD_DIM)
        scores.append(_mm_t(q[:, sl], k[:, sl]))          # [nq, S]
    s_all = jnp.concatenate(scores, axis=0) * scale       # [H*nq, S]
    p_all = _softmax_rows(s_all)                          # one reduce for all heads
    outs = []
    for h in range(NUM_HEADS):
        sl = slice(h * HEAD_DIM, (h + 1) * HEAD_DIM)
        outs.append(_mm(p_all[h * nq:(h + 1) * nq, :], v[:, sl]))   # [nq, dh]
    return jnp.concatenate(outs, axis=-1)                 # [nq, D] (head concat)


# ----------------------------- the fused kernel -----------------------------
def _sparse4d_kernel(
        # per-batch input
        img_ref,                                   # [1, T*N_CAMS, C_IN, H*W]
        # broadcast initial state
        tgts0_ref, trajs0_ref,                     # [Q, D], [Q, TRAJ_DIM]
        # feature extractor
        conv_wt_ref, conv_b_ref,                   # [OUT_CH, C_IN], [OUT_CH, 1]
        # anchor encoder
        ae_w1_ref, ae_b1_ref, ae_w2_ref, ae_b2_ref,
        # aggregator feature projection + cross-attention + pixel projection
        fp_w_ref, fp_b_ref,
        ag_wq_ref, ag_bq_ref, ag_wk_ref, ag_bk_ref,
        ag_wv_ref, ag_bv_ref, ag_wo_ref, ag_bo_ref,
        pix_w_ref, pix_b_ref,
        # per-layer weights, stacked along a leading layer axis [L, ...]
        sa_wq_ref, sa_bq_ref, sa_wk_ref, sa_bk_ref,
        sa_wv_ref, sa_bv_ref, sa_wo_ref, sa_bo_ref,
        f_w1_ref, f_b1_ref, f_w2_ref, f_b2_ref,
        r_w1_ref, r_b1_ref, r_wt_ref, r_bt_ref, r_wq_ref, r_bq_ref,
        # packed output
        out_ref):                                  # [1, Q, NUM_LAYERS*PACK_PER_LAYER]
    scale = 1.0 / float(HEAD_DIM) ** 0.5
    hw = H * W
    pool = jnp.full((1, hw), 1.0 / hw, jnp.bfloat16)   # GAP as an MXU contraction

    # ---- feature extraction: pointwise conv + ReLU + GAP (lane-dense [C, H*W]) ----
    cam_tokens = []
    for cam in range(T * N_CAMS):
        y = jnp.maximum(_mm(conv_wt_ref[...], img_ref[0, cam]) + conv_b_ref[...], 0.0)
        cam_tokens.append(_mm_t(pool, y))                      # [1, OUT_CH]
    # one token per (camera, scale); GAP is invariant to the down-scale
    tokens = jnp.concatenate(
        [t for t in cam_tokens for _ in range(len(DOWN_SCALES))], axis=0)  # [N_TOKENS, OUT_CH]

    # ---- layer-invariant prep: anchor-encoder pos embeds + aggregator K/V ----
    h1 = jnp.maximum(_mm(trajs0_ref[...], ae_w1_ref[...]) + ae_b1_ref[...], 0.0)
    pos = _mm(h1, ae_w2_ref[...]) + ae_b2_ref[...]             # [Q, D]
    kvfeat = _mm(tokens, fp_w_ref[...]) + fp_b_ref[...]        # [N_TOKENS, D]
    k_feat = _mm(kvfeat, ag_wk_ref[...]) + ag_bk_ref[...]      # [N_TOKENS, D]
    v_feat = _mm(kvfeat, ag_wv_ref[...]) + ag_bv_ref[...]      # [N_TOKENS, D]

    # ---- decoder layers (unrolled in Python; everything stays in VMEM/vregs) ----
    tgts = tgts0_ref[...]                                      # [Q, D]
    trajs = trajs0_ref[...]                                    # [Q, TRAJ_DIM]
    packed = []
    for li in range(NUM_LAYERS):
        # mts_feature_aggregator: pixel projection + cross-attention over tokens
        # TODO(synk): true geometric projection via calibrations/ego_states is not
        # reproducible from the registry-built module; a learned projection stands in.
        pixels = jnp.tanh(_mm(trajs, pix_w_ref[...]) + pix_b_ref[...])   # [Q, N_CAMS*2]
        q = _mm(tgts + pos, ag_wq_ref[...]) + ag_bq_ref[...]
        tgts = tgts + _mm(_mha(q, k_feat, v_feat, scale), ag_wo_ref[...]) + ag_bo_ref[...]

        # self attention (q/k from tgts+pos, v from tgts)
        qk_in = tgts + pos
        q = _mm(qk_in, sa_wq_ref[li]) + sa_bq_ref[li]
        k = _mm(qk_in, sa_wk_ref[li]) + sa_bk_ref[li]
        v = _mm(tgts, sa_wv_ref[li]) + sa_bv_ref[li]
        tgts = tgts + _mm(_mha(q, k, v, scale), sa_wo_ref[li]) + sa_bo_ref[li]

        # ffn
        hh = jnp.maximum(_mm(tgts, f_w1_ref[li]) + f_b1_ref[li], 0.0)
        tgts = tgts + _mm(hh, f_w2_ref[li]) + f_b2_ref[li]

        # refine
        rh = jnp.maximum(_mm(tgts + pos, r_w1_ref[li]) + r_b1_ref[li], 0.0)
        trajs = trajs + _mm(rh, r_wt_ref[li]) + r_bt_ref[li]
        quality = _mm(rh, r_wq_ref[li]) + r_bq_ref[li]

        # pack the narrow per-layer results into one 16-lane slot
        pieces = [trajs, quality, pixels]
        pad_w = PACK_PER_LAYER - (TRAJ_DIM + 2 + N_CAMS * 2)
        if pad_w > 0:
            pieces.append(jnp.zeros((NUM_QUERIES, pad_w), jnp.float32))
        packed.append(jnp.concatenate(pieces, axis=-1))        # [Q, PACK_PER_LAYER]

    out_ref[0] = jnp.concatenate(packed, axis=-1)              # [Q, L*PACK_PER_LAYER]


# ----------------------------- BlockSpec helpers -----------------------------
def _bcast_spec(shape):
    """Whole array, same block for every grid step (weights / shared state)."""
    nd = len(shape)
    return pl.BlockSpec(tuple(shape), lambda i, nd=nd: (0,) * nd)


def _batched_spec(shape):
    """Block over the leading (batch/grid) axis; full extent elsewhere."""
    nd = len(shape)
    return pl.BlockSpec((1,) + tuple(shape[1:]),
                        lambda i, nd=nd: (i,) + (0,) * (nd - 1))


# ----------------------------- parameter setup -----------------------------
def xavier(key, shape):
    fan_in, fan_out = shape[0], shape[1]
    limit = (6.0 / (fan_in + fan_out)) ** 0.5
    return jax.random.uniform(key, shape, jnp.float32, -limit, limit)


def zeros(shape):
    return jnp.zeros(shape, jnp.float32)


def make_attention_params(key, dim):
    ks = jax.random.split(key, 4)
    return {
        "wq": xavier(ks[0], (dim, dim)), "bq": zeros((dim,)),
        "wk": xavier(ks[1], (dim, dim)), "bk": zeros((dim,)),
        "wv": xavier(ks[2], (dim, dim)), "bv": zeros((dim,)),
        "wo": xavier(ks[3], (dim, dim)), "bo": zeros((dim,)),
    }


def init_params(key):
    keys = jax.random.split(key, 16)
    params = {}
    params["anchor_encoder"] = {
        "w1": xavier(keys[0], (TRAJ_DIM, QUERY_DIM)), "b1": zeros((QUERY_DIM,)),
        "w2": xavier(keys[1], (QUERY_DIM, QUERY_DIM)), "b2": zeros((QUERY_DIM,)),
    }
    params["query_embed"] = xavier(keys[2], (NUM_QUERIES, QUERY_DIM))
    params["extractors"] = {
        "front": {
            "conv_w": xavier(keys[3], (C_IN, OUT_CH)),
            "conv_b": zeros((OUT_CH,)),
        }
    }
    params["aggregator"] = {
        "feat_proj_w": xavier(keys[4], (OUT_CH, QUERY_DIM)),
        "feat_proj_b": zeros((QUERY_DIM,)),
        "pix_w": xavier(keys[5], (TRAJ_DIM, N_CAMS * 2)),
        "pix_b": zeros((N_CAMS * 2,)),
        **make_attention_params(keys[6], QUERY_DIM),
    }
    params["layers"] = []
    for li in range(NUM_LAYERS):
        lks = jax.random.split(keys[7 + li], 6)
        params["layers"].append({
            "self_attention": make_attention_params(lks[0], QUERY_DIM),
            "ffn": {
                "w1": xavier(lks[1], (QUERY_DIM, FFN_HIDDEN)), "b1": zeros((FFN_HIDDEN,)),
                "w2": xavier(lks[2], (FFN_HIDDEN, QUERY_DIM)), "b2": zeros((QUERY_DIM,)),
            },
            "refine": {
                "w1": xavier(lks[3], (QUERY_DIM, QUERY_DIM)), "b1": zeros((QUERY_DIM,)),
                "w_traj": xavier(lks[4], (QUERY_DIM, TRAJ_DIM)), "b_traj": zeros((TRAJ_DIM,)),
                "w_qual": xavier(lks[5], (QUERY_DIM, 2)), "b_qual": zeros((2,)),
            },
        })
    return params


def get_init_trajs(speed=23.0):
    xs = jnp.linspace(-40.0, 40.0, NUM_QUERIES, dtype=jnp.float32)
    z = jnp.zeros((NUM_QUERIES,), jnp.float32)
    return jnp.stack(
        [xs, z, z,
         jnp.full((NUM_QUERIES,), 4.0, jnp.float32),
         jnp.full((NUM_QUERIES,), 2.0, jnp.float32),
         jnp.full((NUM_QUERIES,), 1.5, jnp.float32),
         jnp.full((NUM_QUERIES,), speed, jnp.float32),
         z],
        axis=-1,
    )  # [Q, TRAJ_DIM]


# ---------------- kernel-layout weight preparation (done ONCE, outside jit) ----------------
def prepare_kernel_weights(params):
    w = lambda x: x.astype(jnp.bfloat16)                 # MXU operands in bf16
    br = lambda x: x.reshape(1, -1).astype(jnp.float32)  # bias rows in f32
    ae, ag = params["anchor_encoder"], params["aggregator"]
    ex = params["extractors"]["front"]

    shared = [
        w(ex["conv_w"].T),                                # [OUT_CH, C_IN]
        ex["conv_b"].reshape(-1, 1).astype(jnp.float32),  # [OUT_CH, 1] (per-channel column)
        w(ae["w1"]), br(ae["b1"]), w(ae["w2"]), br(ae["b2"]),
        w(ag["feat_proj_w"]), br(ag["feat_proj_b"]),
        w(ag["wq"]), br(ag["bq"]), w(ag["wk"]), br(ag["bk"]),
        w(ag["wv"]), br(ag["bv"]), w(ag["wo"]), br(ag["bo"]),
        w(ag["pix_w"]), br(ag["pix_b"]),
    ]
    specs = [("self_attention", "wq", w), ("self_attention", "bq", br),
             ("self_attention", "wk", w), ("self_attention", "bk", br),
             ("self_attention", "wv", w), ("self_attention", "bv", br),
             ("self_attention", "wo", w), ("self_attention", "bo", br),
             ("ffn", "w1", w), ("ffn", "b1", br),
             ("ffn", "w2", w), ("ffn", "b2", br),
             ("refine", "w1", w), ("refine", "b1", br),
             ("refine", "w_traj", w), ("refine", "b_traj", br),
             ("refine", "w_qual", w), ("refine", "b_qual", br)]
    stacked = [jnp.stack([fn(lp[sub][name]) for lp in params["layers"]], axis=0)
               for sub, name, fn in specs]
    return shared + stacked


# ----------------------------- detector forward -----------------------------
def sparse4d_forward(kernel_weights, init_trajs, query_embed, images,
                     calibrations=None, ego_states=None):
    del calibrations, ego_states  # TODO(synk): geometric traj projection not reproducible from config
    for layer_ops in DECODER_OP_ORDERS:
        if list(layer_ops) != FUSED_LAYER_OPS:
            # temp_attention raises NotImplementedError in the reference too
            raise NotImplementedError(f"unsupported decoder op order: {layer_ops}")

    # single configured camera group ("front"); kernel handles exactly that group
    assert set(images.keys()) == set(CAMERA_GROUPS.keys())
    imgs = images["front"]
    b, t, n, c, h, w = imgs.shape
    # lane-dense [C, H*W] camera blocks — pure reshape, no transpose / data movement
    imgs_flat = imgs.reshape(b, t * n, c, h * w).astype(jnp.float32)

    args = [imgs_flat, query_embed, init_trajs] + list(kernel_weights)
    in_specs = ([_batched_spec(imgs_flat.shape)]
                + [_bcast_spec(a.shape) for a in args[1:]])
    out_shape = jax.ShapeDtypeStruct(
        (b, NUM_QUERIES, NUM_LAYERS * PACK_PER_LAYER), jnp.float32)

    packed = pl.pallas_call(
        _sparse4d_kernel,
        out_shape=out_shape,
        grid=(b,),
        in_specs=in_specs,
        out_specs=_batched_spec(out_shape.shape),
        compiler_params=pltpu.CompilerParams(dimension_semantics=("parallel",)),
    )(*args)

    # split the lane-packed per-layer slots on the host
    trajs_prediction, trajs_prediction_ct, quality_prediction = [], [], []
    for li in range(NUM_LAYERS):
        base = li * PACK_PER_LAYER
        trajs_prediction.append(packed[:, :, base:base + TRAJ_DIM])
        quality_prediction.append(packed[:, :, base + TRAJ_DIM:base + TRAJ_DIM + 2])
    return trajs_prediction, trajs_prediction_ct, quality_prediction


# ----------------------------- main -----------------------------
if __name__ == "__main__":
    key = jax.random.PRNGKey(0)
    pkey, ikey, ckey, ekey = jax.random.split(key, 4)

    params = init_params(pkey)
    init_trajs = get_init_trajs(speed=23.0)

    images = {"front": jax.random.normal(ikey, (B, T, N_CAMS, C_IN, H, W), jnp.float32)}
    calibrations = {
        cam_id: jax.random.normal(jax.random.fold_in(ckey, i), (B, 16), jnp.float32)
        for i, cam_id in enumerate(CAMERA_GROUPS["front"])
    }
    ego_states = jax.random.normal(ekey, (B, T, 10), jnp.float32)

    # weight re-layout is hoisted out of the jitted hot path (done once)
    kernel_weights = prepare_kernel_weights(params)

    fwd = jax.jit(sparse4d_forward)
    trajs_pred, trajs_pred_ct, quality_pred = fwd(
        kernel_weights, init_trajs, params["query_embed"], images,
        calibrations, ego_states)

    jax.block_until_ready(trajs_pred)
    jax.block_until_ready(quality_pred)

    assert len(trajs_pred) == NUM_LAYERS and len(quality_pred) == NUM_LAYERS
    assert trajs_pred[-1].shape == (B, NUM_QUERIES, TRAJ_DIM)
    assert quality_pred[-1].shape == (B, NUM_QUERIES, 2)
    assert len(trajs_pred_ct) == 0
    assert all(bool(jnp.all(jnp.isfinite(t))) for t in trajs_pred + quality_pred)

    print("KERNEL_OK")
</pallas_src>

<mosaic_0001>
module attributes {stable_mosaic.version = 11 : i64} {
  func.func @_sparse4d_kernel(%arg0: i32, %arg1: memref<1x2x4x256xf32, #tpu.memory_space<vmem>>, %arg2: memref<16x32xf32, #tpu.memory_space<vmem>>, %arg3: memref<16x8xf32, #tpu.memory_space<vmem>>, %arg4: memref<32x4xbf16, #tpu.memory_space<vmem>>, %arg5: memref<32x1xf32, #tpu.memory_space<vmem>>, %arg6: memref<8x32xbf16, #tpu.memory_space<vmem>>, %arg7: memref<1x32xf32, #tpu.memory_space<vmem>>, %arg8: memref<32x32xbf16, #tpu.memory_space<vmem>>, %arg9: memref<1x32xf32, #tpu.memory_space<vmem>>, %arg10: memref<32x32xbf16, #tpu.memory_space<vmem>>, %arg11: memref<1x32xf32, #tpu.memory_space<vmem>>, %arg12: memref<32x32xbf16, #tpu.memory_space<vmem>>, %arg13: memref<1x32xf32, #tpu.memory_space<vmem>>, %arg14: memref<32x32xbf16, #tpu.memory_space<vmem>>, %arg15: memref<1x32xf32, #tpu.memory_space<vmem>>, %arg16: memref<32x32xbf16, #tpu.memory_space<vmem>>, %arg17: memref<1x32xf32, #tpu.memory_space<vmem>>, %arg18: memref<32x32xbf16, #tpu.memory_space<vmem>>, %arg19: memref<1x32xf32, #tpu.memory_space<vmem>>, %arg20: memref<8x4xbf16, #tpu.memory_space<vmem>>, %arg21: memref<1x4xf32, #tpu.memory_space<vmem>>, %arg22: memref<2x32x32xbf16, #tpu.memory_space<vmem>>, %arg23: memref<2x1x32xf32, #tpu.memory_space<vmem>>, %arg24: memref<2x32x32xbf16, #tpu.memory_space<vmem>>, %arg25: memref<2x1x32xf32, #tpu.memory_space<vmem>>, %arg26: memref<2x32x32xbf16, #tpu.memory_space<vmem>>, %arg27: memref<2x1x32xf32, #tpu.memory_space<vmem>>, %arg28: memref<2x32x32xbf16, #tpu.memory_space<vmem>>, %arg29: memref<2x1x32xf32, #tpu.memory_space<vmem>>, %arg30: memref<2x32x128xbf16, #tpu.memory_space<vmem>>, %arg31: memref<2x1x128xf32, #tpu.memory_space<vmem>>, %arg32: memref<2x128x32xbf16, #tpu.memory_space<vmem>>, %arg33: memref<2x1x32xf32, #tpu.memory_space<vmem>>, %arg34: memref<2x32x32xbf16, #tpu.memory_space<vmem>>, %arg35: memref<2x1x32xf32, #tpu.memory_space<vmem>>, %arg36: memref<2x32x8xbf16, #tpu.memory_space<vmem>>, %arg37: memref<2x1x8xf32, #tpu.memory_space<vmem>>, %arg38: memref<2x32x2xbf16, #tpu.memory_space<vmem>>, %arg39: memref<2x1x2xf32, #tpu.memory_space<vmem>>, %arg40: memref<1x16x32xf32, #tpu.memory_space<vmem>>) attributes {dimension_semantics = [#tpu.dimension_semantics<parallel>], iteration_bounds = array<i64: 2>, scalar_prefetch = 0 : i64, scratch_operands = 0 : i64, tpu.core_type = #tpu.core_type<tc>, window_params = [{transform_indices = @transform_0, window_bounds = array<i64: 1, 2, 4, 256>}, {pipeline_mode = #tpu.pipeline_mode<synchronous>, transform_indices = @transform_1, window_bounds = array<i64: 16, 32>}, {pipeline_mode = #tpu.pipeline_mode<synchronous>, transform_indices = @transform_2, window_bounds = array<i64: 16, 8>}, {pipeline_mode = #tpu.pipeline_mode<synchronous>, transform_indices = @transform_3, window_bounds = array<i64: 32, 4>}, {pipeline_mode = #tpu.pipeline_mode<synchronous>, transform_indices = @transform_4, window_bounds = array<i64: 32, 1>}, {pipeline_mode = #tpu.pipeline_mode<synchronous>, transform_indices = @transform_5, window_bounds = array<i64: 8, 32>}, {pipeline_mode = #tpu.pipeline_mode<synchronous>, transform_indices = @transform_6, window_bounds = array<i64: 1, 32>}, {pipeline_mode = #tpu.pipeline_mode<synchronous>, transform_indices = @transform_7, window_bounds = array<i64: 32, 32>}, {pipeline_mode = #tpu.pipeline_mode<synchronous>, transform_indices = @transform_8, window_bounds = array<i64: 1, 32>}, {pipeline_mode = #tpu.pipeline_mode<synchronous>, transform_indices = @transform_9, window_bounds = array<i64: 32, 32>}, {pipeline_mode = #tpu.pipeline_mode<synchronous>, transform_indices = @transform_10, window_bounds = array<i64: 1, 32>}, {pipeline_mode = #tpu.pipeline_mode<synchronous>, transform_indices = @transform_11, window_bounds = array<i64: 32, 32>}, {pipeline_mode = #tpu.pipeline_mode<synchronous>, transform_indices = @transform_12, window_bounds = array<i64: 1, 32>}, {pipeline_mode = #tpu.pipeline_mode<synchronous>, transform_indices = @transform_13, window_bounds = array<i64: 32, 32>}, {pipeline_mode = #tpu.pipeline_mode<synchronous>, transform_indices = @transform_14, window_bounds = array<i64: 1, 32>}, {pipeline_mode = #tpu.pipeline_mode<synchronous>, transform_indices = @transform_15, window_bounds = array<i64: 32, 32>}, {pipeline_mode = #tpu.pipeline_mode<synchronous>, transform_indices = @transform_16, window_bounds = array<i64: 1, 32>}, {pipeline_mode = #tpu.pipeline_mode<synchronous>, transform_indices = @transform_17, window_bounds = array<i64: 32, 32>}, {pipeline_mode = #tpu.pipeline_mode<synchronous>, transform_indices = @transform_18, window_bounds = array<i64: 1, 32>}, {pipeline_mode = #tpu.pipeline_mode<synchronous>, transform_indices = @transform_19, window_bounds = array<i64: 8, 4>}, {pipeline_mode = #tpu.pipeline_mode<synchronous>, transform_indices = @transform_20, window_bounds = array<i64: 1, 4>}, {pipeline_mode = #tpu.pipeline_mode<synchronous>, transform_indices = @transform_21, window_bounds = array<i64: 2, 32, 32>}, {pipeline_mode = #tpu.pipeline_mode<synchronous>, transform_indices = @transform_22, window_bounds = array<i64: 2, 1, 32>}, {pipeline_mode = #tpu.pipeline_mode<synchronous>, transform_indices = @transform_23, window_bounds = array<i64: 2, 32, 32>}, {pipeline_mode = #tpu.pipeline_mode<synchronous>, transform_indices = @transform_24, window_bounds = array<i64: 2, 1, 32>}, {pipeline_mode = #tpu.pipeline_mode<synchronous>, transform_indices = @transform_25, window_bounds = array<i64: 2, 32, 32>}, {pipeline_mode = #tpu.pipeline_mode<synchronous>, transform_indices = @transform_26, window_bounds = array<i64: 2, 1, 32>}, {pipeline_mode = #tpu.pipeline_mode<synchronous>, transform_indices = @transform_27, window_bounds = array<i64: 2, 32, 32>}, {pipeline_mode = #tpu.pipeline_mode<synchronous>, transform_indices = @transform_28, window_bounds = array<i64: 2, 1, 32>}, {pipeline_mode = #tpu.pipeline_mode<synchronous>, transform_indices = @transform_29, window_bounds = array<i64: 2, 32, 128>}, {pipeline_mode = #tpu.pipeline_mode<synchronous>, transform_indices = @transform_30, window_bounds = array<i64: 2, 1, 128>}, {pipeline_mode = #tpu.pipeline_mode<synchronous>, transform_indices = @transform_31, window_bounds = array<i64: 2, 128, 32>}, {pipeline_mode = #tpu.pipeline_mode<synchronous>, transform_indices = @transform_32, window_bounds = array<i64: 2, 1, 32>}, {pipeline_mode = #tpu.pipeline_mode<synchronous>, transform_indices = @transform_33, window_bounds = array<i64: 2, 32, 32>}, {pipeline_mode = #tpu.pipeline_mode<synchronous>, transform_indices = @transform_34, window_bounds = array<i64: 2, 1, 32>}, {pipeline_mode = #tpu.pipeline_mode<synchronous>, transform_indices = @transform_35, window_bounds = array<i64: 2, 32, 8>}, {pipeline_mode = #tpu.pipeline_mode<synchronous>, transform_indices = @transform_36, window_bounds = array<i64: 2, 1, 8>}, {pipeline_mode = #tpu.pipeline_mode<synchronous>, transform_indices = @transform_37, window_bounds = array<i64: 2, 32, 2>}, {pipeline_mode = #tpu.pipeline_mode<synchronous>, transform_indices = @transform_38, window_bounds = array<i64: 2, 1, 2>}, {transform_indices = @transform_39, window_bounds = array<i64: 1, 16, 32>}]} {
    %cst = arith.constant 3.906250e-03 : bf16
    %0 = vector.broadcast %cst : bf16 to vector<1x256xbf16>
    %c0 = arith.constant 0 : index
    %c0_0 = arith.constant 0 : index
    %1 = vector.load %arg4[%c0, %c0_0] : memref<32x4xbf16, #tpu.memory_space<vmem>>, vector<32x4xbf16>
    %c0_1 = arith.constant 0 : index
    %c0_2 = arith.constant 0 : index
    %c0_3 = arith.constant 0 : index
    %c0_4 = arith.constant 0 : index
    %2 = vector.load %arg1[%c0_1, %c0_2, %c0_3, %c0_4] : memref<1x2x4x256xf32, #tpu.memory_space<vmem>>, vector<1x1x4x256xf32>
    %3 = vector.shape_cast %2 : vector<1x1x4x256xf32> to vector<4x256xf32>
    %4 = arith.truncf %3 : vector<4x256xf32> to vector<4x256xbf16>
    %cst_5 = arith.constant dense<0.000000e+00> : vector<32x256xf32>
    %5 = tpu.matmul %1, %4, %cst_5 {dimension_numbers = #tpu.dot_dimension_numbers<[1], [0], [0], [1], [0, 0, 1, 1], [], []>} : vector<32x4xbf16>, vector<4x256xbf16>, vector<32x256xf32> -> vector<32x256xf32>
    %c0_6 = arith.constant 0 : index
    %c0_7 = arith.constant 0 : index
    %6 = vector.load %arg5[%c0_6, %c0_7] : memref<32x1xf32, #tpu.memory_space<vmem>>, vector<32x1xf32>
    %7 = vector.broadcast %6 : vector<32x1xf32> to vector<32x256xf32>
    %8 = arith.addf %5, %7 : vector<32x256xf32>
    %cst_8 = arith.constant 0.000000e+00 : f32
    %9 = vector.broadcast %cst_8 : f32 to vector<32x256xf32>
    %10 = arith.maximumf %8, %9 : vector<32x256xf32>
    %11 = arith.truncf %10 : vector<32x256xf32> to vector<32x256xbf16>
    %cst_9 = arith.constant dense<0.000000e+00> : vector<1x32xf32>
    %12 = tpu.matmul %0, %11, %cst_9 {dimension_numbers = #tpu.dot_dimension_numbers<[1], [1], [0], [0], [0, 0, 1, 0], [], []>} : vector<1x256xbf16>, vector<32x256xbf16>, vector<1x32xf32> -> vector<1x32xf32>
    %c0_10 = arith.constant 0 : index
    %c0_11 = arith.constant 0 : index
    %13 = vector.load %arg4[%c0_10, %c0_11] : memref<32x4xbf16, #tpu.memory_space<vmem>>, vector<32x4xbf16>
    %c0_12 = arith.constant 0 : index
    %c1 = arith.constant 1 : index
    %c0_13 = arith.constant 0 : index
    %c0_14 = arith.constant 0 : index
    %14 = vector.load %arg1[%c0_12, %c1, %c0_13, %c0_14] : memref<1x2x4x256xf32, #tpu.memory_space<vmem>>, vector<1x1x4x256xf32>
    %15 = vector.shape_cast %14 : vector<1x1x4x256xf32> to vector<4x256xf32>
    %16 = arith.truncf %15 : vector<4x256xf32> to vector<4x256xbf16>
    %cst_15 = arith.constant dense<0.000000e+00> : vector<32x256xf32>
    %17 = tpu.matmul %13, %16, %cst_15 {dimension_numbers = #tpu.dot_dimension_numbers<[1], [0], [0], [1], [0, 0, 1, 1], [], []>} : vector<32x4xbf16>, vector<4x256xbf16>, vector<32x256xf32> -> vector<32x256xf32>
    %c0_16 = arith.constant 0 : index
    %c0_17 = arith.constant 0 : index
    %18 = vector.load %arg5[%c0_16, %c0_17] : memref<32x1xf32, #tpu.memory_space<vmem>>, vector<32x1xf32>
    %19 = vector.broadcast %18 : vector<32x1xf32> to vector<32x256xf32>
    %20 = arith.addf %17, %19 : vector<32x256xf32>
    %cst_18 = arith.constant 0.000000e+00 : f32
    %21 = vector.broadcast %cst_18 : f32 to vector<32x256xf32>
    %22 = arith.maximumf %20, %21 : vector<32x256xf32>
    %23 = arith.truncf %22 : vector<32x256xf32> to vector<32x256xbf16>
    %cst_19 = arith.constant dense<0.000000e+00> : vector<1x32xf32>
    %24 = tpu.matmul %0, %23, %cst_19 {dimension_numbers = #tpu.dot_dimension_numbers<[1], [1], [0], [0], [0, 0, 1, 0], [], []>} : vector<1x256xbf16>, vector<32x256xbf16>, vector<1x32xf32> -> vector<1x32xf32>
    %25 = tpu.concatenate %12, %12, %24, %24 in 0 : vector<1x32xf32>, vector<1x32xf32>, vector<1x32xf32>, vector<1x32xf32> -> vector<4x32xf32>
    %c0_20 = arith.constant 0 : index
    %c0_21 = arith.constant 0 : index
    %26 = vector.load %arg3[%c0_20, %c0_21] : memref<16x8xf32, #tpu.memory_space<vmem>>, vector<16x8xf32>
    %c0_22 = arith.constant 0 : index
    %c0_23 = arith.constant 0 : index
    %27 = vector.load %arg6[%c0_22, %c0_23] : memref<8x32xbf16, #tpu.memory_space<vmem>>, vector<8x32xbf16>
    %28 = arith.truncf %26 : vector<16x8xf32> to vector<16x8xbf16>
    %cst_24 = arith.constant dense<0.000000e+00> : vector<16x32xf32>
    %29 = tpu.matmul %28, %27, %cst_24 {dimension_numbers = #tpu.dot_dimension_numbers<[1], [0], [0], [1], [0, 0, 1, 1], [], []>} : vector<16x8xbf16>, vector<8x32xbf16>, vector<16x32xf32> -> vector<16x32xf32>
    %c0_25 = arith.constant 0 : index
    %c0_26 = arith.constant 0 : index
    %30 = vector.load %arg7[%c0_25, %c0_26] : memref<1x32xf32, #tpu.memory_space<vmem>>, vector<1x32xf32>
    %31 = vector.broadcast %30 : vector<1x32xf32> to vector<16x32xf32>
    %32 = arith.addf %29, %31 : vector<16x32xf32>
    %cst_27 = arith.constant 0.000000e+00 : f32
    %33 = vector.broadcast %cst_27 : f32 to vector<16x32xf32>
    %34 = arith.maximumf %32, %33 : vector<16x32xf32>
    %c0_28 = arith.constant 0 : index
    %c0_29 = arith.constant 0 : index
    %35 = vector.load %arg8[%c0_28, %c0_29] : memref<32x32xbf16, #tpu.memory_space<vmem>>, vector<32x32xbf16>
    %36 = arith.truncf %34 : vector<16x32xf32> to vector<16x32xbf16>
    %cst_30 = arith.constant dense<0.000000e+00> : vector<16x32xf32>
    %37 = tpu.matmul %36, %35, %cst_30 {dimension_numbers = #tpu.dot_dimension_numbers<[1], [0], [0], [1], [0, 0, 1, 1], [], []>} : vector<16x32xbf16>, vector<32x32xbf16>, vector<16x32xf32> -> vector<16x32xf32>
    %c0_31 = arith.constant 0 : index
    %c0_32 = arith.constant 0 : index
    %38 = vector.load %arg9[%c0_31, %c0_32] : memref<1x32xf32, #tpu.memory_space<vmem>>, vector<1x32xf32>
    %39 = vector.broadcast %38 : vector<1x32xf32> to vector<16x32xf32>
    %40 = arith.addf %37, %39 : vector<16x32xf32>
    %c0_33 = arith.constant 0 : index
    %c0_34 = arith.constant 0 : index
    %41 = vector.load %arg10[%c0_33, %c0_34] : memref<32x32xbf16, #tpu.memory_space<vmem>>, vector<32x32xbf16>
    %42 = arith.truncf %25 : vector<4x32xf32> to vector<4x32xbf16>
    %cst_35 = arith.constant dense<0.000000e+00> : vector<4x32xf32>
    %43 = tpu.matmul %42, %41, %cst_35 {dimension_numbers = #tpu.dot_dimension_numbers<[1], [0], [0], [1], [0, 0, 1, 1], [], []>} : vector<4x32xbf16>, vector<32x32xbf16>, vector<4x32xf32> -> vector<4x32xf32>
    %c0_36 = arith.constant 0 : index
    %c0_37 = arith.constant 0 : index
    %44 = vector.load %arg11[%c0_36, %c0_37] : memref<1x32xf32, #tpu.memory_space<vmem>>, vector<1x32xf32>
    %45 = vector.broadcast %44 : vector<1x32xf32> to vector<4x32xf32>
    %46 = arith.addf %43, %45 : vector<4x32xf32>
    %c0_38 = arith.constant 0 : index
    %c0_39 = arith.constant 0 : index
    %47 = vector.load %arg14[%c0_38, %c0_39] : memref<32x32xbf16, #tpu.memory_space<vmem>>, vector<32x32xbf16>
    %48 = arith.truncf %46 : vector<4x32xf32> to vector<4x32xbf16>
    %cst_40 = arith.constant dense<0.000000e+00> : vector<4x32xf32>
    %49 = tpu.matmul %48, %47, %cst_40 {dimension_numbers = #tpu.dot_dimension_numbers<[1], [0], [0], [1], [0, 0, 1, 1], [], []>} : vector<4x32xbf16>, vector<32x32xbf16>, vector<4x32xf32> -> vector<4x32xf32>
    %c0_41 = arith.constant 0 : index
    %c0_42 = arith.constant 0 : index
    %50 = vector.load %arg15[%c0_41, %c0_42] : memref<1x32xf32, #tpu.memory_space<vmem>>, vector<1x32xf32>
    %51 = vector.broadcast %50 : vector<1x32xf32> to vector<4x32xf32>
    %52 = arith.addf %49, %51 : vector<4x32xf32>
    %c0_43 = arith.constant 0 : index
    %c0_44 = arith.constant 0 : index
    %53 = vector.load %arg16[%c0_43, %c0_44] : memref<32x32xbf16, #tpu.memory_space<vmem>>, vector<32x32xbf16>
    %54 = arith.truncf %46 : vector<4x32xf32> to vector<4x32xbf16>
    %cst_45 = arith.constant dense<0.000000e+00> : vector<4x32xf32>
    %55 = tpu.matmul %54, %53, %cst_45 {dimension_numbers = #tpu.dot_dimension_numbers<[1], [0], [0], [1], [0, 0, 1, 1], [], []>} : vector<4x32xbf16>, vector<32x32xbf16>, vector<4x32xf32> -> vector<4x32xf32>
    %c0_46 = arith.constant 0 : index
    %c0_47 = arith.constant 0 : index
    %56 = vector.load %arg17[%c0_46, %c0_47] : memref<1x32xf32, #tpu.memory_space<vmem>>, vector<1x32xf32>
    %57 = vector.broadcast %56 : vector<1x32xf32> to vector<4x32xf32>
    %58 = arith.addf %55, %57 : vector<4x32xf32>
    %c0_48 = arith.constant 0 : index
    %c0_49 = arith.constant 0 : index
    %59 = vector.load %arg2[%c0_48, %c0_49] : memref<16x32xf32, #tpu.memory_space<vmem>>, vector<16x32xf32>
    %c0_50 = arith.constant 0 : index
    %c0_51 = arith.constant 0 : index
    %60 = vector.load %arg3[%c0_50, %c0_51] : memref<16x8xf32, #tpu.memory_space<vmem>>, vector<16x8xf32>
    %c0_52 = arith.constant 0 : index
    %c0_53 = arith.constant 0 : index
    %61 = vector.load %arg20[%c0_52, %c0_53] : memref<8x4xbf16, #tpu.memory_space<vmem>>, vector<8x4xbf16>
    %62 = arith.truncf %60 : vector<16x8xf32> to vector<16x8xbf16>
    %cst_54 = arith.constant dense<0.000000e+00> : vector<16x4xf32>
    %63 = tpu.matmul %62, %61, %cst_54 {dimension_numbers = #tpu.dot_dimension_numbers<[1], [0], [0], [1], [0, 0, 1, 1], [], []>} : vector<16x8xbf16>, vector<8x4xbf16>, vector<16x4xf32> -> vector<16x4xf32>
    %c0_55 = arith.constant 0 : index
    %c0_56 = arith.constant 0 : index
    %64 = vector.load %arg21[%c0_55, %c0_56] : memref<1x4xf32, #tpu.memory_space<vmem>>, vector<1x4xf32>
    %65 = vector.broadcast %64 : vector<1x4xf32> to vector<16x4xf32>
    %66 = arith.addf %63, %65 : vector<16x4xf32>
    %67 = math.tanh %66 : vector<16x4xf32>
    %68 = arith.addf %59, %40 : vector<16x32xf32>
    %c0_57 = arith.constant 0 : index
    %c0_58 = arith.constant 0 : index
    %69 = vector.load %arg12[%c0_57, %c0_58] : memref<32x32xbf16, #tpu.memory_space<vmem>>, vector<32x32xbf16>
    %70 = arith.truncf %68 : vector<16x32xf32> to vector<16x32xbf16>
    %cst_59 = arith.constant dense<0.000000e+00> : vector<16x32xf32>
    %71 = tpu.matmul %70, %69, %cst_59 {dimension_numbers = #tpu.dot_dimension_numbers<[1], [0], [0], [1], [0, 0, 1, 1], [], []>} : vector<16x32xbf16>, vector<32x32xbf16>, vector<16x32xf32> -> vector<16x32xf32>
    %c0_60 = arith.constant 0 : index
    %c0_61 = arith.constant 0 : index
    %72 = vector.load %arg13[%c0_60, %c0_61] : memref<1x32xf32, #tpu.memory_space<vmem>>, vector<1x32xf32>
    %73 = vector.broadcast %72 : vector<1x32xf32> to vector<16x32xf32>
    %74 = arith.addf %71, %73 : vector<16x32xf32>
    %75 = vector.extract_strided_slice %74 {offsets = [0, 0], sizes = [16, 8], strides = [1, 1]} : vector<16x32xf32> to vector<16x8xf32>
    %76 = vector.extract_strided_slice %52 {offsets = [0, 0], sizes = [4, 8], strides = [1, 1]} : vector<4x32xf32> to vector<4x8xf32>
    %77 = arith.truncf %75 : vector<16x8xf32> to vector<16x8xbf16>
    %78 = arith.truncf %76 : vector<4x8xf32> to vector<4x8xbf16>
    %cst_62 = arith.constant dense<0.000000e+00> : vector<16x4xf32>
    %79 = tpu.matmul %77, %78, %cst_62 {dimension_numbers = #tpu.dot_dimension_numbers<[1], [1], [0], [0], [0, 0, 1, 0], [], []>} : vector<16x8xbf16>, vector<4x8xbf16>, vector<16x4xf32> -> vector<16x4xf32>
    %80 = vector.extract_strided_slice %74 {offsets = [0, 8], sizes = [16, 8], strides = [1, 1]} : vector<16x32xf32> to vector<16x8xf32>
    %81 = vector.extract_strided_slice %52 {offsets = [0, 8], sizes = [4, 8], strides = [1, 1]} : vector<4x32xf32> to vector<4x8xf32>
    %82 = arith.truncf %80 : vector<16x8xf32> to vector<16x8xbf16>
    %83 = arith.truncf %81 : vector<4x8xf32> to vector<4x8xbf16>
    %cst_63 = arith.constant dense<0.000000e+00> : vector<16x4xf32>
    %84 = tpu.matmul %82, %83, %cst_63 {dimension_numbers = #tpu.dot_dimension_numbers<[1], [1], [0], [0], [0, 0, 1, 0], [], []>} : vector<16x8xbf16>, vector<4x8xbf16>, vector<16x4xf32> -> vector<16x4xf32>
    %85 = vector.extract_strided_slice %74 {offsets = [0, 16], sizes = [16, 8], strides = [1, 1]} : vector<16x32xf32> to vector<16x8xf32>
    %86 = vector.extract_strided_slice %52 {offsets = [0, 16], sizes = [4, 8], strides = [1, 1]} : vector<4x32xf32> to vector<4x8xf32>
    %87 = arith.truncf %85 : vector<16x8xf32> to vector<16x8xbf16>
    %88 = arith.truncf %86 : vector<4x8xf32> to vector<4x8xbf16>
    %cst_64 = arith.constant dense<0.000000e+00> : vector<16x4xf32>
    %89 = tpu.matmul %87, %88, %cst_64 {dimension_numbers = #tpu.dot_dimension_numbers<[1], [1], [0], [0], [0, 0, 1, 0], [], []>} : vector<16x8xbf16>, vector<4x8xbf16>, vector<16x4xf32> -> vector<16x4xf32>
    %90 = vector.extract_strided_slice %74 {offsets = [0, 24], sizes = [16, 8], strides = [1, 1]} : vector<16x32xf32> to vector<16x8xf32>
    %91 = vector.extract_strided_slice %52 {offsets = [0, 24], sizes = [4, 8], strides = [1, 1]} : vector<4x32xf32> to vector<4x8xf32>
    %92 = arith.truncf %90 : vector<16x8xf32> to vector<16x8xbf16>
    %93 = arith.truncf %91 : vector<4x8xf32> to vector<4x8xbf16>
    %cst_65 = arith.constant dense<0.000000e+00> : vector<16x4xf32>
    %94 = tpu.matmul %92, %93, %cst_65 {dimension_numbers = #tpu.dot_dimension_numbers<[1], [1], [0], [0], [0, 0, 1, 0], [], []>} : vector<16x8xbf16>, vector<4x8xbf16>, vector<16x4xf32> -> vector<16x4xf32>
    %95 = tpu.concatenate %79, %84, %89, %94 in 0 : vector<16x4xf32>, vector<16x4xf32>, vector<16x4xf32>, vector<16x4xf32> -> vector<64x4xf32>
    %cst_66 = arith.constant 0.353553385 : f32
    %96 = vector.broadcast %cst_66 : f32 to vector<64x4xf32>
    %97 = arith.mulf %95, %96 : vector<64x4xf32>
    %cst_67 = arith.constant dense<0xFF800000> : vector<64xf32>
    %98 = vector.multi_reduction <maximumf>, %97, %cst_67 [1] : vector<64x4xf32> to vector<64xf32>
    %99 = vector.shape_cast %98 : vector<64xf32> to vector<64x1xf32>
    %100 = vector.broadcast %99 : vector<64x1xf32> to vector<64x4xf32>
    %101 = arith.subf %97, %100 : vector<64x4xf32>
    %102 = math.exp %101 : vector<64x4xf32>
    %cst_68 = arith.constant dense<0.000000e+00> : vector<64xf32>
    %103 = vector.multi_reduction <add>, %102, %cst_68 [1] : vector<64x4xf32> to vector<64xf32>
    %104 = vector.shape_cast %103 : vector<64xf32> to vector<64x1xf32>
    %105 = tpu.reciprocal %104 {approx = true} : vector<64x1xf32> -> vector<64x1xf32>
    %106 = vector.broadcast %105 : vector<64x1xf32> to vector<64x4xf32>
    %107 = arith.mulf %102, %106 : vector<64x4xf32>
    %108 = vector.extract_strided_slice %107 {offsets = [0, 0], sizes = [16, 4], strides = [1, 1]} : vector<64x4xf32> to vector<16x4xf32>
    %109 = vector.extract_strided_slice %58 {offsets = [0, 0], sizes = [4, 8], strides = [1, 1]} : vector<4x32xf32> to vector<4x8xf32>
    %110 = arith.truncf %108 : vector<16x4xf32> to vector<16x4xbf16>
    %111 = arith.truncf %109 : vector<4x8xf32> to vector<4x8xbf16>
    %cst_69 = arith.constant dense<0.000000e+00> : vector<16x8xf32>
    %112 = tpu.matmul %110, %111, %cst_69 {dimension_numbers = #tpu.dot_dimension_numbers<[1], [0], [0], [1], [0, 0, 1, 1], [], []>} : vector<16x4xbf16>, vector<4x8xbf16>, vector<16x8xf32> -> vector<16x8xf32>
    %113 = vector.extract_strided_slice %107 {offsets = [16, 0], sizes = [16, 4], strides = [1, 1]} : vector<64x4xf32> to vector<16x4xf32>
    %114 = vector.extract_strided_slice %58 {offsets = [0, 8], sizes = [4, 8], strides = [1, 1]} : vector<4x32xf32> to vector<4x8xf32>
    %115 = arith.truncf %113 : vector<16x4xf32> to vector<16x4xbf16>
    %116 = arith.truncf %114 : vector<4x8xf32> to vector<4x8xbf16>
    %cst_70 = arith.constant dense<0.000000e+00> : vector<16x8xf32>
    %117 = tpu.matmul %115, %116, %cst_70 {dimension_numbers = #tpu.dot_dimension_numbers<[1], [0], [0], [1], [0, 0, 1, 1], [], []>} : vector<16x4xbf16>, vector<4x8xbf16>, vector<16x8xf32> -> vector<16x8xf32>
    %118 = vector.extract_strided_slice %107 {offsets = [32, 0], sizes = [16, 4], strides = [1, 1]} : vector<64x4xf32> to vector<16x4xf32>
    %119 = vector.extract_strided_slice %58 {offsets = [0, 16], sizes = [4, 8], strides = [1, 1]} : vector<4x32xf32> to vector<4x8xf32>
    %120 = arith.truncf %118 : vector<16x4xf32> to vector<16x4xbf16>
    %121 = arith.truncf %119 : vector<4x8xf32> to vector<4x8xbf16>
    %cst_71 = arith.constant dense<0.000000e+00> : vector<16x8xf32>
    %122 = tpu.matmul %120, %121, %cst_71 {dimension_numbers = #tpu.dot_dimension_numbers<[1], [0], [0], [1], [0, 0, 1, 1], [], []>} : vector<16x4xbf16>, vector<4x8xbf16>, vector<16x8xf32> -> vector<16x8xf32>
    %123 = vector.extract_strided_slice %107 {offsets = [48, 0], sizes = [16, 4], strides = [1, 1]} : vector<64x4xf32> to vector<16x4xf32>
    %124 = vector.extract_strided_slice %58 {offsets = [0, 24], sizes = [4, 8], strides = [1, 1]} : vector<4x32xf32> to vector<4x8xf32>
    %125 = arith.truncf %123 : vector<16x4xf32> to vector<16x4xbf16>
    %126 = arith.truncf %124 : vector<4x8xf32> to vector<4x8xbf16>
    %cst_72 = arith.constant dense<0.000000e+00> : vector<16x8xf32>
    %127 = tpu.matmul %125, %126, %cst_72 {dimension_numbers = #tpu.dot_dimension_numbers<[1], [0], [0], [1], [0, 0, 1, 1], [], []>} : vector<16x4xbf16>, vector<4x8xbf16>, vector<16x8xf32> -> vector<16x8xf32>
    %128 = tpu.concatenate %112, %117, %122, %127 in 1 : vector<16x8xf32>, vector<16x8xf32>, vector<16x8xf32>, vector<16x8xf32> -> vector<16x32xf32>
    %c0_73 = arith.constant 0 : index
    %c0_74 = arith.constant 0 : index
    %129 = vector.load %arg18[%c0_73, %c0_74] : memref<32x32xbf16, #tpu.memory_space<vmem>>, vector<32x32xbf16>
    %130 = arith.truncf %128 : vector<16x32xf32> to vector<16x32xbf16>
    %cst_75 = arith.constant dense<0.000000e+00> : vector<16x32xf32>
    %131 = tpu.matmul %130, %129, %cst_75 {dimension_numbers = #tpu.dot_dimension_numbers<[1], [0], [0], [1], [0, 0, 1, 1], [], []>} : vector<16x32xbf16>, vector<32x32xbf16>, vector<16x32xf32> -> vector<16x32xf32>
    %132 = arith.addf %59, %131 : vector<16x32xf32>
    %c0_76 = arith.constant 0 : index
    %c0_77 = arith.constant 0 : index
    %133 = vector.load %arg19[%c0_76, %c0_77] : memref<1x32xf32, #tpu.memory_space<vmem>>, vector<1x32xf32>
    %134 = vector.broadcast %133 : vector<1x32xf32> to vector<16x32xf32>
    %135 = arith.addf %132, %134 : vector<16x32xf32>
    %136 = arith.addf %135, %40 : vector<16x32xf32>
    %c0_78 = arith.constant 0 : index
    %c0_79 = arith.constant 0 : index
    %c0_80 = arith.constant 0 : index
    %137 = vector.load %arg22[%c0_78, %c0_79, %c0_80] : memref<2x32x32xbf16, #tpu.memory_space<vmem>>, vector<1x32x32xbf16>
    %138 = vector.shape_cast %137 : vector<1x32x32xbf16> to vector<32x32xbf16>
    %139 = arith.truncf %136 : vector<16x32xf32> to vector<16x32xbf16>
    %cst_81 = arith.constant dense<0.000000e+00> : vector<16x32xf32>
    %140 = tpu.matmul %139, %138, %cst_81 {dimension_numbers = #tpu.dot_dimension_numbers<[1], [0], [0], [1], [0, 0, 1, 1], [], []>} : vector<16x32xbf16>, vector<32x32xbf16>, vector<16x32xf32> -> vector<16x32xf32>
    %c0_82 = arith.constant 0 : index
    %c0_83 = arith.constant 0 : index
    %c0_84 = arith.constant 0 : index
    %141 = vector.load %arg23[%c0_82, %c0_83, %c0_84] : memref<2x1x32xf32, #tpu.memory_space<vmem>>, vector<1x1x32xf32>
    %142 = vector.shape_cast %141 : vector<1x1x32xf32> to vector<1x32xf32>
    %143 = vector.broadcast %142 : vector<1x32xf32> to vector<16x32xf32>
    %144 = arith.addf %140, %143 : vector<16x32xf32>
    %c0_85 = arith.constant 0 : index
    %c0_86 = arith.constant 0 : index
    %c0_87 = arith.constant 0 : index
    %145 = vector.load %arg24[%c0_85, %c0_86, %c0_87] : memref<2x32x32xbf16, #tpu.memory_space<vmem>>, vector<1x32x32xbf16>
    %146 = vector.shape_cast %145 : vector<1x32x32xbf16> to vector<32x32xbf16>
    %147 = arith.truncf %136 : vector<16x32xf32> to vector<16x32xbf16>
    %cst_88 = arith.constant dense<0.000000e+00> : vector<16x32xf32>
    %148 = tpu.matmul %147, %146, %cst_88 {dimension_numbers = #tpu.dot_dimension_numbers<[1], [0], [0], [1], [0, 0, 1, 1], [], []>} : vector<16x32xbf16>, vector<32x32xbf16>, vector<16x32xf32> -> vector<16x32xf32>
    %c0_89 = arith.constant 0 : index
    %c0_90 = arith.constant 0 : index
    %c0_91 = arith.constant 0 : index
    %149 = vector.load %arg25[%c0_89, %c0_90, %c0_91] : memref<2x1x32xf32, #tpu.memory_space<vmem>>, vector<1x1x32xf32>
    %150 = vector.shape_cast %149 : vector<1x1x32xf32> to vector<1x32xf32>
    %151 = vector.broadcast %150 : vector<1x32xf32> to vector<16x32xf32>
    %152 = arith.addf %148, %151 : vector<16x32xf32>
    %c0_92 = arith.constant 0 : index
    %c0_93 = arith.constant 0 : index
    %c0_94 = arith.constant 0 : index
    %153 = vector.load %arg26[%c0_92, %c0_93, %c0_94] : memref<2x32x32xbf16, #tpu.memory_space<vmem>>, vector<1x32x32xbf16>
    %154 = vector.shape_cast %153 : vector<1x32x32xbf16> to vector<32x32xbf16>
    %155 = arith.truncf %135 : vector<16x32xf32> to vector<16x32xbf16>
    %cst_95 = arith.constant dense<0.000000e+00> : vector<16x32xf32>
    %156 = tpu.matmul %155, %154, %cst_95 {dimension_numbers = #tpu.dot_dimension_numbers<[1], [0], [0], [1], [0, 0, 1, 1], [], []>} : vector<16x32xbf16>, vector<32x32xbf16>, vector<16x32xf32> -> vector<16x32xf32>
    %c0_96 = arith.constant 0 : index
    %c0_97 = arith.constant 0 : index
    %c0_98 = arith.constant 0 : index
    %157 = vector.load %arg27[%c0_96, %c0_97, %c0_98] : memref<2x1x32xf32, #tpu.memory_space<vmem>>, vector<1x1x32xf32>
    %158 = vector.shape_cast %157 : vector<1x1x32xf32> to vector<1x32xf32>
    %159 = vector.broadcast %158 : vector<1x32xf32> to vector<16x32xf32>
    %160 = arith.addf %156, %159 : vector<16x32xf32>
    %161 = vector.extract_strided_slice %144 {offsets = [0, 0], sizes = [16, 8], strides = [1, 1]} : vector<16x32xf32> to vector<16x8xf32>
    %162 = vector.extract_strided_slice %152 {offsets = [0, 0], sizes = [16, 8], strides = [1, 1]} : vector<16x32xf32> to vector<16x8xf32>
    %163 = arith.truncf %161 : vector<16x8xf32> to vector<16x8xbf16>
    %164 = arith.truncf %162 : vector<16x8xf32> to vector<16x8xbf16>
    %cst_99 = arith.constant dense<0.000000e+00> : vector<16x16xf32>
    %165 = tpu.matmul %163, %164, %cst_99 {dimension_numbers = #tpu.dot_dimension_numbers<[1], [1], [0], [0], [0, 0, 1, 0], [], []>} : vector<16x8xbf16>, vector<16x8xbf16>, vector<16x16xf32> -> vector<16x16xf32>
    %166 = vector.extract_strided_slice %144 {offsets = [0, 8], sizes = [16, 8], strides = [1, 1]} : vector<16x32xf32> to vector<16x8xf32>
    %167 = vector.extract_strided_slice %152 {offsets = [0, 8], sizes = [16, 8], strides = [1, 1]} : vector<16x32xf32> to vector<16x8xf32>
    %168 = arith.truncf %166 : vector<16x8xf32> to vector<16x8xbf16>
    %169 = arith.truncf %167 : vector<16x8xf32> to vector<16x8xbf16>
    %cst_100 = arith.constant dense<0.000000e+00> : vector<16x16xf32>
    %170 = tpu.matmul %168, %169, %cst_100 {dimension_numbers = #tpu.dot_dimension_numbers<[1], [1], [0], [0], [0, 0, 1, 0], [], []>} : vector<16x8xbf16>, vector<16x8xbf16>, vector<16x16xf32> -> vector<16x16xf32>
    %171 = vector.extract_strided_slice %144 {offsets = [0, 16], sizes = [16, 8], strides = [1, 1]} : vector<16x32xf32> to vector<16x8xf32>
    %172 = vector.extract_strided_slice %152 {offsets = [0, 16], sizes = [16, 8], strides = [1, 1]} : vector<16x32xf32> to vector<16x8xf32>
    %173 = arith.truncf %171 : vector<16x8xf32> to vector<16x8xbf16>
    %174 = arith.truncf %172 : vector<16x8xf32> to vector<16x8xbf16>
    %cst_101 = arith.constant dense<0.000000e+00> : vector<16x16xf32>
    %175 = tpu.matmul %173, %174, %cst_101 {dimension_numbers = #tpu.dot_dimension_numbers<[1], [1], [0], [0], [0, 0, 1, 0], [], []>} : vector<16x8xbf16>, vector<16x8xbf16>, vector<16x16xf32> -> vector<16x16xf32>
    %176 = vector.extract_strided_slice %144 {offsets = [0, 24], sizes = [16, 8], strides = [1, 1]} : vector<16x32xf32> to vector<16x8xf32>
    %177 = vector.extract_strided_slice %152 {offsets = [0, 24], sizes = [16, 8], strides = [1, 1]} : vector<16x32xf32> to vector<16x8xf32>
    %178 = arith.truncf %176 : vector<16x8xf32> to vector<16x8xbf16>
    %179 = arith.truncf %177 : vector<16x8xf32> to vector<16x8xbf16>
    %cst_102 = arith.constant dense<0.000000e+00> : vector<16x16xf32>
    %180 = tpu.matmul %178, %179, %cst_102 {dimension_numbers = #tpu.dot_dimension_numbers<[1], [1], [0], [0], [0, 0, 1, 0], [], []>} : vector<16x8xbf16>, vector<16x8xbf16>, vector<16x16xf32> -> vector<16x16xf32>
    %181 = tpu.concatenate %165, %170, %175, %180 in 0 : vector<16x16xf32>, vector<16x16xf32>, vector<16x16xf32>, vector<16x16xf32> -> vector<64x16xf32>
    %cst_103 = arith.constant 0.353553385 : f32
    %182 = vector.broadcast %cst_103 : f32 to vector<64x16xf32>
    %183 = arith.mulf %181, %182 : vector<64x16xf32>
    %cst_104 = arith.constant dense<0xFF800000> : vector<64xf32>
    %184 = vector.multi_reduction <maximumf>, %183, %cst_104 [1] : vector<64x16xf32> to vector<64xf32>
    %185 = vector.shape_cast %184 : vector<64xf32> to vector<64x1xf32>
    %186 = vector.broadcast %185 : vector<64x1xf32> to vector<64x16xf32>
    %187 = arith.subf %183, %186 : vector<64x16xf32>
    %188 = math.exp %187 : vector<64x16xf32>
    %cst_105 = arith.constant dense<0.000000e+00> : vector<64xf32>
    %189 = vector.multi_reduction <add>, %188, %cst_105 [1] : vector<64x16xf32> to vector<64xf32>
    %190 = vector.shape_cast %189 : vector<64xf32> to vector<64x1xf32>
    %191 = tpu.reciprocal %190 {approx = true} : vector<64x1xf32> -> vector<64x1xf32>
    %192 = vector.broadcast %191 : vector<64x1xf32> to vector<64x16xf32>
    %193 = arith.mulf %188, %192 : vector<64x16xf32>
    %194 = vector.extract_strided_slice %193 {offsets = [0, 0], sizes = [16, 16], strides = [1, 1]} : vector<64x16xf32> to vector<16x16xf32>
    %195 = vector.extract_strided_slice %160 {offsets = [0, 0], sizes = [16, 8], strides = [1, 1]} : vector<16x32xf32> to vector<16x8xf32>
    %196 = arith.truncf %194 : vector<16x16xf32> to vector<16x16xbf16>
    %197 = arith.truncf %195 : vector<16x8xf32> to vector<16x8xbf16>
    %cst_106 = arith.constant dense<0.000000e+00> : vector<16x8xf32>
    %198 = tpu.matmul %196, %197, %cst_106 {dimension_numbers = #tpu.dot_dimension_numbers<[1], [0], [0], [1], [0, 0, 1, 1], [], []>} : vector<16x16xbf16>, vector<16x8xbf16>, vector<16x8xf32> -> vector<16x8xf32>
    %199 = vector.extract_strided_slice %193 {offsets = [16, 0], sizes = [16, 16], strides = [1, 1]} : vector<64x16xf32> to vector<16x16xf32>
    %200 = vector.extract_strided_slice %160 {offsets = [0, 8], sizes = [16, 8], strides = [1, 1]} : vector<16x32xf32> to vector<16x8xf32>
    %201 = arith.truncf %199 : vector<16x16xf32> to vector<16x16xbf16>
    %202 = arith.truncf %200 : vector<16x8xf32> to vector<16x8xbf16>
    %cst_107 = arith.constant dense<0.000000e+00> : vector<16x8xf32>
    %203 = tpu.matmul %201, %202, %cst_107 {dimension_numbers = #tpu.dot_dimension_numbers<[1], [0], [0], [1], [0, 0, 1, 1], [], []>} : vector<16x16xbf16>, vector<16x8xbf16>, vector<16x8xf32> -> vector<16x8xf32>
    %204 = vector.extract_strided_slice %193 {offsets = [32, 0], sizes = [16, 16], strides = [1, 1]} : vector<64x16xf32> to vector<16x16xf32>
    %205 = vector.extract_strided_slice %160 {offsets = [0, 16], sizes = [16, 8], strides = [1, 1]} : vector<16x32xf32> to vector<16x8xf32>
    %206 = arith.truncf %204 : vector<16x16xf32> to vector<16x16xbf16>
    %207 = arith.truncf %205 : vector<16x8xf32> to vector<16x8xbf16>
    %cst_108 = arith.constant dense<0.000000e+00> : vector<16x8xf32>
    %208 = tpu.matmul %206, %207, %cst_108 {dimension_numbers = #tpu.dot_dimension_numbers<[1], [0], [0], [1], [0, 0, 1, 1], [], []>} : vector<16x16xbf16>, vector<16x8xbf16>, vector<16x8xf32> -> vector<16x8xf32>
    %209 = vector.extract_strided_slice %193 {offsets = [48, 0], sizes = [16, 16], strides = [1, 1]} : vector<64x16xf32> to vector<16x16xf32>
    %210 = vector.extract_strided_slice %160 {offsets = [0, 24], sizes = [16, 8], strides = [1, 1]} : vector<16x32xf32> to vector<16x8xf32>
    %211 = arith.truncf %209 : vector<16x16xf32> to vector<16x16xbf16>
    %212 = arith.truncf %210 : vector<16x8xf32> to vector<16x8xbf16>
    %cst_109 = arith.constant dense<0.000000e+00> : vector<16x8xf32>
    %213 = tpu.matmul %211, %212, %cst_109 {dimension_numbers = #tpu.dot_dimension_numbers<[1], [0], [0], [1], [0, 0, 1, 1], [], []>} : vector<16x16xbf16>, vector<16x8xbf16>, vector<16x8xf32> -> vector<16x8xf32>
    %214 = tpu.concatenate %198, %203, %208, %213 in 1 : vector<16x8xf32>, vector<16x8xf32>, vector<16x8xf32>, vector<16x8xf32> -> vector<16x32xf32>
    %c0_110 = arith.constant 0 : index
    %c0_111 = arith.constant 0 : index
    %c0_112 = arith.constant 0 : index
    %215 = vector.load %arg28[%c0_110, %c0_111, %c0_112] : memref<2x32x32xbf16, #tpu.memory_space<vmem>>, vector<1x32x32xbf16>
    %216 = vector.shape_cast %215 : vector<1x32x32xbf16> to vector<32x32xbf16>
    %217 = arith.truncf %214 : vector<16x32xf32> to vector<16x32xbf16>
    %cst_113 = arith.constant dense<0.000000e+00> : vector<16x32xf32>
    %218 = tpu.matmul %217, %216, %cst_113 {dimension_numbers = #tpu.dot_dimension_numbers<[1], [0], [0], [1], [0, 0, 1, 1], [], []>} : vector<16x32xbf16>, vector<32x32xbf16>, vector<16x32xf32> -> vector<16x32xf32>
    %219 = arith.addf %135, %218 : vector<16x32xf32>
    %c0_114 = arith.constant 0 : index
    %c0_115 = arith.constant 0 : index
    %c0_116 = arith.constant 0 : index
    %220 = vector.load %arg29[%c0_114, %c0_115, %c0_116] : memref<2x1x32xf32, #tpu.memory_space<vmem>>, vector<1x1x32xf32>
    %221 = vector.shape_cast %220 : vector<1x1x32xf32> to vector<1x32xf32>
    %222 = vector.broadcast %221 : vector<1x32xf32> to vector<16x32xf32>
    %223 = arith.addf %219, %222 : vector<16x32xf32>
    %c0_117 = arith.constant 0 : index
    %c0_118 = arith.constant 0 : index
    %c0_119 = arith.constant 0 : index
    %224 = vector.load %arg30[%c0_117, %c0_118, %c0_119] : memref<2x32x128xbf16, #tpu.memory_space<vmem>>, vector<1x32x128xbf16>
    %225 = vector.shape_cast %224 : vector<1x32x128xbf16> to vector<32x128xbf16>
    %226 = arith.truncf %223 : vector<16x32xf32> to vector<16x32xbf16>
    %cst_120 = arith.constant dense<0.000000e+00> : vector<16x128xf32>
    %227 = tpu.matmul %226, %225, %cst_120 {dimension_numbers = #tpu.dot_dimension_numbers<[1], [0], [0], [1], [0, 0, 1, 1], [], []>} : vector<16x32xbf16>, vector<32x128xbf16>, vector<16x128xf32> -> vector<16x128xf32>
    %c0_121 = arith.constant 0 : index
    %c0_122 = arith.constant 0 : index
    %c0_123 = arith.constant 0 : index
    %228 = vector.load %arg31[%c0_121, %c0_122, %c0_123] : memref<2x1x128xf32, #tpu.memory_space<vmem>>, vector<1x1x128xf32>
    %229 = vector.shape_cast %228 : vector<1x1x128xf32> to vector<1x128xf32>
    %230 = vector.broadcast %229 : vector<1x128xf32> to vector<16x128xf32>
    %231 = arith.addf %227, %230 : vector<16x128xf32>
    %cst_124 = arith.constant 0.000000e+00 : f32
    %232 = vector.broadcast %cst_124 : f32 to vector<16x128xf32>
    %233 = arith.maximumf %231, %232 : vector<16x128xf32>
    %c0_125 = arith.constant 0 : index
    %c0_126 = arith.constant 0 : index
    %c0_127 = arith.constant 0 : index
    %234 = vector.load %arg32[%c0_125, %c0_126, %c0_127] : memref<2x128x32xbf16, #tpu.memory_space<vmem>>, vector<1x128x32xbf16>
    %235 = vector.shape_cast %234 : vector<1x128x32xbf16> to vector<128x32xbf16>
    %236 = arith.truncf %233 : vector<16x128xf32> to vector<16x128xbf16>
    %cst_128 = arith.constant dense<0.000000e+00> : vector<16x32xf32>
    %237 = tpu.matmul %236, %235, %cst_128 {dimension_numbers = #tpu.dot_dimension_numbers<[1], [0], [0], [1], [0, 0, 1, 1], [], []>} : vector<16x128xbf16>, vector<128x32xbf16>, vector<16x32xf32> -> vector<16x32xf32>
    %238 = arith.addf %223, %237 : vector<16x32xf32>
    %c0_129 = arith.constant 0 : index
    %c0_130 = arith.constant 0 : index
    %c0_131 = arith.constant 0 : index
    %239 = vector.load %arg33[%c0_129, %c0_130, %c0_131] : memref<2x1x32xf32, #tpu.memory_space<vmem>>, vector<1x1x32xf32>
    %240 = vector.shape_cast %239 : vector<1x1x32xf32> to vector<1x32xf32>
    %241 = vector.broadcast %240 : vector<1x32xf32> to vector<16x32xf32>
    %242 = arith.addf %238, %241 : vector<16x32xf32>
    %243 = arith.addf %242, %40 : vector<16x32xf32>
    %c0_132 = arith.constant 0 : index
    %c0_133 = arith.constant 0 : index
    %c0_134 = arith.constant 0 : index
    %244 = vector.load %arg34[%c0_132, %c0_133, %c0_134] : memref<2x32x32xbf16, #tpu.memory_space<vmem>>, vector<1x32x32xbf16>
    %245 = vector.shape_cast %244 : vector<1x32x32xbf16> to vector<32x32xbf16>
    %246 = arith.truncf %243 : vector<16x32xf32> to vector<16x32xbf16>
    %cst_135 = arith.constant dense<0.000000e+00> : vector<16x32xf32>
    %247 = tpu.matmul %246, %245, %cst_135 {dimension_numbers = #tpu.dot_dimension_numbers<[1], [0], [0], [1], [0, 0, 1, 1], [], []>} : vector<16x32xbf16>, vector<32x32xbf16>, vector<16x32xf32> -> vector<16x32xf32>
    %c0_136 = arith.constant 0 : index
    %c0_137 = arith.constant 0 : index
    %c0_138 = arith.constant 0 : index
    %248 = vector.load %arg35[%c0_136, %c0_137, %c0_138] : memref<2x1x32xf32, #tpu.memory_space<vmem>>, vector<1x1x32xf32>
    %249 = vector.shape_cast %248 : vector<1x1x32xf32> to vector<1x32xf32>
    %250 = vector.broadcast %249 : vector<1x32xf32> to vector<16x32xf32>
    %251 = arith.addf %247, %250 : vector<16x32xf32>
    %cst_139 = arith.constant 0.000000e+00 : f32
    %252 = vector.broadcast %cst_139 : f32 to vector<16x32xf32>
    %253 = arith.maximumf %251, %252 : vector<16x32xf32>
    %c0_140 = arith.constant 0 : index
    %c0_141 = arith.constant 0 : index
    %c0_142 = arith.constant 0 : index
    %254 = vector.load %arg36[%c0_140, %c0_141, %c0_142] : memref<2x32x8xbf16, #tpu.memory_space<vmem>>, vector<1x32x8xbf16>
    %255 = vector.shape_cast %254 : vector<1x32x8xbf16> to vector<32x8xbf16>
    %256 = arith.truncf %253 : vector<16x32xf32> to vector<16x32xbf16>
    %cst_143 = arith.constant dense<0.000000e+00> : vector<16x8xf32>
    %257 = tpu.matmul %256, %255, %cst_143 {dimension_numbers = #tpu.dot_dimension_numbers<[1], [0], [0], [1], [0, 0, 1, 1], [], []>} : vector<16x32xbf16>, vector<32x8xbf16>, vector<16x8xf32> -> vector<16x8xf32>
    %258 = arith.addf %60, %257 : vector<16x8xf32>
    %c0_144 = arith.constant 0 : index
    %c0_145 = arith.constant 0 : index
    %c0_146 = arith.constant 0 : index
    %259 = vector.load %arg37[%c0_144, %c0_145, %c0_146] : memref<2x1x8xf32, #tpu.memory_space<vmem>>, vector<1x1x8xf32>
    %260 = vector.shape_cast %259 : vector<1x1x8xf32> to vector<1x8xf32>
    %261 = vector.broadcast %260 : vector<1x8xf32> to vector<16x8xf32>
    %262 = arith.addf %258, %261 : vector<16x8xf32>
    %c0_147 = arith.constant 0 : index
    %c0_148 = arith.constant 0 : index
    %c0_149 = arith.constant 0 : index
    %263 = vector.load %arg38[%c0_147, %c0_148, %c0_149] : memref<2x32x2xbf16, #tpu.memory_space<vmem>>, vector<1x32x2xbf16>
    %264 = vector.shape_cast %263 : vector<1x32x2xbf16> to vector<32x2xbf16>
    %265 = arith.truncf %253 : vector<16x32xf32> to vector<16x32xbf16>
    %cst_150 = arith.constant dense<0.000000e+00> : vector<16x2xf32>
    %266 = tpu.matmul %265, %264, %cst_150 {dimension_numbers = #tpu.dot_dimension_numbers<[1], [0], [0], [1], [0, 0, 1, 1], [], []>} : vector<16x32xbf16>, vector<32x2xbf16>, vector<16x2xf32> -> vector<16x2xf32>
    %c0_151 = arith.constant 0 : index
    %c0_152 = arith.constant 0 : index
    %c0_153 = arith.constant 0 : index
    %267 = vector.load %arg39[%c0_151, %c0_152, %c0_153] : memref<2x1x2xf32, #tpu.memory_space<vmem>>, vector<1x1x2xf32>
    %268 = vector.shape_cast %267 : vector<1x1x2xf32> to vector<1x2xf32>
    %269 = vector.broadcast %268 : vector<1x2xf32> to vector<16x2xf32>
    %270 = arith.addf %266, %269 : vector<16x2xf32>
    %cst_154 = arith.constant 0.000000e+00 : f32
    %271 = vector.broadcast %cst_154 : f32 to vector<16x2xf32>
    %272 = tpu.concatenate %262, %270, %67, %271 in 1 : vector<16x8xf32>, vector<16x2xf32>, vector<16x4xf32>, vector<16x2xf32> -> vector<16x16xf32>
    %c0_155 = arith.constant 0 : index
    %c0_156 = arith.constant 0 : index
    %273 = vector.load %arg20[%c0_155, %c0_156] : memref<8x4xbf16, #tpu.memory_space<vmem>>, vector<8x4xbf16>
    %274 = arith.truncf %262 : vector<16x8xf32> to vector<16x8xbf16>
    %cst_157 = arith.constant dense<0.000000e+00> : vector<16x4xf32>
    %275 = tpu.matmul %274, %273, %cst_157 {dimension_numbers = #tpu.dot_dimension_numbers<[1], [0], [0], [1], [0, 0, 1, 1], [], []>} : vector<16x8xbf16>, vector<8x4xbf16>, vector<16x4xf32> -> vector<16x4xf32>
    %c0_158 = arith.constant 0 : index
    %c0_159 = arith.constant 0 : index
    %276 = vector.load %arg21[%c0_158, %c0_159] : memref<1x4xf32, #tpu.memory_space<vmem>>, vector<1x4xf32>
    %277 = vector.broadcast %276 : vector<1x4xf32> to vector<16x4xf32>
    %278 = arith.addf %275, %277 : vector<16x4xf32>
    %279 = math.tanh %278 : vector<16x4xf32>
    %280 = arith.addf %242, %40 : vector<16x32xf32>
    %c0_160 = arith.constant 0 : index
    %c0_161 = arith.constant 0 : index
    %281 = vector.load %arg12[%c0_160, %c0_161] : memref<32x32xbf16, #tpu.memory_space<vmem>>, vector<32x32xbf16>
    %282 = arith.truncf %280 : vector<16x32xf32> to vector<16x32xbf16>
    %cst_162 = arith.constant dense<0.000000e+00> : vector<16x32xf32>
    %283 = tpu.matmul %282, %281, %cst_162 {dimension_numbers = #tpu.dot_dimension_numbers<[1], [0], [0], [1], [0, 0, 1, 1], [], []>} : vector<16x32xbf16>, vector<32x32xbf16>, vector<16x32xf32> -> vector<16x32xf32>
    %c0_163 = arith.constant 0 : index
    %c0_164 = arith.constant 0 : index
    %284 = vector.load %arg13[%c0_163, %c0_164] : memref<1x32xf32, #tpu.memory_space<vmem>>, vector<1x32xf32>
    %285 = vector.broadcast %284 : vector<1x32xf32> to vector<16x32xf32>
    %286 = arith.addf %283, %285 : vector<16x32xf32>
    %287 = vector.extract_strided_slice %286 {offsets = [0, 0], sizes = [16, 8], strides = [1, 1]} : vector<16x32xf32> to vector<16x8xf32>
    %288 = vector.extract_strided_slice %52 {offsets = [0, 0], sizes = [4, 8], strides = [1, 1]} : vector<4x32xf32> to vector<4x8xf32>
    %289 = arith.truncf %287 : vector<16x8xf32> to vector<16x8xbf16>
    %290 = arith.truncf %288 : vector<4x8xf32> to vector<4x8xbf16>
    %cst_165 = arith.constant dense<0.000000e+00> : vector<16x4xf32>
    %291 = tpu.matmul %289, %290, %cst_165 {dimension_numbers = #tpu.dot_dimension_numbers<[1], [1], [0], [0], [0, 0, 1, 0], [], []>} : vector<16x8xbf16>, vector<4x8xbf16>, vector<16x4xf32> -> vector<16x4xf32>
    %292 = vector.extract_strided_slice %286 {offsets = [0, 8], sizes = [16, 8], strides = [1, 1]} : vector<16x32xf32> to vector<16x8xf32>
    %293 = vector.extract_strided_slice %52 {offsets = [0, 8], sizes = [4, 8], strides = [1, 1]} : vector<4x32xf32> to vector<4x8xf32>
    %294 = arith.truncf %292 : vector<16x8xf32> to vector<16x8xbf16>
    %295 = arith.truncf %293 : vector<4x8xf32> to vector<4x8xbf16>
    %cst_166 = arith.constant dense<0.000000e+00> : vector<16x4xf32>
    %296 = tpu.matmul %294, %295, %cst_166 {dimension_numbers = #tpu.dot_dimension_numbers<[1], [1], [0], [0], [0, 0, 1, 0], [], []>} : vector<16x8xbf16>, vector<4x8xbf16>, vector<16x4xf32> -> vector<16x4xf32>
    %297 = vector.extract_strided_slice %286 {offsets = [0, 16], sizes = [16, 8], strides = [1, 1]} : vector<16x32xf32> to vector<16x8xf32>
    %298 = vector.extract_strided_slice %52 {offsets = [0, 16], sizes = [4, 8], strides = [1, 1]} : vector<4x32xf32> to vector<4x8xf32>
    %299 = arith.truncf %297 : vector<16x8xf32> to vector<16x8xbf16>
    %300 = arith.truncf %298 : vector<4x8xf32> to vector<4x8xbf16>
    %cst_167 = arith.constant dense<0.000000e+00> : vector<16x4xf32>
    %301 = tpu.matmul %299, %300, %cst_167 {dimension_numbers = #tpu.dot_dimension_numbers<[1], [1], [0], [0], [0, 0, 1, 0], [], []>} : vector<16x8xbf16>, vector<4x8xbf16>, vector<16x4xf32> -> vector<16x4xf32>
    %302 = vector.extract_strided_slice %286 {offsets = [0, 24], sizes = [16, 8], strides = [1, 1]} : vector<16x32xf32> to vector<16x8xf32>
    %303 = vector.extract_strided_slice %52 {offsets = [0, 24], sizes = [4, 8], strides = [1, 1]} : vector<4x32xf32> to vector<4x8xf32>
    %304 = arith.truncf %302 : vector<16x8xf32> to vector<16x8xbf16>
    %305 = arith.truncf %303 : vector<4x8xf32> to vector<4x8xbf16>
    %cst_168 = arith.constant dense<0.000000e+00> : vector<16x4xf32>
    %306 = tpu.matmul %304, %305, %cst_168 {dimension_numbers = #tpu.dot_dimension_numbers<[1], [1], [0], [0], [0, 0, 1, 0], [], []>} : vector<16x8xbf16>, vector<4x8xbf16>, vector<16x4xf32> -> vector<16x4xf32>
    %307 = tpu.concatenate %291, %296, %301, %306 in 0 : vector<16x4xf32>, vector<16x4xf32>, vector<16x4xf32>, vector<16x4xf32> -> vector<64x4xf32>
    %cst_169 = arith.constant 0.353553385 : f32
    %308 = vector.broadcast %cst_169 : f32 to vector<64x4xf32>
    %309 = arith.mulf %307, %308 : vector<64x4xf32>
    %cst_170 = arith.constant dense<0xFF800000> : vector<64xf32>
    %310 = vector.multi_reduction <maximumf>, %309, %cst_170 [1] : vector<64x4xf32> to vector<64xf32>
    %311 = vector.shape_cast %310 : vector<64xf32> to vector<64x1xf32>
    %312 = vector.broadcast %311 : vector<64x1xf32> to vector<64x4xf32>
    %313 = arith.subf %309, %312 : vector<64x4xf32>
    %314 = math.exp %313 : vector<64x4xf32>
    %cst_171 = arith.constant dense<0.000000e+00> : vector<64xf32>
    %315 = vector.multi_reduction <add>, %314, %cst_171 [1] : vector<64x4xf32> to vector<64xf32>
    %316 = vector.shape_cast %315 : vector<64xf32> to vector<64x1xf32>
    %317 = tpu.reciprocal %316 {approx = true} : vector<64x1xf32> -> vector<64x1xf32>
    %318 = vector.broadcast %317 : vector<64x1xf32> to vector<64x4xf32>
    %319 = arith.mulf %314, %318 : vector<64x4xf32>
    %320 = vector.extract_strided_slice %319 {offsets = [0, 0], sizes = [16, 4], strides = [1, 1]} : vector<64x4xf32> to vector<16x4xf32>
    %321 = vector.extract_strided_slice %58 {offsets = [0, 0], sizes = [4, 8], strides = [1, 1]} : vector<4x32xf32> to vector<4x8xf32>
    %322 = arith.truncf %320 : vector<16x4xf32> to vector<16x4xbf16>
    %323 = arith.truncf %321 : vector<4x8xf32> to vector<4x8xbf16>
    %cst_172 = arith.constant dense<0.000000e+00> : vector<16x8xf32>
    %324 = tpu.matmul %322, %323, %cst_172 {dimension_numbers = #tpu.dot_dimension_numbers<[1], [0], [0], [1], [0, 0, 1, 1], [], []>} : vector<16x4xbf16>, vector<4x8xbf16>, vector<16x8xf32> -> vector<16x8xf32>
    %325 = vector.extract_strided_slice %319 {offsets = [16, 0], sizes = [16, 4], strides = [1, 1]} : vector<64x4xf32> to vector<16x4xf32>
    %326 = vector.extract_strided_slice %58 {offsets = [0, 8], sizes = [4, 8], strides = [1, 1]} : vector<4x32xf32> to vector<4x8xf32>
    %327 = arith.truncf %325 : vector<16x4xf32> to vector<16x4xbf16>
    %328 = arith.truncf %326 : vector<4x8xf32> to vector<4x8xbf16>
    %cst_173 = arith.constant dense<0.000000e+00> : vector<16x8xf32>
    %329 = tpu.matmul %327, %328, %cst_173 {dimension_numbers = #tpu.dot_dimension_numbers<[1], [0], [0], [1], [0, 0, 1, 1], [], []>} : vector<16x4xbf16>, vector<4x8xbf16>, vector<16x8xf32> -> vector<16x8xf32>
    %330 = vector.extract_strided_slice %319 {offsets = [32, 0], sizes = [16, 4], strides = [1, 1]} : vector<64x4xf32> to vector<16x4xf32>
    %331 = vector.extract_strided_slice %58 {offsets = [0, 16], sizes = [4, 8], strides = [1, 1]} : vector<4x32xf32> to vector<4x8xf32>
    %332 = arith.truncf %330 : vector<16x4xf32> to vector<16x4xbf16>
    %333 = arith.truncf %331 : vector<4x8xf32> to vector<4x8xbf16>
    %cst_174 = arith.constant dense<0.000000e+00> : vector<16x8xf32>
    %334 = tpu.matmul %332, %333, %cst_174 {dimension_numbers = #tpu.dot_dimension_numbers<[1], [0], [0], [1], [0, 0, 1, 1], [], []>} : vector<16x4xbf16>, vector<4x8xbf16>, vector<16x8xf32> -> vector<16x8xf32>
    %335 = vector.extract_strided_slice %319 {offsets = [48, 0], sizes = [16, 4], strides = [1, 1]} : vector<64x4xf32> to vector<16x4xf32>
    %336 = vector.extract_strided_slice %58 {offsets = [0, 24], sizes = [4, 8], strides = [1, 1]} : vector<4x32xf32> to vector<4x8xf32>
    %337 = arith.truncf %335 : vector<16x4xf32> to vector<16x4xbf16>
    %338 = arith.truncf %336 : vector<4x8xf32> to vector<4x8xbf16>
    %cst_175 = arith.constant dense<0.000000e+00> : vector<16x8xf32>
    %339 = tpu.matmul %337, %338, %cst_175 {dimension_numbers = #tpu.dot_dimension_numbers<[1], [0], [0], [1], [0, 0, 1, 1], [], []>} : vector<16x4xbf16>, vector<4x8xbf16>, vector<16x8xf32> -> vector<16x8xf32>
    %340 = tpu.concatenate %324, %329, %334, %339 in 1 : vector<16x8xf32>, vector<16x8xf32>, vector<16x8xf32>, vector<16x8xf32> -> vector<16x32xf32>
    %c0_176 = arith.constant 0 : index
    %c0_177 = arith.constant 0 : index
    %341 = vector.load %arg18[%c0_176, %c0_177] : memref<32x32xbf16, #tpu.memory_space<vmem>>, vector<32x32xbf16>
    %342 = arith.truncf %340 : vector<16x32xf32> to vector<16x32xbf16>
    %cst_178 = arith.constant dense<0.000000e+00> : vector<16x32xf32>
    %343 = tpu.matmul %342, %341, %cst_178 {dimension_numbers = #tpu.dot_dimension_numbers<[1], [0], [0], [1], [0, 0, 1, 1], [], []>} : vector<16x32xbf16>, vector<32x32xbf16>, vector<16x32xf32> -> vector<16x32xf32>
    %344 = arith.addf %242, %343 : vector<16x32xf32>
    %c0_179 = arith.constant 0 : index
    %c0_180 = arith.constant 0 : index
    %345 = vector.load %arg19[%c0_179, %c0_180] : memref<1x32xf32, #tpu.memory_space<vmem>>, vector<1x32xf32>
    %346 = vector.broadcast %345 : vector<1x32xf32> to vector<16x32xf32>
    %347 = arith.addf %344, %346 : vector<16x32xf32>
    %348 = arith.addf %347, %40 : vector<16x32xf32>
    %c1_181 = arith.constant 1 : index
    %c0_182 = arith.constant 0 : index
    %c0_183 = arith.constant 0 : index
    %349 = vector.load %arg22[%c1_181, %c0_182, %c0_183] : memref<2x32x32xbf16, #tpu.memory_space<vmem>>, vector<1x32x32xbf16>
    %350 = vector.shape_cast %349 : vector<1x32x32xbf16> to vector<32x32xbf16>
    %351 = arith.truncf %348 : vector<16x32xf32> to vector<16x32xbf16>
    %cst_184 = arith.constant dense<0.000000e+00> : vector<16x32xf32>
    %352 = tpu.matmul %351, %350, %cst_184 {dimension_numbers = #tpu.dot_dimension_numbers<[1], [0], [0], [1], [0, 0, 1, 1], [], []>} : vector<16x32xbf16>, vector<32x32xbf16>, vector<16x32xf32> -> vector<16x32xf32>
    %c1_185 = arith.constant 1 : index
    %c0_186 = arith.constant 0 : index
    %c0_187 = arith.constant 0 : index
    %353 = vector.load %arg23[%c1_185, %c0_186, %c0_187] : memref<2x1x32xf32, #tpu.memory_space<vmem>>, vector<1x1x32xf32>
    %354 = vector.shape_cast %353 : vector<1x1x32xf32> to vector<1x32xf32>
    %355 = vector.broadcast %354 : vector<1x32xf32> to vector<16x32xf32>
    %356 = arith.addf %352, %355 : vector<16x32xf32>
    %c1_188 = arith.constant 1 : index
    %c0_189 = arith.constant 0 : index
    %c0_190 = arith.constant 0 : index
    %357 = vector.load %arg24[%c1_188, %c0_189, %c0_190] : memref<2x32x32xbf16, #tpu.memory_space<vmem>>, vector<1x32x32xbf16>
    %358 = vector.shape_cast %357 : vector<1x32x32xbf16> to vector<32x32xbf16>
    %359 = arith.truncf %348 : vector<16x32xf32> to vector<16x32xbf16>
    %cst_191 = arith.constant dense<0.000000e+00> : vector<16x32xf32>
    %360 = tpu.matmul %359, %358, %cst_191 {dimension_numbers = #tpu.dot_dimension_numbers<[1], [0], [0], [1], [0, 0, 1, 1], [], []>} : vector<16x32xbf16>, vector<32x32xbf16>, vector<16x32xf32> -> vector<16x32xf32>
    %c1_192 = arith.constant 1 : index
    %c0_193 = arith.constant 0 : index
    %c0_194 = arith.constant 0 : index
    %361 = vector.load %arg25[%c1_192, %c0_193, %c0_194] : memref<2x1x32xf32, #tpu.memory_space<vmem>>, vector<1x1x32xf32>
    %362 = vector.shape_cast %361 : vector<1x1x32xf32> to vector<1x32xf32>
    %363 = vector.broadcast %362 : vector<1x32xf32> to vector<16x32xf32>
    %364 = arith.addf %360, %363 : vector<16x32xf32>
    %c1_195 = arith.constant 1 : index
    %c0_196 = arith.constant 0 : index
    %c0_197 = arith.constant 0 : index
    %365 = vector.load %arg26[%c1_195, %c0_196, %c0_197] : memref<2x32x32xbf16, #tpu.memory_space<vmem>>, vector<1x32x32xbf16>
    %366 = vector.shape_cast %365 : vector<1x32x32xbf16> to vector<32x32xbf16>
    %367 = arith.truncf %347 : vector<16x32xf32> to vector<16x32xbf16>
    %cst_198 = arith.constant dense<0.000000e+00> : vector<16x32xf32>
    %368 = tpu.matmul %367, %366, %cst_198 {dimension_numbers = #tpu.dot_dimension_numbers<[1], [0], [0], [1], [0, 0, 1, 1], [], []>} : vector<16x32xbf16>, vector<32x32xbf16>, vector<16x32xf32> -> vector<16x32xf32>
    %c1_199 = arith.constant 1 : index
    %c0_200 = arith.constant 0 : index
    %c0_201 = arith.constant 0 : index
    %369 = vector.load %arg27[%c1_199, %c0_200, %c0_201] : memref<2x1x32xf32, #tpu.memory_space<vmem>>, vector<1x1x32xf32>
    %370 = vector.shape_cast %369 : vector<1x1x32xf32> to vector<1x32xf32>
    %371 = vector.broadcast %370 : vector<1x32xf32> to vector<16x32xf32>
    %372 = arith.addf %368, %371 : vector<16x32xf32>
    %373 = vector.extract_strided_slice %356 {offsets = [0, 0], sizes = [16, 8], strides = [1, 1]} : vector<16x32xf32> to vector<16x8xf32>
    %374 = vector.extract_strided_slice %364 {offsets = [0, 0], sizes = [16, 8], strides = [1, 1]} : vector<16x32xf32> to vector<16x8xf32>
    %375 = arith.truncf %373 : vector<16x8xf32> to vector<16x8xbf16>
    %376 = arith.truncf %374 : vector<16x8xf32> to vector<16x8xbf16>
    %cst_202 = arith.constant dense<0.000000e+00> : vector<16x16xf32>
    %377 = tpu.matmul %375, %376, %cst_202 {dimension_numbers = #tpu.dot_dimension_numbers<[1], [1], [0], [0], [0, 0, 1, 0], [], []>} : vector<16x8xbf16>, vector<16x8xbf16>, vector<16x16xf32> -> vector<16x16xf32>
    %378 = vector.extract_strided_slice %356 {offsets = [0, 8], sizes = [16, 8], strides = [1, 1]} : vector<16x32xf32> to vector<16x8xf32>
    %379 = vector.extract_strided_slice %364 {offsets = [0, 8], sizes = [16, 8], strides = [1, 1]} : vector<16x32xf32> to vector<16x8xf32>
    %380 = arith.truncf %378 : vector<16x8xf32> to vector<16x8xbf16>
    %381 = arith.truncf %379 : vector<16x8xf32> to vector<16x8xbf16>
    %cst_203 = arith.constant dense<0.000000e+00> : vector<16x16xf32>
    %382 = tpu.matmul %380, %381, %cst_203 {dimension_numbers = #tpu.dot_dimension_numbers<[1], [1], [0], [0], [0, 0, 1, 0], [], []>} : vector<16x8xbf16>, vector<16x8xbf16>, vector<16x16xf32> -> vector<16x16xf32>
    %383 = vector.extract_strided_slice %356 {offsets = [0, 16], sizes = [16, 8], strides = [1, 1]} : vector<16x32xf32> to vector<16x8xf32>
    %384 = vector.extract_strided_slice %364 {offsets = [0, 16], sizes = [16, 8], strides = [1, 1]} : vector<16x32xf32> to vector<16x8xf32>
    %385 = arith.truncf %383 : vector<16x8xf32> to vector<16x8xbf16>
    %386 = arith.truncf %384 : vector<16x8xf32> to vector<16x8xbf16>
    %cst_204 = arith.constant dense<0.000000e+00> : vector<16x16xf32>
    %387 = tpu.matmul %385, %386, %cst_204 {dimension_numbers = #tpu.dot_dimension_numbers<[1], [1], [0], [0], [0, 0, 1, 0], [], []>} : vector<16x8xbf16>, vector<16x8xbf16>, vector<16x16xf32> -> vector<16x16xf32>
    %388 = vector.extract_strided_slice %356 {offsets = [0, 24], sizes = [16, 8], strides = [1, 1]} : vector<16x32xf32> to vector<16x8xf32>
    %389 = vector.extract_strided_slice %364 {offsets = [0, 24], sizes = [16, 8], strides = [1, 1]} : vector<16x32xf32> to vector<16x8xf32>
    %390 = arith.truncf %388 : vector<16x8xf32> to vector<16x8xbf16>
    %391 = arith.truncf %389 : vector<16x8xf32> to vector<16x8xbf16>
    %cst_205 = arith.constant dense<0.000000e+00> : vector<16x16xf32>
    %392 = tpu.matmul %390, %391, %cst_205 {dimension_numbers = #tpu.dot_dimension_numbers<[1], [1], [0], [0], [0, 0, 1, 0], [], []>} : vector<16x8xbf16>, vector<16x8xbf16>, vector<16x16xf32> -> vector<16x16xf32>
    %393 = tpu.concatenate %377, %382, %387, %392 in 0 : vector<16x16xf32>, vector<16x16xf32>, vector<16x16xf32>, vector<16x16xf32> -> vector<64x16xf32>
    %cst_206 = arith.constant 0.353553385 : f32
    %394 = vector.broadcast %cst_206 : f32 to vector<64x16xf32>
    %395 = arith.mulf %393, %394 : vector<64x16xf32>
    %cst_207 = arith.constant dense<0xFF800000> : vector<64xf32>
    %396 = vector.multi_reduction <maximumf>, %395, %cst_207 [1] : vector<64x16xf32> to vector<64xf32>
    %397 = vector.shape_cast %396 : vector<64xf32> to vector<64x1xf32>
    %398 = vector.broadcast %397 : vector<64x1xf32> to vector<64x16xf32>
    %399 = arith.subf %395, %398 : vector<64x16xf32>
    %400 = math.exp %399 : vector<64x16xf32>
    %cst_208 = arith.constant dense<0.000000e+00> : vector<64xf32>
    %401 = vector.multi_reduction <add>, %400, %cst_208 [1] : vector<64x16xf32> to vector<64xf32>
    %402 = vector.shape_cast %401 : vector<64xf32> to vector<64x1xf32>
    %403 = tpu.reciprocal %402 {approx = true} : vector<64x1xf32> -> vector<64x1xf32>
    %404 = vector.broadcast %403 : vector<64x1xf32> to vector<64x16xf32>
    %405 = arith.mulf %400, %404 : vector<64x16xf32>
    %406 = vector.extract_strided_slice %405 {offsets = [0, 0], sizes = [16, 16], strides = [1, 1]} : vector<64x16xf32> to vector<16x16xf32>
    %407 = vector.extract_strided_slice %372 {offsets = [0, 0], sizes = [16, 8], strides = [1, 1]} : vector<16x32xf32> to vector<16x8xf32>
    %408 = arith.truncf %406 : vector<16x16xf32> to vector<16x16xbf16>
    %409 = arith.truncf %407 : vector<16x8xf32> to vector<16x8xbf16>
    %cst_209 = arith.constant dense<0.000000e+00> : vector<16x8xf32>
    %410 = tpu.matmul %408, %409, %cst_209 {dimension_numbers = #tpu.dot_dimension_numbers<[1], [0], [0], [1], [0, 0, 1, 1], [], []>} : vector<16x16xbf16>, vector<16x8xbf16>, vector<16x8xf32> -> vector<16x8xf32>
    %411 = vector.extract_strided_slice %405 {offsets = [16, 0], sizes = [16, 16], strides = [1, 1]} : vector<64x16xf32> to vector<16x16xf32>
    %412 = vector.extract_strided_slice %372 {offsets = [0, 8], sizes = [16, 8], strides = [1, 1]} : vector<16x32xf32> to vector<16x8xf32>
    %413 = arith.truncf %411 : vector<16x16xf32> to vector<16x16xbf16>
    %414 = arith.truncf %412 : vector<16x8xf32> to vector<16x8xbf16>
    %cst_210 = arith.constant dense<0.000000e+00> : vector<16x8xf32>
    %415 = tpu.matmul %413, %414, %cst_210 {dimension_numbers = #tpu.dot_dimension_numbers<[1], [0], [0], [1], [0, 0, 1, 1], [], []>} : vector<16x16xbf16>, vector<16x8xbf16>, vector<16x8xf32> -> vector<16x8xf32>
    %416 = vector.extract_strided_slice %405 {offsets = [32, 0], sizes = [16, 16], strides = [1, 1]} : vector<64x16xf32> to vector<16x16xf32>
    %417 = vector.extract_strided_slice %372 {offsets = [0, 16], sizes = [16, 8], strides = [1, 1]} : vector<16x32xf32> to vector<16x8xf32>
    %418 = arith.truncf %416 : vector<16x16xf32> to vector<16x16xbf16>
    %419 = arith.truncf %417 : vector<16x8xf32> to vector<16x8xbf16>
    %cst_211 = arith.constant dense<0.000000e+00> : vector<16x8xf32>
    %420 = tpu.matmul %418, %419, %cst_211 {dimension_numbers = #tpu.dot_dimension_numbers<[1], [0], [0], [1], [0, 0, 1, 1], [], []>} : vector<16x16xbf16>, vector<16x8xbf16>, vector<16x8xf32> -> vector<16x8xf32>
    %421 = vector.extract_strided_slice %405 {offsets = [48, 0], sizes = [16, 16], strides = [1, 1]} : vector<64x16xf32> to vector<16x16xf32>
    %422 = vector.extract_strided_slice %372 {offsets = [0, 24], sizes = [16, 8], strides = [1, 1]} : vector<16x32xf32> to vector<16x8xf32>
    %423 = arith.truncf %421 : vector<16x16xf32> to vector<16x16xbf16>
    %424 = arith.truncf %422 : vector<16x8xf32> to vector<16x8xbf16>
    %cst_212 = arith.constant dense<0.000000e+00> : vector<16x8xf32>
    %425 = tpu.matmul %423, %424, %cst_212 {dimension_numbers = #tpu.dot_dimension_numbers<[1], [0], [0], [1], [0, 0, 1, 1], [], []>} : vector<16x16xbf16>, vector<16x8xbf16>, vector<16x8xf32> -> vector<16x8xf32>
    %426 = tpu.concatenate %410, %415, %420, %425 in 1 : vector<16x8xf32>, vector<16x8xf32>, vector<16x8xf32>, vector<16x8xf32> -> vector<16x32xf32>
    %c1_213 = arith.constant 1 : index
    %c0_214 = arith.constant 0 : index
    %c0_215 = arith.constant 0 : index
    %427 = vector.load %arg28[%c1_213, %c0_214, %c0_215] : memref<2x32x32xbf16, #tpu.memory_space<vmem>>, vector<1x32x32xbf16>
    %428 = vector.shape_cast %427 : vector<1x32x32xbf16> to vector<32x32xbf16>
    %429 = arith.truncf %426 : vector<16x32xf32> to vector<16x32xbf16>
    %cst_216 = arith.constant dense<0.000000e+00> : vector<16x32xf32>
    %430 = tpu.matmul %429, %428, %cst_216 {dimension_numbers = #tpu.dot_dimension_numbers<[1], [0], [0], [1], [0, 0, 1, 1], [], []>} : vector<16x32xbf16>, vector<32x32xbf16>, vector<16x32xf32> -> vector<16x32xf32>
    %431 = arith.addf %347, %430 : vector<16x32xf32>
    %c1_217 = arith.constant 1 : index
    %c0_218 = arith.constant 0 : index
    %c0_219 = arith.constant 0 : index
    %432 = vector.load %arg29[%c1_217, %c0_218, %c0_219] : memref<2x1x32xf32, #tpu.memory_space<vmem>>, vector<1x1x32xf32>
    %433 = vector.shape_cast %432 : vector<1x1x32xf32> to vector<1x32xf32>
    %434 = vector.broadcast %433 : vector<1x32xf32> to vector<16x32xf32>
    %435 = arith.addf %431, %434 : vector<16x32xf32>
    %c1_220 = arith.constant 1 : index
    %c0_221 = arith.constant 0 : index
    %c0_222 = arith.constant 0 : index
    %436 = vector.load %arg30[%c1_220, %c0_221, %c0_222] : memref<2x32x128xbf16, #tpu.memory_space<vmem>>, vector<1x32x128xbf16>
    %437 = vector.shape_cast %436 : vector<1x32x128xbf16> to vector<32x128xbf16>
    %438 = arith.truncf %435 : vector<16x32xf32> to vector<16x32xbf16>
    %cst_223 = arith.constant dense<0.000000e+00> : vector<16x128xf32>
    %439 = tpu.matmul %438, %437, %cst_223 {dimension_numbers = #tpu.dot_dimension_numbers<[1], [0], [0], [1], [0, 0, 1, 1], [], []>} : vector<16x32xbf16>, vector<32x128xbf16>, vector<16x128xf32> -> vector<16x128xf32>
    %c1_224 = arith.constant 1 : index
    %c0_225 = arith.constant 0 : index
    %c0_226 = arith.constant 0 : index
    %440 = vector.load %arg31[%c1_224, %c0_225, %c0_226] : memref<2x1x128xf32, #tpu.memory_space<vmem>>, vector<1x1x128xf32>
    %441 = vector.shape_cast %440 : vector<1x1x128xf32> to vector<1x128xf32>
    %442 = vector.broadcast %441 : vector<1x128xf32> to vector<16x128xf32>
    %443 = arith.addf %439, %442 : vector<16x128xf32>
    %cst_227 = arith.constant 0.000000e+00 : f32
    %444 = vector.broadcast %cst_227 : f32 to vector<16x128xf32>
    %445 = arith.maximumf %443, %444 : vector<16x128xf32>
    %c1_228 = arith.constant 1 : index
    %c0_229 = arith.constant 0 : index
    %c0_230 = arith.constant 0 : index
    %446 = vector.load %arg32[%c1_228, %c0_229, %c0_230] : memref<2x128x32xbf16, #tpu.memory_space<vmem>>, vector<1x128x32xbf16>
    %447 = vector.shape_cast %446 : vector<1x128x32xbf16> to vector<128x32xbf16>
    %448 = arith.truncf %445 : vector<16x128xf32> to vector<16x128xbf16>
    %cst_231 = arith.constant dense<0.000000e+00> : vector<16x32xf32>
    %449 = tpu.matmul %448, %447, %cst_231 {dimension_numbers = #tpu.dot_dimension_numbers<[1], [0], [0], [1], [0, 0, 1, 1], [], []>} : vector<16x128xbf16>, vector<128x32xbf16>, vector<16x32xf32> -> vector<16x32xf32>
    %450 = arith.addf %435, %449 : vector<16x32xf32>
    %c1_232 = arith.constant 1 : index
    %c0_233 = arith.constant 0 : index
    %c0_234 = arith.constant 0 : index
    %451 = vector.load %arg33[%c1_232, %c0_233, %c0_234] : memref<2x1x32xf32, #tpu.memory_space<vmem>>, vector<1x1x32xf32>
    %452 = vector.shape_cast %451 : vector<1x1x32xf32> to vector<1x32xf32>
    %453 = vector.broadcast %452 : vector<1x32xf32> to vector<16x32xf32>
    %454 = arith.addf %450, %453 : vector<16x32xf32>
    %455 = arith.addf %454, %40 : vector<16x32xf32>
    %c1_235 = arith.constant 1 : index
    %c0_236 = arith.constant 0 : index
    %c0_237 = arith.constant 0 : index
    %456 = vector.load %arg34[%c1_235, %c0_236, %c0_237] : memref<2x32x32xbf16, #tpu.memory_space<vmem>>, vector<1x32x32xbf16>
    %457 = vector.shape_cast %456 : vector<1x32x32xbf16> to vector<32x32xbf16>
    %458 = arith.truncf %455 : vector<16x32xf32> to vector<16x32xbf16>
    %cst_238 = arith.constant dense<0.000000e+00> : vector<16x32xf32>
    %459 = tpu.matmul %458, %457, %cst_238 {dimension_numbers = #tpu.dot_dimension_numbers<[1], [0], [0], [1], [0, 0, 1, 1], [], []>} : vector<16x32xbf16>, vector<32x32xbf16>, vector<16x32xf32> -> vector<16x32xf32>
    %c1_239 = arith.constant 1 : index
    %c0_240 = arith.constant 0 : index
    %c0_241 = arith.constant 0 : index
    %460 = vector.load %arg35[%c1_239, %c0_240, %c0_241] : memref<2x1x32xf32, #tpu.memory_space<vmem>>, vector<1x1x32xf32>
    %461 = vector.shape_cast %460 : vector<1x1x32xf32> to vector<1x32xf32>
    %462 = vector.broadcast %461 : vector<1x32xf32> to vector<16x32xf32>
    %463 = arith.addf %459, %462 : vector<16x32xf32>
    %cst_242 = arith.constant 0.000000e+00 : f32
    %464 = vector.broadcast %cst_242 : f32 to vector<16x32xf32>
    %465 = arith.maximumf %463, %464 : vector<16x32xf32>
    %c1_243 = arith.constant 1 : index
    %c0_244 = arith.constant 0 : index
    %c0_245 = arith.constant 0 : index
    %466 = vector.load %arg36[%c1_243, %c0_244, %c0_245] : memref<2x32x8xbf16, #tpu.memory_space<vmem>>, vector<1x32x8xbf16>
    %467 = vector.shape_cast %466 : vector<1x32x8xbf16> to vector<32x8xbf16>
    %468 = arith.truncf %465 : vector<16x32xf32> to vector<16x32xbf16>
    %cst_246 = arith.constant dense<0.000000e+00> : vector<16x8xf32>
    %469 = tpu.matmul %468, %467, %cst_246 {dimension_numbers = #tpu.dot_dimension_numbers<[1], [0], [0], [1], [0, 0, 1, 1], [], []>} : vector<16x32xbf16>, vector<32x8xbf16>, vector<16x8xf32> -> vector<16x8xf32>
    %470 = arith.addf %262, %469 : vector<16x8xf32>
    %c1_247 = arith.constant 1 : index
    %c0_248 = arith.constant 0 : index
    %c0_249 = arith.constant 0 : index
    %471 = vector.load %arg37[%c1_247, %c0_248, %c0_249] : memref<2x1x8xf32, #tpu.memory_space<vmem>>, vector<1x1x8xf32>
    %472 = vector.shape_cast %471 : vector<1x1x8xf32> to vector<1x8xf32>
    %473 = vector.broadcast %472 : vector<1x8xf32> to vector<16x8xf32>
    %474 = arith.addf %470, %473 : vector<16x8xf32>
    %c1_250 = arith.constant 1 : index
    %c0_251 = arith.constant 0 : index
    %c0_252 = arith.constant 0 : index
    %475 = vector.load %arg38[%c1_250, %c0_251, %c0_252] : memref<2x32x2xbf16, #tpu.memory_space<vmem>>, vector<1x32x2xbf16>
    %476 = vector.shape_cast %475 : vector<1x32x2xbf16> to vector<32x2xbf16>
    %477 = arith.truncf %465 : vector<16x32xf32> to vector<16x32xbf16>
    %cst_253 = arith.constant dense<0.000000e+00> : vector<16x2xf32>
    %478 = tpu.matmul %477, %476, %cst_253 {dimension_numbers = #tpu.dot_dimension_numbers<[1], [0], [0], [1], [0, 0, 1, 1], [], []>} : vector<16x32xbf16>, vector<32x2xbf16>, vector<16x2xf32> -> vector<16x2xf32>
    %c1_254 = arith.constant 1 : index
    %c0_255 = arith.constant 0 : index
    %c0_256 = arith.constant 0 : index
    %479 = vector.load %arg39[%c1_254, %c0_255, %c0_256] : memref<2x1x2xf32, #tpu.memory_space<vmem>>, vector<1x1x2xf32>
    %480 = vector.shape_cast %479 : vector<1x1x2xf32> to vector<1x2xf32>
    %481 = vector.broadcast %480 : vector<1x2xf32> to vector<16x2xf32>
    %482 = arith.addf %478, %481 : vector<16x2xf32>
    %cst_257 = arith.constant 0.000000e+00 : f32
    %483 = vector.broadcast %cst_257 : f32 to vector<16x2xf32>
    %484 = tpu.concatenate %474, %482, %279, %483 in 1 : vector<16x8xf32>, vector<16x2xf32>, vector<16x4xf32>, vector<16x2xf32> -> vector<16x16xf32>
    %485 = tpu.concatenate %272, %484 in 1 : vector<16x16xf32>, vector<16x16xf32> -> vector<16x32xf32>
    %c0_258 = arith.constant 0 : index
    %c0_259 = arith.constant 0 : index
    %c0_260 = arith.constant 0 : index
    %486 = vector.load %arg40[%c0_258, %c0_259, %c0_260] : memref<1x16x32xf32, #tpu.memory_space<vmem>>, vector<1x16x32xf32>
    %487 = vector.shape_cast %486 : vector<1x16x32xf32> to vector<16x32xf32>
    %488 = vector.shape_cast %485 : vector<16x32xf32> to vector<1x16x32xf32>
    tpu.vector_store %arg40[%c0_258, %c0_259, %c0_260], %488 {strides = array<i32>} : memref<1x16x32xf32, #tpu.memory_space<vmem>>, vector<1x16x32xf32>,
    return
  }
  func.func @transform_0(%arg0: i32) -> (i32, i32, i32, i32) {
    %c0_i32 = arith.constant 0 : i32
    %c0_i32_0 = arith.constant 0 : i32
    %c0_i32_1 = arith.constant 0 : i32
    %c0_i32_2 = arith.constant 0 : i32
    return %arg0, %c0_i32, %c0_i32_0, %c0_i32_1 : i32, i32, i32, i32
  }
  func.func @transform_1(%arg0: i32) -> (i32, i32) {
    %c0_i32 = arith.constant 0 : i32
    %c0_i32_0 = arith.constant 0 : i32
    %c0_i32_1 = arith.constant 0 : i32
    return %c0_i32, %c0_i32_0 : i32, i32
  }
  func.func @transform_2(%arg0: i32) -> (i32, i32) {
    %c0_i32 = arith.constant 0 : i32
    %c0_i32_0 = arith.constant 0 : i32
    %c0_i32_1 = arith.constant 0 : i32
    return %c0_i32, %c0_i32_0 : i32, i32
  }
  func.func @transform_3(%arg0: i32) -> (i32, i32) {
    %c0_i32 = arith.constant 0 : i32
    %c0_i32_0 = arith.constant 0 : i32
    %c0_i32_1 = arith.constant 0 : i32
    return %c0_i32, %c0_i32_0 : i32, i32
  }
  func.func @transform_4(%arg0: i32) -> (i32, i32) {
    %c0_i32 = arith.constant 0 : i32
    %c0_i32_0 = arith.constant 0 : i32
    %c0_i32_1 = arith.constant 0 : i32
    return %c0_i32, %c0_i32_0 : i32, i32
  }
  func.func @transform_5(%arg0: i32) -> (i32, i32) {
    %c0_i32 = arith.constant 0 : i32
    %c0_i32_0 = arith.constant 0 : i32
    %c0_i32_1 = arith.constant 0 : i32
    return %c0_i32, %c0_i32_0 : i32, i32
  }
  func.func @transform_6(%arg0: i32) -> (i32, i32) {
    %c0_i32 = arith.constant 0 : i32
    %c0_i32_0 = arith.constant 0 : i32
    %c0_i32_1 = arith.constant 0 : i32
    return %c0_i32, %c0_i32_0 : i32, i32
  }
  func.func @transform_7(%arg0: i32) -> (i32, i32) {
    %c0_i32 = arith.constant 0 : i32
    %c0_i32_0 = arith.constant 0 : i32
    %c0_i32_1 = arith.constant 0 : i32
    return %c0_i32, %c0_i32_0 : i32, i32
  }
  func.func @transform_8(%arg0: i32) -> (i32, i32) {
    %c0_i32 = arith.constant 0 : i32
    %c0_i32_0 = arith.constant 0 : i32
    %c0_i32_1 = arith.constant 0 : i32
    return %c0_i32, %c0_i32_0 : i32, i32
  }
  func.func @transform_9(%arg0: i32) -> (i32, i32) {
    %c0_i32 = arith.constant 0 : i32
    %c0_i32_0 = arith.constant 0 : i32
    %c0_i32_1 = arith.constant 0 : i32
    return %c0_i32, %c0_i32_0 : i32, i32
  }
  func.func @transform_10(%arg0: i32) -> (i32, i32) {
    %c0_i32 = arith.constant 0 : i32
    %c0_i32_0 = arith.constant 0 : i32
    %c0_i32_1 = arith.constant 0 : i32
    return %c0_i32, %c0_i32_0 : i32, i32
  }
  func.func @transform_11(%arg0: i32) -> (i32, i32) {
    %c0_i32 = arith.constant 0 : i32
    %c0_i32_0 = arith.constant 0 : i32
    %c0_i32_1 = arith.constant 0 : i32
    return %c0_i32, %c0_i32_0 : i32, i32
  }
  func.func @transform_12(%arg0: i32) -> (i32, i32) {
    %c0_i32 = arith.constant 0 : i32
    %c0_i32_0 = arith.constant 0 : i32
    %c0_i32_1 = arith.constant 0 : i32
    return %c0_i32, %c0_i32_0 : i32, i32
  }
  func.func @transform_13(%arg0: i32) -> (i32, i32) {
    %c0_i32 = arith.constant 0 : i32
    %c0_i32_0 = arith.constant 0 : i32
    %c0_i32_1 = arith.constant 0 : i32
    return %c0_i32, %c0_i32_0 : i32, i32
  }
  func.func @transform_14(%arg0: i32) -> (i32, i32) {
    %c0_i32 = arith.constant 0 : i32
    %c0_i32_0 = arith.constant 0 : i32
    %c0_i32_1 = arith.constant 0 : i32
    return %c0_i32, %c0_i32_0 : i32, i32
  }
  func.func @transform_15(%arg0: i32) -> (i32, i32) {
    %c0_i32 = arith.constant 0 : i32
    %c0_i32_0 = arith.constant 0 : i32
    %c0_i32_1 = arith.constant 0 : i32
    return %c0_i32, %c0_i32_0 : i32, i32
  }
  func.func @transform_16(%arg0: i32) -> (i32, i32) {
    %c0_i32 = arith.constant 0 : i32
    %c0_i32_0 = arith.constant 0 : i32
    %c0_i32_1 = arith.constant 0 : i32
    return %c0_i32, %c0_i32_0 : i32, i32
  }
  func.func @transform_17(%arg0: i32) -> (i32, i32) {
    %c0_i32 = arith.constant 0 : i32
    %c0_i32_0 = arith.constant 0 : i32
    %c0_i32_1 = arith.constant 0 : i32
    return %c0_i32, %c0_i32_0 : i32, i32
  }
  func.func @transform_18(%arg0: i32) -> (i32, i32) {
    %c0_i32 = arith.constant 0 : i32
    %c0_i32_0 = arith.constant 0 : i32
    %c0_i32_1 = arith.constant 0 : i32
    return %c0_i32, %c0_i32_0 : i32, i32
  }
  func.func @transform_19(%arg0: i32) -> (i32, i32) {
    %c0_i32 = arith.constant 0 : i32
    %c0_i32_0 = arith.constant 0 : i32
    %c0_i32_1 = arith.constant 0 : i32
    return %c0_i32, %c0_i32_0 : i32, i32
  }
  func.func @transform_20(%arg0: i32) -> (i32, i32) {
    %c0_i32 = arith.constant 0 : i32
    %c0_i32_0 = arith.constant 0 : i32
    %c0_i32_1 = arith.constant 0 : i32
    return %c0_i32, %c0_i32_0 : i32, i32
  }
  func.func @transform_21(%arg0: i32) -> (i32, i32, i32) {
    %c0_i32 = arith.constant 0 : i32
    %c0_i32_0 = arith.constant 0 : i32
    %c0_i32_1 = arith.constant 0 : i32
    %c0_i32_2 = arith.constant 0 : i32
    return %c0_i32, %c0_i32_0, %c0_i32_1 : i32, i32, i32
  }
  func.func @transform_22(%arg0: i32) -> (i32, i32, i32) {
    %c0_i32 = arith.constant 0 : i32
    %c0_i32_0 = arith.constant 0 : i32
    %c0_i32_1 = arith.constant 0 : i32
    %c0_i32_2 = arith.constant 0 : i32
    return %c0_i32, %c0_i32_0, %c0_i32_1 : i32, i32, i32
  }
  func.func @transform_23(%arg0: i32) -> (i32, i32, i32) {
    %c0_i32 = arith.constant 0 : i32
    %c0_i32_0 = arith.constant 0 : i32
    %c0_i32_1 = arith.constant 0 : i32
    %c0_i32_2 = arith.constant 0 : i32
    return %c0_i32, %c0_i32_0, %c0_i32_1 : i32, i32, i32
  }
  func.func @transform_24(%arg0: i32) -> (i32, i32, i32) {
    %c0_i32 = arith.constant 0 : i32
    %c0_i32_0 = arith.constant 0 : i32
    %c0_i32_1 = arith.constant 0 : i32
    %c0_i32_2 = arith.constant 0 : i32
    return %c0_i32, %c0_i32_0, %c0_i32_1 : i32, i32, i32
  }
  func.func @transform_25(%arg0: i32) -> (i32, i32, i32) {
    %c0_i32 = arith.constant 0 : i32
    %c0_i32_0 = arith.constant 0 : i32
    %c0_i32_1 = arith.constant 0 : i32
    %c0_i32_2 = arith.constant 0 : i32
    return %c0_i32, %c0_i32_0, %c0_i32_1 : i32, i32, i32
  }
  func.func @transform_26(%arg0: i32) -> (i32, i32, i32) {
    %c0_i32 = arith.constant 0 : i32
    %c0_i32_0 = arith.constant 0 : i32
    %c0_i32_1 = arith.constant 0 : i32
    %c0_i32_2 = arith.constant 0 : i32
    return %c0_i32, %c0_i32_0, %c0_i32_1 : i32, i32, i32
  }
  func.func @transform_27(%arg0: i32) -> (i32, i32, i32) {
    %c0_i32 = arith.constant 0 : i32
    %c0_i32_0 = arith.constant 0 : i32
    %c0_i32_1 = arith.constant 0 : i32
    %c0_i32_2 = arith.constant 0 : i32
    return %c0_i32, %c0_i32_0, %c0_i32_1 : i32, i32, i32
  }
  func.func @transform_28(%arg0: i32) -> (i32, i32, i32) {
    %c0_i32 = arith.constant 0 : i32
    %c0_i32_0 = arith.constant 0 : i32
    %c0_i32_1 = arith.constant 0 : i32
    %c0_i32_2 = arith.constant 0 : i32
    return %c0_i32, %c0_i32_0, %c0_i32_1 : i32, i32, i32
  }
  func.func @transform_29(%arg0: i32) -> (i32, i32, i32) {
    %c0_i32 = arith.constant 0 : i32
    %c0_i32_0 = arith.constant 0 : i32
    %c0_i32_1 = arith.constant 0 : i32
    %c0_i32_2 = arith.constant 0 : i32
    return %c0_i32, %c0_i32_0, %c0_i32_1 : i32, i32, i32
  }
  func.func @transform_30(%arg0: i32) -> (i32, i32, i32) {
    %c0_i32 = arith.constant 0 : i32
    %c0_i32_0 = arith.constant 0 : i32
    %c0_i32_1 = arith.constant 0 : i32
    %c0_i32_2 = arith.constant 0 : i32
    return %c0_i32, %c0_i32_0, %c0_i32_1 : i32, i32, i32
  }
  func.func @transform_31(%arg0: i32) -> (i32, i32, i32) {
    %c0_i32 = arith.constant 0 : i32
    %c0_i32_0 = arith.constant 0 : i32
    %c0_i32_1 = arith.constant 0 : i32
    %c0_i32_2 = arith.constant 0 : i32
    return %c0_i32, %c0_i32_0, %c0_i32_1 : i32, i32, i32
  }
  func.func @transform_32(%arg0: i32) -> (i32, i32, i32) {
    %c0_i32 = arith.constant 0 : i32
    %c0_i32_0 = arith.constant 0 : i32
    %c0_i32_1 = arith.constant 0 : i32
    %c0_i32_2 = arith.constant 0 : i32
    return %c0_i32, %c0_i32_0, %c0_i32_1 : i32, i32, i32
  }
  func.func @transform_33(%arg0: i32) -> (i32, i32, i32) {
    %c0_i32 = arith.constant 0 : i32
    %c0_i32_0 = arith.constant 0 : i32
    %c0_i32_1 = arith.constant 0 : i32
    %c0_i32_2 = arith.constant 0 : i32
    return %c0_i32, %c0_i32_0, %c0_i32_1 : i32, i32, i32
  }
  func.func @transform_34(%arg0: i32) -> (i32, i32, i32) {
    %c0_i32 = arith.constant 0 : i32
    %c0_i32_0 = arith.constant 0 : i32
    %c0_i32_1 = arith.constant 0 : i32
    %c0_i32_2 = arith.constant 0 : i32
    return %c0_i32, %c0_i32_0, %c0_i32_1 : i32, i32, i32
  }
  func.func @transform_35(%arg0: i32) -> (i32, i32, i32) {
    %c0_i32 = arith.constant 0 : i32
    %c0_i32_0 = arith.constant 0 : i32
    %c0_i32_1 = arith.constant 0 : i32
    %c0_i32_2 = arith.constant 0 : i32
    return %c0_i32, %c0_i32_0, %c0_i32_1 : i32, i32, i32
  }
  func.func @transform_36(%arg0: i32) -> (i32, i32, i32) {
    %c0_i32 = arith.constant 0 : i32
    %c0_i32_0 = arith.constant 0 : i32
    %c0_i32_1 = arith.constant 0 : i32
    %c0_i32_2 = arith.constant 0 : i32
    return %c0_i32, %c0_i32_0, %c0_i32_1 : i32, i32, i32
  }
  func.func @transform_37(%arg0: i32) -> (i32, i32, i32) {
    %c0_i32 = arith.constant 0 : i32
    %c0_i32_0 = arith.constant 0 : i32
    %c0_i32_1 = arith.constant 0 : i32
    %c0_i32_2 = arith.constant 0 : i32
    return %c0_i32, %c0_i32_0, %c0_i32_1 : i32, i32, i32
  }
  func.func @transform_38(%arg0: i32) -> (i32, i32, i32) {
    %c0_i32 = arith.constant 0 : i32
    %c0_i32_0 = arith.constant 0 : i32
    %c0_i32_1 = arith.constant 0 : i32
    %c0_i32_2 = arith.constant 0 : i32
    return %c0_i32, %c0_i32_0, %c0_i32_1 : i32, i32, i32
  }
  func.func @transform_39(%arg0: i32) -> (i32, i32, i32) {
    %c0_i32 = arith.constant 0 : i32
    %c0_i32_0 = arith.constant 0 : i32
    %c0_i32_1 = arith.constant 0 : i32
    return %arg0, %c0_i32, %c0_i32_0 : i32, i32, i32
  }
}

</mosaic_0001>

<llo_original>
// kernel: sparse4d_forward.1
$region0: #{sparse4d_forward.1}
  #allocation0 [shape = 'u32[]', space=smem, size = 0x4, offset = 0x4, fixed_abs, tag = 'smem constant byte address 0x4 - core index']
  #allocation1 [shape = 'u32[72,128]{1,0:T(1,128)}', space=vmem, size = 0x9000, scoped, tag = 'internal scratch']
  %s0 = inlined_call_operand.smem [shape: u32[40], index: -1, kind: input, shape index: {}]
  %s1 = sld [smem:[%s0]]
  %s2 = scalar_lea.smem %s0, 1
  %s3 = sld [smem:[%s2]]
  %s4 = scalar_lea.smem %s0, 2
  %s5 = sld [smem:[%s4]]
  %s6 = scalar_lea.smem %s0, 3
  %s7 = sld [smem:[%s6]]
  %s8 = scalar_lea.smem %s0, 4
  %s9 = sld [smem:[%s8]]
  %s10 = scalar_lea.smem %s0, 5
  %s11 = sld [smem:[%s10]]
  %s12 = scalar_lea.smem %s0, 6
  %s13 = sld [smem:[%s12]]
  %s14 = scalar_lea.smem %s0, 7
  %s15 = sld [smem:[%s14]]
  %s16 = scalar_lea.smem %s0, 8
  %s17 = sld [smem:[%s16]]
  %s18 = scalar_lea.smem %s0, 9
  %s19 = sld [smem:[%s18]]
  %s20 = scalar_lea.smem %s0, 10
  %s21 = sld [smem:[%s20]]
  %s22 = scalar_lea.smem %s0, 11
  %s23 = sld [smem:[%s22]]
  %s24 = scalar_lea.smem %s0, 12
  %s25 = sld [smem:[%s24]]
  %s26 = scalar_lea.smem %s0, 13
  %s27 = sld [smem:[%s26]]
  %s28 = scalar_lea.smem %s0, 14
  %s29 = sld [smem:[%s28]]
  %s30 = scalar_lea.smem %s0, 15
  %s31 = sld [smem:[%s30]]
  %s32 = scalar_lea.smem %s0, 16
  %s33 = sld [smem:[%s32]]
  %s34 = scalar_lea.smem %s0, 17
  %s35 = sld [smem:[%s34]]
  %s36 = scalar_lea.smem %s0, 18
  %s37 = sld [smem:[%s36]]
  %s38 = scalar_lea.smem %s0, 19
  %s39 = sld [smem:[%s38]]
  %s40 = scalar_lea.smem %s0, 20
  %s41 = sld [smem:[%s40]]
  %s42 = scalar_lea.smem %s0, 21
  %s43 = sld [smem:[%s42]]
  %s44 = scalar_lea.smem %s0, 22
  %s45 = sld [smem:[%s44]]
  %s46 = scalar_lea.smem %s0, 23
  %s47 = sld [smem:[%s46]]
  %s48 = scalar_lea.smem %s0, 24
  %s49 = sld [smem:[%s48]]
  %s50 = scalar_lea.smem %s0, 25
  %s51 = sld [smem:[%s50]]
  %s52 = scalar_lea.smem %s0, 26
  %s53 = sld [smem:[%s52]]
  %s54 = scalar_lea.smem %s0, 27
  %s55 = sld [smem:[%s54]]
  %s56 = scalar_lea.smem %s0, 28
  %s57 = sld [smem:[%s56]]
  %s58 = scalar_lea.smem %s0, 29
  %s59 = sld [smem:[%s58]]
  %s60 = scalar_lea.smem %s0, 30
  %s61 = sld [smem:[%s60]]
  %s62 = scalar_lea.smem %s0, 31
  %s63 = sld [smem:[%s62]]
  %s64 = scalar_lea.smem %s0, 32
  %s65 = sld [smem:[%s64]]
  %s66 = scalar_lea.smem %s0, 33
  %s67 = sld [smem:[%s66]]
  %s68 = scalar_lea.smem %s0, 34
  %s69 = sld [smem:[%s68]]
  %s70 = scalar_lea.smem %s0, 35
  %s71 = sld [smem:[%s70]]
  %s72 = scalar_lea.smem %s0, 36
  %s73 = sld [smem:[%s72]]
  %s74 = scalar_lea.smem %s0, 37
  %s75 = sld [smem:[%s74]]
  %s76 = scalar_lea.smem %s0, 38
  %s77 = sld [smem:[%s76]]
  %s78 = scalar_lea.smem %s0, 39
  %s79 = sld [smem:[%s78]]
  %s80 = sld [smem:[#allocation0]]
  $region189: #{sparse4d_forward.1} parent=0
    _
  %s82 = ssub.s32 1, %s80
  %s83 = scalar_select 0, %s82, %s80
  loop: start=0, step=1, limit=4
  $region2: #{sparse4d_forward.1} parent=0 // loop_pre_header
    _
  $region3: #{sparse4d_forward.1} parent=0 // loop_header
    %s85 = sphi 0, %s89
    %p86 = scmp.ge.s32.totalorder %s85, 4
    %s95 = sphi 0, %s97
    %s98 = sphi 0, %s95
    %s99 = sphi 0, %s98
    %s115 = sphi 0, %s99
    %s119 = sphi 0, %s119
    %s121 = sphi 0, %s119
    %s122 = sphi 0, %s121
    %s136 = sphi 0, %s122
    %s140 = sphi 0, %s140
    %s142 = sphi 0, %s140
    %s143 = sphi 0, %s142
    %s157 = sphi 0, %s143
    %s161 = sphi 0, %s161
    %s163 = sphi 0, %s161
    %s164 = sphi 0, %s163
    %s178 = sphi 0, %s164
    %s182 = sphi 0, %s182
    %s184 = sphi 0, %s182
    %s185 = sphi 0, %s184
    %s199 = sphi 0, %s185
    %s203 = sphi 0, %s203
    %s205 = sphi 0, %s203
    %s206 = sphi 0, %s205
    %s220 = sphi 0, %s206
    %s224 = sphi 0, %s224
    %s226 = sphi 0, %s224
    %s227 = sphi 0, %s226
    %s241 = sphi 0, %s227
    %s245 = sphi 0, %s245
    %s247 = sphi 0, %s245
    %s248 = sphi 0, %s247
    %s262 = sphi 0, %s248
    %s266 = sphi 0, %s266
    %s268 = sphi 0, %s266
    %s269 = sphi 0, %s268
    %s283 = sphi 0, %s269
    %s287 = sphi 0, %s287
    %s289 = sphi 0, %s287
    %s290 = sphi 0, %s289
    %s304 = sphi 0, %s290
    %s308 = sphi 0, %s308
    %s310 = sphi 0, %s308
    %s311 = sphi 0, %s310
    %s325 = sphi 0, %s311
    %s329 = sphi 0, %s329
    %s331 = sphi 0, %s329
    %s332 = sphi 0, %s331
    %s346 = sphi 0, %s332
    %s350 = sphi 0, %s350
    %s352 = sphi 0, %s350
    %s353 = sphi 0, %s352
    %s367 = sphi 0, %s353
    %s371 = sphi 0, %s371
    %s373 = sphi 0, %s371
    %s374 = sphi 0, %s373
    %s388 = sphi 0, %s374
    %s392 = sphi 0, %s392
    %s394 = sphi 0, %s392
    %s395 = sphi 0, %s394
    %s409 = sphi 0, %s395
    %s413 = sphi 0, %s413
    %s415 = sphi 0, %s413
    %s416 = sphi 0, %s415
    %s430 = sphi 0, %s416
    %s434 = sphi 0, %s434
    %s436 = sphi 0, %s434
    %s437 = sphi 0, %s436
    %s451 = sphi 0, %s437
    %s455 = sphi 0, %s455
    %s457 = sphi 0, %s455
    %s458 = sphi 0, %s457
    %s472 = sphi 0, %s458
    %s476 = sphi 0, %s476
    %s478 = sphi 0, %s476
    %s479 = sphi 0, %s478
    %s493 = sphi 0, %s479
    %s497 = sphi 0, %s497
    %s499 = sphi 0, %s497
    %s500 = sphi 0, %s499
    %s514 = sphi 0, %s500
    %s518 = sphi 0, %s518
    %s520 = sphi 0, %s518
    %s521 = sphi 0, %s520
    %s535 = sphi 0, %s521
    %s539 = sphi 0, %s539
    %s541 = sphi 0, %s539
    %s542 = sphi 0, %s541
    %s556 = sphi 0, %s542
    %s560 = sphi 0, %s560
    %s562 = sphi 0, %s560
    %s563 = sphi 0, %s562
    %s577 = sphi 0, %s563
    %s581 = sphi 0, %s581
    %s583 = sphi 0, %s581
    %s584 = sphi 0, %s583
    %s598 = sphi 0, %s584
    %s602 = sphi 0, %s602
    %s604 = sphi 0, %s602
    %s605 = sphi 0, %s604
    %s619 = sphi 0, %s605
    %s623 = sphi 0, %s623
    %s625 = sphi 0, %s623
    %s626 = sphi 0, %s625
    %s640 = sphi 0, %s626
    %s644 = sphi 0, %s644
    %s646 = sphi 0, %s644
    %s647 = sphi 0, %s646
    %s661 = sphi 0, %s647
    %s665 = sphi 0, %s665
    %s667 = sphi 0, %s665
    %s668 = sphi 0, %s667
    %s682 = sphi 0, %s668
    %s686 = sphi 0, %s686
    %s688 = sphi 0, %s686
    %s689 = sphi 0, %s688
    %s703 = sphi 0, %s689
    %s707 = sphi 0, %s707
    %s709 = sphi 0, %s707
    %s710 = sphi 0, %s709
    %s724 = sphi 0, %s710
    %s728 = sphi 0, %s728
    %s730 = sphi 0, %s728
    %s731 = sphi 0, %s730
    %s745 = sphi 0, %s731
    %s749 = sphi 0, %s749
    %s751 = sphi 0, %s749
    %s752 = sphi 0, %s751
    %s766 = sphi 0, %s752
    %s770 = sphi 0, %s770
    %s772 = sphi 0, %s770
    %s773 = sphi 0, %s772
    %s787 = sphi 0, %s773
    %s791 = sphi 0, %s791
    %s793 = sphi 0, %s791
    %s794 = sphi 0, %s793
    %s808 = sphi 0, %s794
    %s812 = sphi 0, %s812
    %s814 = sphi 0, %s812
    %s815 = sphi 0, %s814
    %s829 = sphi 0, %s815
    %s833 = sphi 0, %s833
    %s835 = sphi 0, %s833
    %s836 = sphi 0, %s835
    %s850 = sphi 0, %s836
    %s854 = sphi 0, %s854
    %s856 = sphi 0, %s854
    %s857 = sphi 0, %s856
    %s871 = sphi 0, %s857
    %s875 = sphi 0, %s875
    %s877 = sphi 0, %s875
    %s878 = sphi 0, %s877
    %s892 = sphi 0, %s878
    %s896 = sphi 0, %s896
    %s898 = sphi 0, %s896
    %s899 = sphi 0, %s898
    %s913 = sphi 0, %s899
    %s919 = sphi 0, %s921
    %s922 = sphi 0, %s919
    %s923 = sphi 0, %s922
    %s939 = sphi 0, %s923
  $region4: #{sparse4d_forward.1} parent=0 // loop_header_branch
    %88 = sbr.rel (%p86) target = $region8
  $region5: #{sparse4d_forward.1} parent=0 // loop_body
    %s90 = ssub.s32 %s85, 1
    %s91 = ssub.s32 %s85, 2
    %s92 = sadd.s32 %s85, 1
    %s93 = ssub.s32 %s85, %s92
    %p94 = scmp.eq.s32.totalorder %s93, 0
    %s96 = sadd.s32 %s95, 1
    %s97 = scalar_select %p94, %s95, %s96
    %p100 = pneg %p94
    %p101 = scmp.eq.s32.totalorder %s85, 1
    %p102 = por %p100, %p101
    %p103 = scmp.ne.s32.totalorder %s95, %s98
    %p104 = scmp.eq.s32.totalorder %s85, 0
    %p105 = por %p103, %p104
    %p106 = scmp.ne.s32.totalorder %s95, %s98
    %p107 = scmp.eq.s32.totalorder %s90, 1
    %p108 = por %p106, %p107
    %p109 = scmp.ne.s32.totalorder %s98, %s99
    %p110 = scmp.eq.s32.totalorder %s90, 0
    %p111 = por %p109, %p110
    %p112 = scmp.ne.s32.totalorder %s98, %s99
    %p113 = scmp.eq.s32.totalorder %s91, 1
    %p114 = por %p112, %p113
    %p116 = scmp.ne.s32.totalorder %s99, %s115
    %p117 = scmp.eq.s32.totalorder %s91, 0
    %p118 = por %p116, %p117
    %s120 = sadd.s32 %s119, 1
    %p123 = scmp.eq.s32.totalorder %s85, 1
    %p124 = scmp.ne.s32.totalorder %s119, %s121
    %p125 = scmp.eq.s32.totalorder %s85, 0
    %p126 = por %p124, %p125
    %p127 = scmp.ne.s32.totalorder %s119, %s121
    %p128 = scmp.eq.s32.totalorder %s90, 1
    %p129 = por %p127, %p128
    %p130 = scmp.ne.s32.totalorder %s121, %s122
    %p131 = scmp.eq.s32.totalorder %s90, 0
    %p132 = por %p130, %p131
    %p133 = scmp.ne.s32.totalorder %s121, %s122
    %p134 = scmp.eq.s32.totalorder %s91, 1
    %p135 = por %p133, %p134
    %p137 = scmp.ne.s32.totalorder %s122, %s136
    %p138 = scmp.eq.s32.totalorder %s91, 0
    %p139 = por %p137, %p138
    %s141 = sadd.s32 %s140, 1
    %p144 = scmp.eq.s32.totalorder %s85, 1
    %p145 = scmp.ne.s32.totalorder %s140, %s142
    %p146 = scmp.eq.s32.totalorder %s85, 0
    %p147 = por %p145, %p146
    %p148 = scmp.ne.s32.totalorder %s140, %s142
    %p149 = scmp.eq.s32.totalorder %s90, 1
    %p150 = por %p148, %p149
    %p151 = scmp.ne.s32.totalorder %s142, %s143
    %p152 = scmp.eq.s32.totalorder %s90, 0
    %p153 = por %p151, %p152
    %p154 = scmp.ne.s32.totalorder %s142, %s143
    %p155 = scmp.eq.s32.totalorder %s91, 1
    %p156 = por %p154, %p155
    %p158 = scmp.ne.s32.totalorder %s143, %s157
    %p159 = scmp.eq.s32.totalorder %s91, 0
    %p160 = por %p158, %p159
    %s162 = sadd.s32 %s161, 1
    %p165 = scmp.eq.s32.totalorder %s85, 1
    %p166 = scmp.ne.s32.totalorder %s161, %s163
    %p167 = scmp.eq.s32.totalorder %s85, 0
    %p168 = por %p166, %p167
    %p169 = scmp.ne.s32.totalorder %s161, %s163
    %p170 = scmp.eq.s32.totalorder %s90, 1
    %p171 = por %p169, %p170
    %p172 = scmp.ne.s32.totalorder %s163, %s164
    %p173 = scmp.eq.s32.totalorder %s90, 0
    %p174 = por %p172, %p173
    %p175 = scmp.ne.s32.totalorder %s163, %s164
    %p176 = scmp.eq.s32.totalorder %s91, 1
    %p177 = por %p175, %p176
    %p179 = scmp.ne.s32.totalorder %s164, %s178
    %p180 = scmp.eq.s32.totalorder %s91, 0
    %p181 = por %p179, %p180
    %s183 = sadd.s32 %s182, 1
    %p186 = scmp.eq.s32.totalorder %s85, 1
    %p187 = scmp.ne.s32.totalorder %s182, %s184
    %p188 = scmp.eq.s32.totalorder %s85, 0
    %p189 = por %p187, %p188
    %p190 = scmp.ne.s32.totalorder %s182, %s184
    %p191 = scmp.eq.s32.totalorder %s90, 1
    %p192 = por %p190, %p191
    %p193 = scmp.ne.s32.totalorder %s184, %s185
    %p194 = scmp.eq.s32.totalorder %s90, 0
    %p195 = por %p193, %p194
    %p196 = scmp.ne.s32.totalorder %s184, %s185
    %p197 = scmp.eq.s32.totalorder %s91, 1
    %p198 = por %p196, %p197
    %p200 = scmp.ne.s32.totalorder %s185, %s199
    %p201 = scmp.eq.s32.totalorder %s91, 0
    %p202 = por %p200, %p201
    %s204 = sadd.s32 %s203, 1
    %p207 = scmp.eq.s32.totalorder %s85, 1
    %p208 = scmp.ne.s32.totalorder %s203, %s205
    %p209 = scmp.eq.s32.totalorder %s85, 0
    %p210 = por %p208, %p209
    %p211 = scmp.ne.s32.totalorder %s203, %s205
    %p212 = scmp.eq.s32.totalorder %s90, 1
    %p213 = por %p211, %p212
    %p214 = scmp.ne.s32.totalorder %s205, %s206
    %p215 = scmp.eq.s32.totalorder %s90, 0
    %p216 = por %p214, %p215
    %p217 = scmp.ne.s32.totalorder %s205, %s206
    %p218 = scmp.eq.s32.totalorder %s91, 1
    %p219 = por %p217, %p218
    %p221 = scmp.ne.s32.totalorder %s206, %s220
    %p222 = scmp.eq.s32.totalorder %s91, 0
    %p223 = por %p221, %p222
    %s225 = sadd.s32 %s224, 1
    %p228 = scmp.eq.s32.totalorder %s85, 1
    %p229 = scmp.ne.s32.totalorder %s224, %s226
    %p230 = scmp.eq.s32.totalorder %s85, 0
    %p231 = por %p229, %p230
    %p232 = scmp.ne.s32.totalorder %s224, %s226
    %p233 = scmp.eq.s32.totalorder %s90, 1
    %p234 = por %p232, %p233
    %p235 = scmp.ne.s32.totalorder %s226, %s227
    %p236 = scmp.eq.s32.totalorder %s90, 0
    %p237 = por %p235, %p236
    %p238 = scmp.ne.s32.totalorder %s226, %s227
    %p239 = scmp.eq.s32.totalorder %s91, 1
    %p240 = por %p238, %p239
    %p242 = scmp.ne.s32.totalorder %s227, %s241
    %p243 = scmp.eq.s32.totalorder %s91, 0
    %p244 = por %p242, %p243
    %s246 = sadd.s32 %s245, 1
    %p249 = scmp.eq.s32.totalorder %s85, 1
    %p250 = scmp.ne.s32.totalorder %s245, %s247
    %p251 = scmp.eq.s32.totalorder %s85, 0
    %p252 = por %p250, %p251
    %p253 = scmp.ne.s32.totalorder %s245, %s247
    %p254 = scmp.eq.s32.totalorder %s90, 1
    %p255 = por %p253, %p254
    %p256 = scmp.ne.s32.totalorder %s247, %s248
    %p257 = scmp.eq.s32.totalorder %s90, 0
    %p258 = por %p256, %p257
    %p259 = scmp.ne.s32.totalorder %s247, %s248
    %p260 = scmp.eq.s32.totalorder %s91, 1
    %p261 = por %p259, %p260
    %p263 = scmp.ne.s32.totalorder %s248, %s262
    %p264 = scmp.eq.s32.totalorder %s91, 0
    %p265 = por %p263, %p264
    %s267 = sadd.s32 %s266, 1
    %p270 = scmp.eq.s32.totalorder %s85, 1
    %p271 = scmp.ne.s32.totalorder %s266, %s268
    %p272 = scmp.eq.s32.totalorder %s85, 0
    %p273 = por %p271, %p272
    %p274 = scmp.ne.s32.totalorder %s266, %s268
    %p275 = scmp.eq.s32.totalorder %s90, 1
    %p276 = por %p274, %p275
    %p277 = scmp.ne.s32.totalorder %s268, %s269
    %p278 = scmp.eq.s32.totalorder %s90, 0
    %p279 = por %p277, %p278
    %p280 = scmp.ne.s32.totalorder %s268, %s269
    %p281 = scmp.eq.s32.totalorder %s91, 1
    %p282 = por %p280, %p281
    %p284 = scmp.ne.s32.totalorder %s269, %s283
    %p285 = scmp.eq.s32.totalorder %s91, 0
    %p286 = por %p284, %p285
    %s288 = sadd.s32 %s287, 1
    %p291 = scmp.eq.s32.totalorder %s85, 1
    %p292 = scmp.ne.s32.totalorder %s287, %s289
    %p293 = scmp.eq.s32.totalorder %s85, 0
    %p294 = por %p292, %p293
    %p295 = scmp.ne.s32.totalorder %s287, %s289
    %p296 = scmp.eq.s32.totalorder %s90, 1
    %p297 = por %p295, %p296
    %p298 = scmp.ne.s32.totalorder %s289, %s290
    %p299 = scmp.eq.s32.totalorder %s90, 0
    %p300 = por %p298, %p299
    %p301 = scmp.ne.s32.totalorder %s289, %s290
    %p302 = scmp.eq.s32.totalorder %s91, 1
    %p303 = por %p301, %p302
    %p305 = scmp.ne.s32.totalorder %s290, %s304
    %p306 = scmp.eq.s32.totalorder %s91, 0
    %p307 = por %p305, %p306
    %s309 = sadd.s32 %s308, 1
    %p312 = scmp.eq.s32.totalorder %s85, 1
    %p313 = scmp.ne.s32.totalorder %s308, %s310
    %p314 = scmp.eq.s32.totalorder %s85, 0
    %p315 = por %p313, %p314
    %p316 = scmp.ne.s32.totalorder %s308, %s310
    %p317 = scmp.eq.s32.totalorder %s90, 1
    %p318 = por %p316, %p317
    %p319 = scmp.ne.s32.totalorder %s310, %s311
    %p320 = scmp.eq.s32.totalorder %s90, 0
    %p321 = por %p319, %p320
    %p322 = scmp.ne.s32.totalorder %s310, %s311
    %p323 = scmp.eq.s32.totalorder %s91, 1
    %p324 = por %p322, %p323
    %p326 = scmp.ne.s32.totalorder %s311, %s325
    %p327 = scmp.eq.s32.totalorder %s91, 0
    %p328 = por %p326, %p327
    %s330 = sadd.s32 %s329, 1
    %p333 = scmp.eq.s32.totalorder %s85, 1
    %p334 = scmp.ne.s32.totalorder %s329, %s331
    %p335 = scmp.eq.s32.totalorder %s85, 0
    %p336 = por %p334, %p335
    %p337 = scmp.ne.s32.totalorder %s329, %s331
    %p338 = scmp.eq.s32.totalorder %s90, 1
    %p339 = por %p337, %p338
    %p340 = scmp.ne.s32.totalorder %s331, %s332
    %p341 = scmp.eq.s32.totalorder %s90, 0
    %p342 = por %p340, %p341
    %p343 = scmp.ne.s32.totalorder %s331, %s332
    %p344 = scmp.eq.s32.totalorder %s91, 1
    %p345 = por %p343, %p344
    %p347 = scmp.ne.s32.totalorder %s332, %s346
    %p348 = scmp.eq.s32.totalorder %s91, 0
    %p349 = por %p347, %p348
    %s351 = sadd.s32 %s350, 1
    %p354 = scmp.eq.s32.totalorder %s85, 1
    %p355 = scmp.ne.s32.totalorder %s350, %s352
    %p356 = scmp.eq.s32.totalorder %s85, 0
    %p357 = por %p355, %p356
    %p358 = scmp.ne.s32.totalorder %s350, %s352
    %p359 = scmp.eq.s32.totalorder %s90, 1
    %p360 = por %p358, %p359
    %p361 = scmp.ne.s32.totalorder %s352, %s353
    %p362 = scmp.eq.s32.totalorder %s90, 0
    %p363 = por %p361, %p362
    %p364 = scmp.ne.s32.totalorder %s352, %s353
    %p365 = scmp.eq.s32.totalorder %s91, 1
    %p366 = por %p364, %p365
    %p368 = scmp.ne.s32.totalorder %s353, %s367
    %p369 = scmp.eq.s32.totalorder %s91, 0
    %p370 = por %p368, %p369
    %s372 = sadd.s32 %s371, 1
    %p375 = scmp.eq.s32.totalorder %s85, 1
    %p376 = scmp.ne.s32.totalorder %s371, %s373
    %p377 = scmp.eq.s32.totalorder %s85, 0
    %p378 = por %p376, %p377
    %p379 = scmp.ne.s32.totalorder %s371, %s373
    %p380 = scmp.eq.s32.totalorder %s90, 1
    %p381 = por %p379, %p380
    %p382 = scmp.ne.s32.totalorder %s373, %s374
    %p383 = scmp.eq.s32.totalorder %s90, 0
    %p384 = por %p382, %p383
    %p385 = scmp.ne.s32.totalorder %s373, %s374
    %p386 = scmp.eq.s32.totalorder %s91, 1
    %p387 = por %p385, %p386
    %p389 = scmp.ne.s32.totalorder %s374, %s388
    %p390 = scmp.eq.s32.totalorder %s91, 0
    %p391 = por %p389, %p390
    %s393 = sadd.s32 %s392, 1
    %p396 = scmp.eq.s32.totalorder %s85, 1
    %p397 = scmp.ne.s32.totalorder %s392, %s394
    %p398 = scmp.eq.s32.totalorder %s85, 0
    %p399 = por %p397, %p398
    %p400 = scmp.ne.s32.totalorder %s392, %s394
    %p401 = scmp.eq.s32.totalorder %s90, 1
    %p402 = por %p400, %p401
    %p403 = scmp.ne.s32.totalorder %s394, %s395
    %p404 = scmp.eq.s32.totalorder %s90, 0
    %p405 = por %p403, %p404
    %p406 = scmp.ne.s32.totalorder %s394, %s395
    %p407 = scmp.eq.s32.totalorder %s91, 1
    %p408 = por %p406, %p407
    %p410 = scmp.ne.s32.totalorder %s395, %s409
    %p411 = scmp.eq.s32.totalorder %s91, 0
    %p412 = por %p410, %p411
    %s414 = sadd.s32 %s413, 1
    %p417 = scmp.eq.s32.totalorder %s85, 1
    %p418 = scmp.ne.s32.totalorder %s413, %s415
    %p419 = scmp.eq.s32.totalorder %s85, 0
    %p420 = por %p418, %p419
    %p421 = scmp.ne.s32.totalorder %s413, %s415
    %p422 = scmp.eq.s32.totalorder %s90, 1
    %p423 = por %p421, %p422
    %p424 = scmp.ne.s32.totalorder %s415, %s416
    %p425 = scmp.eq.s32.totalorder %s90, 0
    %p426 = por %p424, %p425
    %p427 = scmp.ne.s32.totalorder %s415, %s416
    %p428 = scmp.eq.s32.totalorder %s91, 1
    %p429 = por %p427, %p428
    %p431 = scmp.ne.s32.totalorder %s416, %s430
    %p432 = scmp.eq.s32.totalorder %s91, 0
    %p433 = por %p431, %p432
    %s435 = sadd.s32 %s434, 1
    %p438 = scmp.eq.s32.totalorder %s85, 1
    %p439 = scmp.ne.s32.totalorder %s434, %s436
    %p440 = scmp.eq.s32.totalorder %s85, 0
    %p441 = por %p439, %p440
    %p442 = scmp.ne.s32.totalorder %s434, %s436
    %p443 = scmp.eq.s32.totalorder %s90, 1
    %p444 = por %p442, %p443
    %p445 = scmp.ne.s32.totalorder %s436, %s437
    %p446 = scmp.eq.s32.totalorder %s90, 0
    %p447 = por %p445, %p446
    %p448 = scmp.ne.s32.totalorder %s436, %s437
    %p449 = scmp.eq.s32.totalorder %s91, 1
    %p450 = por %p448, %p449
    %p452 = scmp.ne.s32.totalorder %s437, %s451
    %p453 = scmp.eq.s32.totalorder %s91, 0
    %p454 = por %p452, %p453
    %s456 = sadd.s32 %s455, 1
    %p459 = scmp.eq.s32.totalorder %s85, 1
    %p460 = scmp.ne.s32.totalorder %s455, %s457
    %p461 = scmp.eq.s32.totalorder %s85, 0
    %p462 = por %p460, %p461
    %p463 = scmp.ne.s32.totalorder %s455, %s457
    %p464 = scmp.eq.s32.totalorder %s90, 1
    %p465 = por %p463, %p464
    %p466 = scmp.ne.s32.totalorder %s457, %s458
    %p467 = scmp.eq.s32.totalorder %s90, 0
    %p468 = por %p466, %p467
    %p469 = scmp.ne.s32.totalorder %s457, %s458
    %p470 = scmp.eq.s32.totalorder %s91, 1
    %p471 = por %p469, %p470
    %p473 = scmp.ne.s32.totalorder %s458, %s472
    %p474 = scmp.eq.s32.totalorder %s91, 0
    %p475 = por %p473, %p474
    %s477 = sadd.s32 %s476, 1
    %p480 = scmp.eq.s32.totalorder %s85, 1
    %p481 = scmp.ne.s32.totalorder %s476, %s478
    %p482 = scmp.eq.s32.totalorder %s85, 0
    %p483 = por %p481, %p482
    %p484 = scmp.ne.s32.totalorder %s476, %s478
    %p485 = scmp.eq.s32.totalorder %s90, 1
    %p486 = por %p484, %p485
    %p487 = scmp.ne.s32.totalorder %s478, %s479
    %p488 = scmp.eq.s32.totalorder %s90, 0
    %p489 = por %p487, %p488
    %p490 = scmp.ne.s32.totalorder %s478, %s479
    %p491 = scmp.eq.s32.totalorder %s91, 1
    %p492 = por %p490, %p491
    %p494 = scmp.ne.s32.totalorder %s479, %s493
    %p495 = scmp.eq.s32.totalorder %s91, 0
    %p496 = por %p494, %p495
    %s498 = sadd.s32 %s497, 1
    %p501 = scmp.eq.s32.totalorder %s85, 1
    %p502 = scmp.ne.s32.totalorder %s497, %s499
    %p503 = scmp.eq.s32.totalorder %s85, 0
    %p504 = por %p502, %p503
    %p505 = scmp.ne.s32.totalorder %s497, %s499
    %p506 = scmp.eq.s32.totalorder %s90, 1
    %p507 = por %p505, %p506
    %p508 = scmp.ne.s32.totalorder %s499, %s500
    %p509 = scmp.eq.s32.totalorder %s90, 0
    %p510 = por %p508, %p509
    %p511 = scmp.ne.s32.totalorder %s499, %s500
    %p512 = scmp.eq.s32.totalorder %s91, 1
    %p513 = por %p511, %p512
    %p515 = scmp.ne.s32.totalorder %s500, %s514
    %p516 = scmp.eq.s32.totalorder %s91, 0
    %p517 = por %p515, %p516
    %s519 = sadd.s32 %s518, 1
    %p522 = scmp.eq.s32.totalorder %s85, 1
    %p523 = scmp.ne.s32.totalorder %s518, %s520
    %p524 = scmp.eq.s32.totalorder %s85, 0
    %p525 = por %p523, %p524
    %p526 = scmp.ne.s32.totalorder %s518, %s520
    %p527 = scmp.eq.s32.totalorder %s90, 1
    %p528 = por %p526, %p527
    %p529 = scmp.ne.s32.totalorder %s520, %s521
    %p530 = scmp.eq.s32.totalorder %s90, 0
    %p531 = por %p529, %p530
    %p532 = scmp.ne.s32.totalorder %s520, %s521
    %p533 = scmp.eq.s32.totalorder %s91, 1
    %p534 = por %p532, %p533
    %p536 = scmp.ne.s32.totalorder %s521, %s535
    %p537 = scmp.eq.s32.totalorder %s91, 0
    %p538 = por %p536, %p537
    %s540 = sadd.s32 %s539, 1
    %p543 = scmp.eq.s32.totalorder %s85, 1
    %p544 = scmp.ne.s32.totalorder %s539, %s541
    %p545 = scmp.eq.s32.totalorder %s85, 0
    %p546 = por %p544, %p545
    %p547 = scmp.ne.s32.totalorder %s539, %s541
    %p548 = scmp.eq.s32.totalorder %s90, 1
    %p549 = por %p547, %p548
    %p550 = scmp.ne.s32.totalorder %s541, %s542
    %p551 = scmp.eq.s32.totalorder %s90, 0
    %p552 = por %p550, %p551
    %p553 = scmp.ne.s32.totalorder %s541, %s542
    %p554 = scmp.eq.s32.totalorder %s91, 1
    %p555 = por %p553, %p554
    %p557 = scmp.ne.s32.totalorder %s542, %s556
    %p558 = scmp.eq.s32.totalorder %s91, 0
    %p559 = por %p557, %p558
    %s561 = sadd.s32 %s560, 1
    %p564 = scmp.eq.s32.totalorder %s85, 1
    %p565 = scmp.ne.s32.totalorder %s560, %s562
    %p566 = scmp.eq.s32.totalorder %s85, 0
    %p567 = por %p565, %p566
    %p568 = scmp.ne.s32.totalorder %s560, %s562
    %p569 = scmp.eq.s32.totalorder %s90, 1
    %p570 = por %p568, %p569
    %p571 = scmp.ne.s32.totalorder %s562, %s563
    %p572 = scmp.eq.s32.totalorder %s90, 0
    %p573 = por %p571, %p572
    %p574 = scmp.ne.s32.totalorder %s562, %s563
    %p575 = scmp.eq.s32.totalorder %s91, 1
    %p576 = por %p574, %p575
    %p578 = scmp.ne.s32.totalorder %s563, %s577
    %p579 = scmp.eq.s32.totalorder %s91, 0
    %p580 = por %p578, %p579
    %s582 = sadd.s32 %s581, 1
    %p585 = scmp.eq.s32.totalorder %s85, 1
    %p586 = scmp.ne.s32.totalorder %s581, %s583
    %p587 = scmp.eq.s32.totalorder %s85, 0
    %p588 = por %p586, %p587
    %p589 = scmp.ne.s32.totalorder %s581, %s583
    %p590 = scmp.eq.s32.totalorder %s90, 1
    %p591 = por %p589, %p590
    %p592 = scmp.ne.s32.totalorder %s583, %s584
    %p593 = scmp.eq.s32.totalorder %s90, 0
    %p594 = por %p592, %p593
    %p595 = scmp.ne.s32.totalorder %s583, %s584
    %p596 = scmp.eq.s32.totalorder %s91, 1
    %p597 = por %p595, %p596
    %p599 = scmp.ne.s32.totalorder %s584, %s598
    %p600 = scmp.eq.s32.totalorder %s91, 0
    %p601 = por %p599, %p600
    %s603 = sadd.s32 %s602, 1
    %p606 = scmp.eq.s32.totalorder %s85, 1
    %p607 = scmp.ne.s32.totalorder %s602, %s604
    %p608 = scmp.eq.s32.totalorder %s85, 0
    %p609 = por %p607, %p608
    %p610 = scmp.ne.s32.totalorder %s602, %s604
    %p611 = scmp.eq.s32.totalorder %s90, 1
    %p612 = por %p610, %p611
    %p613 = scmp.ne.s32.totalorder %s604, %s605
    %p614 = scmp.eq.s32.totalorder %s90, 0
    %p615 = por %p613, %p614
    %p616 = scmp.ne.s32.totalorder %s604, %s605
    %p617 = scmp.eq.s32.totalorder %s91, 1
    %p618 = por %p616, %p617
    %p620 = scmp.ne.s32.totalorder %s605, %s619
    %p621 = scmp.eq.s32.totalorder %s91, 0
    %p622 = por %p620, %p621
    %s624 = sadd.s32 %s623, 1
    %p627 = scmp.eq.s32.totalorder %s85, 1
    %p628 = scmp.ne.s32.totalorder %s623, %s625
    %p629 = scmp.eq.s32.totalorder %s85, 0
    %p630 = por %p628, %p629
    %p631 = scmp.ne.s32.totalorder %s623, %s625
    %p632 = scmp.eq.s32.totalorder %s90, 1
    %p633 = por %p631, %p632
    %p634 = scmp.ne.s32.totalorder %s625, %s626
    %p635 = scmp.eq.s32.totalorder %s90, 0
    %p636 = por %p634, %p635
    %p637 = scmp.ne.s32.totalorder %s625, %s626
    %p638 = scmp.eq.s32.totalorder %s91, 1
    %p639 = por %p637, %p638
    %p641 = scmp.ne.s32.totalorder %s626, %s640
    %p642 = scmp.eq.s32.totalorder %s91, 0
    %p643 = por %p641, %p642
    %s645 = sadd.s32 %s644, 1
    %p648 = scmp.eq.s32.totalorder %s85, 1
    %p649 = scmp.ne.s32.totalorder %s644, %s646
    %p650 = scmp.eq.s32.totalorder %s85, 0
    %p651 = por %p649, %p650
    %p652 = scmp.ne.s32.totalorder %s644, %s646
    %p653 = scmp.eq.s32.totalorder %s90, 1
    %p654 = por %p652, %p653
    %p655 = scmp.ne.s32.totalorder %s646, %s647
    %p656 = scmp.eq.s32.totalorder %s90, 0
    %p657 = por %p655, %p656
    %p658 = scmp.ne.s32.totalorder %s646, %s647
    %p659 = scmp.eq.s32.totalorder %s91, 1
    %p660 = por %p658, %p659
    %p662 = scmp.ne.s32.totalorder %s647, %s661
    %p663 = scmp.eq.s32.totalorder %s91, 0
    %p664 = por %p662, %p663
    %s666 = sadd.s32 %s665, 1
    %p669 = scmp.eq.s32.totalorder %s85, 1
    %p670 = scmp.ne.s32.totalorder %s665, %s667
    %p671 = scmp.eq.s32.totalorder %s85, 0
    %p672 = por %p670, %p671
    %p673 = scmp.ne.s32.totalorder %s665, %s667
    %p674 = scmp.eq.s32.totalorder %s90, 1
    %p675 = por %p673, %p674
    %p676 = scmp.ne.s32.totalorder %s667, %s668
    %p677 = scmp.eq.s32.totalorder %s90, 0
    %p678 = por %p676, %p677
    %p679 = scmp.ne.s32.totalorder %s667, %s668
    %p680 = scmp.eq.s32.totalorder %s91, 1
    %p681 = por %p679, %p680
    %p683 = scmp.ne.s32.totalorder %s668, %s682
    %p684 = scmp.eq.s32.totalorder %s91, 0
    %p685 = por %p683, %p684
    %s687 = sadd.s32 %s686, 1
    %p690 = scmp.eq.s32.totalorder %s85, 1
    %p691 = scmp.ne.s32.totalorder %s686, %s688
    %p692 = scmp.eq.s32.totalorder %s85, 0
    %p693 = por %p691, %p692
    %p694 = scmp.ne.s32.totalorder %s686, %s688
    %p695 = scmp.eq.s32.totalorder %s90, 1
    %p696 = por %p694, %p695
    %p697 = scmp.ne.s32.totalorder %s688, %s689
    %p698 = scmp.eq.s32.totalorder %s90, 0
    %p699 = por %p697, %p698
    %p700 = scmp.ne.s32.totalorder %s688, %s689
    %p701 = scmp.eq.s32.totalorder %s91, 1
    %p702 = por %p700, %p701
    %p704 = scmp.ne.s32.totalorder %s689, %s703
    %p705 = scmp.eq.s32.totalorder %s91, 0
    %p706 = por %p704, %p705
    %s708 = sadd.s32 %s707, 1
    %p711 = scmp.eq.s32.totalorder %s85, 1
    %p712 = scmp.ne.s32.totalorder %s707, %s709
    %p713 = scmp.eq.s32.totalorder %s85, 0
    %p714 = por %p712, %p713
    %p715 = scmp.ne.s32.totalorder %s707, %s709
    %p716 = scmp.eq.s32.totalorder %s90, 1
    %p717 = por %p715, %p716
    %p718 = scmp.ne.s32.totalorder %s709, %s710
    %p719 = scmp.eq.s32.totalorder %s90, 0
    %p720 = por %p718, %p719
    %p721 = scmp.ne.s32.totalorder %s709, %s710
    %p722 = scmp.eq.s32.totalorder %s91, 1
    %p723 = por %p721, %p722
    %p725 = scmp.ne.s32.totalorder %s710, %s724
    %p726 = scmp.eq.s32.totalorder %s91, 0
    %p727 = por %p725, %p726
    %s729 = sadd.s32 %s728, 1
    %p732 = scmp.eq.s32.totalorder %s85, 1
    %p733 = scmp.ne.s32.totalorder %s728, %s730
    %p734 = scmp.eq.s32.totalorder %s85, 0
    %p735 = por %p733, %p734
    %p736 = scmp.ne.s32.totalorder %s728, %s730
    %p737 = scmp.eq.s32.totalorder %s90, 1
    %p738 = por %p736, %p737
    %p739 = scmp.ne.s32.totalorder %s730, %s731
    %p740 = scmp.eq.s32.totalorder %s90, 0
    %p741 = por %p739, %p740
    %p742 = scmp.ne.s32.totalorder %s730, %s731
    %p743 = scmp.eq.s32.totalorder %s91, 1
    %p744 = por %p742, %p743
    %p746 = scmp.ne.s32.totalorder %s731, %s745
    %p747 = scmp.eq.s32.totalorder %s91, 0
    %p748 = por %p746, %p747
    %s750 = sadd.s32 %s749, 1
    %p753 = scmp.eq.s32.totalorder %s85, 1
    %p754 = scmp.ne.s32.totalorder %s749, %s751
    %p755 = scmp.eq.s32.totalorder %s85, 0
    %p756 = por %p754, %p755
    %p757 = scmp.ne.s32.totalorder %s749, %s751
    %p758 = scmp.eq.s32.totalorder %s90, 1
    %p759 = por %p757, %p758
    %p760 = scmp.ne.s32.totalorder %s751, %s752
    %p761 = scmp.eq.s32.totalorder %s90, 0
    %p762 = por %p760, %p761
    %p763 = scmp.ne.s32.totalorder %s751, %s752
    %p764 = scmp.eq.s32.totalorder %s91, 1
    %p765 = por %p763, %p764
    %p767 = scmp.ne.s32.totalorder %s752, %s766
    %p768 = scmp.eq.s32.totalorder %s91, 0
    %p769 = por %p767, %p768
    %s771 = sadd.s32 %s770, 1
    %p774 = scmp.eq.s32.totalorder %s85, 1
    %p775 = scmp.ne.s32.totalorder %s770, %s772
    %p776 = scmp.eq.s32.totalorder %s85, 0
    %p777 = por %p775, %p776
    %p778 = scmp.ne.s32.totalorder %s770, %s772
    %p779 = scmp.eq.s32.totalorder %s90, 1
    %p780 = por %p778, %p779
    %p781 = scmp.ne.s32.totalorder %s772, %s773
    %p782 = scmp.eq.s32.totalorder %s90, 0
    %p783 = por %p781, %p782
    %p784 = scmp.ne.s32.totalorder %s772, %s773
    %p785 = scmp.eq.s32.totalorder %s91, 1
    %p786 = por %p784, %p785
    %p788 = scmp.ne.s32.totalorder %s773, %s787
    %p789 = scmp.eq.s32.totalorder %s91, 0
    %p790 = por %p788, %p789
    %s792 = sadd.s32 %s791, 1
    %p795 = scmp.eq.s32.totalorder %s85, 1
    %p796 = scmp.ne.s32.totalorder %s791, %s793
    %p797 = scmp.eq.s32.totalorder %s85, 0
    %p798 = por %p796, %p797
    %p799 = scmp.ne.s32.totalorder %s791, %s793
    %p800 = scmp.eq.s32.totalorder %s90, 1
    %p801 = por %p799, %p800
    %p802 = scmp.ne.s32.totalorder %s793, %s794
    %p803 = scmp.eq.s32.totalorder %s90, 0
    %p804 = por %p802, %p803
    %p805 = scmp.ne.s32.totalorder %s793, %s794
    %p806 = scmp.eq.s32.totalorder %s91, 1
    %p807 = por %p805, %p806
    %p809 = scmp.ne.s32.totalorder %s794, %s808
    %p810 = scmp.eq.s32.totalorder %s91, 0
    %p811 = por %p809, %p810
    %s813 = sadd.s32 %s812, 1
    %p816 = scmp.eq.s32.totalorder %s85, 1
    %p817 = scmp.ne.s32.totalorder %s812, %s814
    %p818 = scmp.eq.s32.totalorder %s85, 0
    %p819 = por %p817, %p818
    %p820 = scmp.ne.s32.totalorder %s812, %s814
    %p821 = scmp.eq.s32.totalorder %s90, 1
    %p822 = por %p820, %p821
    %p823 = scmp.ne.s32.totalorder %s814, %s815
    %p824 = scmp.eq.s32.totalorder %s90, 0
    %p825 = por %p823, %p824
    %p826 = scmp.ne.s32.totalorder %s814, %s815
    %p827 = scmp.eq.s32.totalorder %s91, 1
    %p828 = por %p826, %p827
    %p830 = scmp.ne.s32.totalorder %s815, %s829
    %p831 = scmp.eq.s32.totalorder %s91, 0
    %p832 = por %p830, %p831
    %s834 = sadd.s32 %s833, 1
    %p837 = scmp.eq.s32.totalorder %s85, 1
    %p838 = scmp.ne.s32.totalorder %s833, %s835
    %p839 = scmp.eq.s32.totalorder %s85, 0
    %p840 = por %p838, %p839
    %p841 = scmp.ne.s32.totalorder %s833, %s835
    %p842 = scmp.eq.s32.totalorder %s90, 1
    %p843 = por %p841, %p842
    %p844 = scmp.ne.s32.totalorder %s835, %s836
    %p845 = scmp.eq.s32.totalorder %s90, 0
    %p846 = por %p844, %p845
    %p847 = scmp.ne.s32.totalorder %s835, %s836
    %p848 = scmp.eq.s32.totalorder %s91, 1
    %p849 = por %p847, %p848
    %p851 = scmp.ne.s32.totalorder %s836, %s850
    %p852 = scmp.eq.s32.totalorder %s91, 0
    %p853 = por %p851, %p852
    %s855 = sadd.s32 %s854, 1
    %p858 = scmp.eq.s32.totalorder %s85, 1
    %p859 = scmp.ne.s32.totalorder %s854, %s856
    %p860 = scmp.eq.s32.totalorder %s85, 0
    %p861 = por %p859, %p860
    %p862 = scmp.ne.s32.totalorder %s854, %s856
    %p863 = scmp.eq.s32.totalorder %s90, 1
    %p864 = por %p862, %p863
    %p865 = scmp.ne.s32.totalorder %s856, %s857
    %p866 = scmp.eq.s32.totalorder %s90, 0
    %p867 = por %p865, %p866
    %p868 = scmp.ne.s32.totalorder %s856, %s857
    %p869 = scmp.eq.s32.totalorder %s91, 1
    %p870 = por %p868, %p869
    %p872 = scmp.ne.s32.totalorder %s857, %s871
    %p873 = scmp.eq.s32.totalorder %s91, 0
    %p874 = por %p872, %p873
    %s876 = sadd.s32 %s875, 1
    %p879 = scmp.eq.s32.totalorder %s85, 1
    %p880 = scmp.ne.s32.totalorder %s875, %s877
    %p881 = scmp.eq.s32.totalorder %s85, 0
    %p882 = por %p880, %p881
    %p883 = scmp.ne.s32.totalorder %s875, %s877
    %p884 = scmp.eq.s32.totalorder %s90, 1
    %p885 = por %p883, %p884
    %p886 = scmp.ne.s32.totalorder %s877, %s878
    %p887 = scmp.eq.s32.totalorder %s90, 0
    %p888 = por %p886, %p887
    %p889 = scmp.ne.s32.totalorder %s877, %s878
    %p890 = scmp.eq.s32.totalorder %s91, 1
    %p891 = por %p889, %p890
    %p893 = scmp.ne.s32.totalorder %s878, %s892
    %p894 = scmp.eq.s32.totalorder %s91, 0
    %p895 = por %p893, %p894
    %s897 = sadd.s32 %s896, 1
    %p900 = scmp.eq.s32.totalorder %s85, 1
    %p901 = scmp.ne.s32.totalorder %s896, %s898
    %p902 = scmp.eq.s32.totalorder %s85, 0
    %p903 = por %p901, %p902
    %p904 = scmp.ne.s32.totalorder %s896, %s898
    %p905 = scmp.eq.s32.totalorder %s90, 1
    %p906 = por %p904, %p905
    %p907 = scmp.ne.s32.totalorder %s898, %s899
    %p908 = scmp.eq.s32.totalorder %s90, 0
    %p909 = por %p907, %p908
    %p910 = scmp.ne.s32.totalorder %s898, %s899
    %p911 = scmp.eq.s32.totalorder %s91, 1
    %p912 = por %p910, %p911
    %p914 = scmp.ne.s32.totalorder %s899, %s913
    %p915 = scmp.eq.s32.totalorder %s91, 0
    %p916 = por %p914, %p915
    %s917 = ssub.s32 %s85, %s92
    %p918 = scmp.eq.s32.totalorder %s917, 0
    %s920 = sadd.s32 %s919, 1
    %s921 = scalar_select %p918, %s919, %s920
    %p924 = pneg %p918
    %p925 = scmp.eq.s32.totalorder %s85, 1
    %p926 = por %p924, %p925
    %p927 = scmp.ne.s32.totalorder %s919, %s922
    %p928 = scmp.eq.s32.totalorder %s85, 0
    %p929 = por %p927, %p928
    %p930 = scmp.ne.s32.totalorder %s919, %s922
    %p931 = scmp.eq.s32.totalorder %s90, 1
    %p932 = por %p930, %p931
    %p933 = scmp.ne.s32.totalorder %s922, %s923
    %p934 = scmp.eq.s32.totalorder %s90, 0
    %p935 = por %p933, %p934
    %p936 = scmp.ne.s32.totalorder %s922, %s923
    %p937 = scmp.eq.s32.totalorder %s91, 1
    %p938 = por %p936, %p937
    %p940 = scmp.ne.s32.totalorder %s923, %s939
    %p941 = scmp.eq.s32.totalorder %s91, 0
    %p942 = por %p940, %p941
    %p943 = scmp.le.s32.totalorder 1, %s85
    %p944 = scmp.lt.s32.totalorder %s85, 3
    %p945 = pnand %p943, %p944
    %p946 = pneg %p945
    // Predicated region
    $region9: #{sparse4d_forward.1} parent=5 // pred_check
      _
    $region10: #{sparse4d_forward.1} parent=5 // pred_check_branch
      %948 = sbr.rel (%p945) target = $region12
    $region11: #{sparse4d_forward.1} parent=5 // pred_region
      %s949 = ssub.s32 %s85, 1
      // Predicated region
      $region13: #{sparse4d_forward.1} parent=11 // pred_check
        %p950 = pneg %p132
      $region14: #{sparse4d_forward.1} parent=11 // pred_check_branch
        %952 = sbr.rel (%p950) target = $region16
      $region15: #{sparse4d_forward.1} parent=11 // pred_region
        _
      $region16: #{sparse4d_forward.1} parent=11 // pred_fallthru
        _
      // Predicated region
      $region17: #{sparse4d_forward.1} parent=11 // pred_check
        %p953 = pneg %p153
      $region18: #{sparse4d_forward.1} parent=11 // pred_check_branch
        %955 = sbr.rel (%p953) target = $region20
      $region19: #{sparse4d_forward.1} parent=11 // pred_region
        _
      $region20: #{sparse4d_forward.1} parent=11 // pred_fallthru
        _
      // Predicated region
      $region21: #{sparse4d_forward.1} parent=11 // pred_check
        %p956 = pneg %p174
      $region22: #{sparse4d_forward.1} parent=11 // pred_check_branch
        %958 = sbr.rel (%p956) target = $region24
      $region23: #{sparse4d_forward.1} parent=11 // pred_region
        _
      $region24: #{sparse4d_forward.1} parent=11 // pred_fallthru
        _
      // Predicated region
      $region25: #{sparse4d_forward.1} parent=11 // pred_check
        %p959 = pneg %p195
      $region26: #{sparse4d_forward.1} parent=11 // pred_check_branch
        %961 = sbr.rel (%p959) target = $region28
      $region27: #{sparse4d_forward.1} parent=11 // pred_region
        _
      $region28: #{sparse4d_forward.1} parent=11 // pred_fallthru
        _
      // Predicated region
      $region29: #{sparse4d_forward.1} parent=11 // pred_check
        %p962 = pneg %p216
      $region30: #{sparse4d_forward.1} parent=11 // pred_check_branch
        %964 = sbr.rel (%p962) target = $region32
      $region31: #{sparse4d_forward.1} parent=11 // pred_region
        _
      $region32: #{sparse4d_forward.1} parent=11 // pred_fallthru
        _
      // Predicated region
      $region33: #{sparse4d_forward.1} parent=11 // pred_check
        %p965 = pneg %p237
      $region34: #{sparse4d_forward.1} parent=11 // pred_check_branch
        %967 = sbr.rel (%p965) target = $region36
      $region35: #{sparse4d_forward.1} parent=11 // pred_region
        _
      $region36: #{sparse4d_forward.1} parent=11 // pred_fallthru
        _
      // Predicated region
      $region37: #{sparse4d_forward.1} parent=11 // pred_check
        %p968 = pneg %p258
      $region38: #{sparse4d_forward.1} parent=11 // pred_check_branch
        %970 = sbr.rel (%p968) target = $region40
      $region39: #{sparse4d_forward.1} parent=11 // pred_region
        _
      $region40: #{sparse4d_forward.1} parent=11 // pred_fallthru
        _
      // Predicated region
      $region41: #{sparse4d_forward.1} parent=11 // pred_check
        %p971 = pneg %p279
      $region42: #{sparse4d_forward.1} parent=11 // pred_check_branch
        %973 = sbr.rel (%p971) target = $region44
      $region43: #{sparse4d_forward.1} parent=11 // pred_region
        _
      $region44: #{sparse4d_forward.1} parent=11 // pred_fallthru
        _
      // Predicated region
      $region45: #{sparse4d_forward.1} parent=11 // pred_check
        %p974 = pneg %p300
      $region46: #{sparse4d_forward.1} parent=11 // pred_check_branch
        %976 = sbr.rel (%p974) target = $region48
      $region47: #{sparse4d_forward.1} parent=11 // pred_region
        _
      $region48: #{sparse4d_forward.1} parent=11 // pred_fallthru
        _
      // Predicated region
      $region49: #{sparse4d_forward.1} parent=11 // pred_check
        %p977 = pneg %p321
      $region50: #{sparse4d_forward.1} parent=11 // pred_check_branch
        %979 = sbr.rel (%p977) target = $region52
      $region51: #{sparse4d_forward.1} parent=11 // pred_region
        _
      $region52: #{sparse4d_forward.1} parent=11 // pred_fallthru
        _
      // Predicated region
      $region53: #{sparse4d_forward.1} parent=11 // pred_check
        %p980 = pneg %p342
      $region54: #{sparse4d_forward.1} parent=11 // pred_check_branch
        %982 = sbr.rel (%p980) target = $region56
      $region55: #{sparse4d_forward.1} parent=11 // pred_region
        _
      $region56: #{sparse4d_forward.1} parent=11 // pred_fallthru
        _
      // Predicated region
      $region57: #{sparse4d_forward.1} parent=11 // pred_check
        %p983 = pneg %p363
      $region58: #{sparse4d_forward.1} parent=11 // pred_check_branch
        %985 = sbr.rel (%p983) target = $region60
      $region59: #{sparse4d_forward.1} parent=11 // pred_region
        _
      $region60: #{sparse4d_forward.1} parent=11 // pred_fallthru
        _
      // Predicated region
      $region61: #{sparse4d_forward.1} parent=11 // pred_check
        %p986 = pneg %p384
      $region62: #{sparse4d_forward.1} parent=11 // pred_check_branch
        %988 = sbr.rel (%p986) target = $region64
      $region63: #{sparse4d_forward.1} parent=11 // pred_region
        _
      $region64: #{sparse4d_forward.1} parent=11 // pred_fallthru
        _
      // Predicated region
      $region65: #{sparse4d_forward.1} parent=11 // pred_check
        %p989 = pneg %p405
      $region66: #{sparse4d_forward.1} parent=11 // pred_check_branch
        %991 = sbr.rel (%p989) target = $region68
      $region67: #{sparse4d_forward.1} parent=11 // pred_region
        _
      $region68: #{sparse4d_forward.1} parent=11 // pred_fallthru
        _
      // Predicated region
      $region69: #{sparse4d_forward.1} parent=11 // pred_check
        %p992 = pneg %p426
      $region70: #{sparse4d_forward.1} parent=11 // pred_check_branch
        %994 = sbr.rel (%p992) target = $region72
      $region71: #{sparse4d_forward.1} parent=11 // pred_region
        _
      $region72: #{sparse4d_forward.1} parent=11 // pred_fallthru
        _
      // Predicated region
      $region73: #{sparse4d_forward.1} parent=11 // pred_check
        %p995 = pneg %p447
      $region74: #{sparse4d_forward.1} parent=11 // pred_check_branch
        %997 = sbr.rel (%p995) target = $region76
      $region75: #{sparse4d_forward.1} parent=11 // pred_region
        _
      $region76: #{sparse4d_forward.1} parent=11 // pred_fallthru
        _
      // Predicated region
      $region77: #{sparse4d_forward.1} parent=11 // pred_check
        %p998 = pneg %p468
      $region78: #{sparse4d_forward.1} parent=11 // pred_check_branch
        %1000 = sbr.rel (%p998) target = $region80
      $region79: #{sparse4d_forward.1} parent=11 // pred_region
        _
      $region80: #{sparse4d_forward.1} parent=11 // pred_fallthru
        _
      // Predicated region
      $region81: #{sparse4d_forward.1} parent=11 // pred_check
        %p1001 = pneg %p489
      $region82: #{sparse4d_forward.1} parent=11 // pred_check_branch
        %1003 = sbr.rel (%p1001) target = $region84
      $region83: #{sparse4d_forward.1} parent=11 // pred_region
        _
      $region84: #{sparse4d_forward.1} parent=11 // pred_fallthru
        _
      // Predicated region
      $region85: #{sparse4d_forward.1} parent=11 // pred_check
        %p1004 = pneg %p510
      $region86: #{sparse4d_forward.1} parent=11 // pred_check_branch
        %1006 = sbr.rel (%p1004) target = $region88
      $region87: #{sparse4d_forward.1} parent=11 // pred_region
        _
      $region88: #{sparse4d_forward.1} parent=11 // pred_fallthru
        _
      // Predicated region
      $region89: #{sparse4d_forward.1} parent=11 // pred_check
        %p1007 = pneg %p531
      $region90: #{sparse4d_forward.1} parent=11 // pred_check_branch
        %1009 = sbr.rel (%p1007) target = $region92
      $region91: #{sparse4d_forward.1} parent=11 // pred_region
        _
      $region92: #{sparse4d_forward.1} parent=11 // pred_fallthru
        _
      // Predicated region
      $region93: #{sparse4d_forward.1} parent=11 // pred_check
        %p1010 = pneg %p552
      $region94: #{sparse4d_forward.1} parent=11 // pred_check_branch
        %1012 = sbr.rel (%p1010) target = $region96
      $region95: #{sparse4d_forward.1} parent=11 // pred_region
        _
      $region96: #{sparse4d_forward.1} parent=11 // pred_fallthru
        _
      // Predicated region
      $region97: #{sparse4d_forward.1} parent=11 // pred_check
        %p1013 = pneg %p573
      $region98: #{sparse4d_forward.1} parent=11 // pred_check_branch
        %1015 = sbr.rel (%p1013) target = $region100
      $region99: #{sparse4d_forward.1} parent=11 // pred_region
        _
      $region100: #{sparse4d_forward.1} parent=11 // pred_fallthru
        _
      // Predicated region
      $region101: #{sparse4d_forward.1} parent=11 // pred_check
        %p1016 = pneg %p594
      $region102: #{sparse4d_forward.1} parent=11 // pred_check_branch
        %1018 = sbr.rel (%p1016) target = $region104
      $region103: #{sparse4d_forward.1} parent=11 // pred_region
        _
      $region104: #{sparse4d_forward.1} parent=11 // pred_fallthru
        _
      // Predicated region
      $region105: #{sparse4d_forward.1} parent=11 // pred_check
        %p1019 = pneg %p615
      $region106: #{sparse4d_forward.1} parent=11 // pred_check_branch
        %1021 = sbr.rel (%p1019) target = $region108
      $region107: #{sparse4d_forward.1} parent=11 // pred_region
        _
      $region108: #{sparse4d_forward.1} parent=11 // pred_fallthru
        _
      // Predicated region
      $region109: #{sparse4d_forward.1} parent=11 // pred_check
        %p1022 = pneg %p636
      $region110: #{sparse4d_forward.1} parent=11 // pred_check_branch
        %1024 = sbr.rel (%p1022) target = $region112
      $region111: #{sparse4d_forward.1} parent=11 // pred_region
        _
      $region112: #{sparse4d_forward.1} parent=11 // pred_fallthru
        _
      // Predicated region
      $region113: #{sparse4d_forward.1} parent=11 // pred_check
        %p1025 = pneg %p657
      $region114: #{sparse4d_forward.1} parent=11 // pred_check_branch
        %1027 = sbr.rel (%p1025) target = $region116
      $region115: #{sparse4d_forward.1} parent=11 // pred_region
        _
      $region116: #{sparse4d_forward.1} parent=11 // pred_fallthru
        _
      // Predicated region
      $region117: #{sparse4d_forward.1} parent=11 // pred_check
        %p1028 = pneg %p678
      $region118: #{sparse4d_forward.1} parent=11 // pred_check_branch
        %1030 = sbr.rel (%p1028) target = $region120
      $region119: #{sparse4d_forward.1} parent=11 // pred_region
        _
      $region120: #{sparse4d_forward.1} parent=11 // pred_fallthru
        _
      // Predicated region
      $region121: #{sparse4d_forward.1} parent=11 // pred_check
        %p1031 = pneg %p699
      $region122: #{sparse4d_forward.1} parent=11 // pred_check_branch
        %1033 = sbr.rel (%p1031) target = $region124
      $region123: #{sparse4d_forward.1} parent=11 // pred_region
        _
      $region124: #{sparse4d_forward.1} parent=11 // pred_fallthru
        _
      // Predicated region
      $region125: #{sparse4d_forward.1} parent=11 // pred_check
        %p1034 = pneg %p720
      $region126: #{sparse4d_forward.1} parent=11 // pred_check_branch
        %1036 = sbr.rel (%p1034) target = $region128
      $region127: #{sparse4d_forward.1} parent=11 // pred_region
        _
      $region128: #{sparse4d_forward.1} parent=11 // pred_fallthru
        _
      // Predicated region
      $region129: #{sparse4d_forward.1} parent=11 // pred_check
        %p1037 = pneg %p741
      $region130: #{sparse4d_forward.1} parent=11 // pred_check_branch
        %1039 = sbr.rel (%p1037) target = $region132
      $region131: #{sparse4d_forward.1} parent=11 // pred_region
        _
      $region132: #{sparse4d_forward.1} parent=11 // pred_fallthru
        _
      // Predicated region
      $region133: #{sparse4d_forward.1} parent=11 // pred_check
        %p1040 = pneg %p762
      $region134: #{sparse4d_forward.1} parent=11 // pred_check_branch
        %1042 = sbr.rel (%p1040) target = $region136
      $region135: #{sparse4d_forward.1} parent=11 // pred_region
        _
      $region136: #{sparse4d_forward.1} parent=11 // pred_fallthru
        _
      // Predicated region
      $region137: #{sparse4d_forward.1} parent=11 // pred_check
        %p1043 = pneg %p783
      $region138: #{sparse4d_forward.1} parent=11 // pred_check_branch
        %1045 = sbr.rel (%p1043) target = $region140
      $region139: #{sparse4d_forward.1} parent=11 // pred_region
        _
      $region140: #{sparse4d_forward.1} parent=11 // pred_fallthru
        _
      // Predicated region
      $region141: #{sparse4d_forward.1} parent=11 // pred_check
        %p1046 = pneg %p804
      $region142: #{sparse4d_forward.1} parent=11 // pred_check_branch
        %1048 = sbr.rel (%p1046) target = $region144
      $region143: #{sparse4d_forward.1} parent=11 // pred_region
        _
      $region144: #{sparse4d_forward.1} parent=11 // pred_fallthru
        _
      // Predicated region
      $region145: #{sparse4d_forward.1} parent=11 // pred_check
        %p1049 = pneg %p825
      $region146: #{sparse4d_forward.1} parent=11 // pred_check_branch
        %1051 = sbr.rel (%p1049) target = $region148
      $region147: #{sparse4d_forward.1} parent=11 // pred_region
        _
      $region148: #{sparse4d_forward.1} parent=11 // pred_fallthru
        _
      // Predicated region
      $region149: #{sparse4d_forward.1} parent=11 // pred_check
        %p1052 = pneg %p846
      $region150: #{sparse4d_forward.1} parent=11 // pred_check_branch
        %1054 = sbr.rel (%p1052) target = $region152
      $region151: #{sparse4d_forward.1} parent=11 // pred_region
        _
      $region152: #{sparse4d_forward.1} parent=11 // pred_fallthru
        _
      // Predicated region
      $region153: #{sparse4d_forward.1} parent=11 // pred_check
        %p1055 = pneg %p867
      $region154: #{sparse4d_forward.1} parent=11 // pred_check_branch
        %1057 = sbr.rel (%p1055) target = $region156
      $region155: #{sparse4d_forward.1} parent=11 // pred_region
        _
      $region156: #{sparse4d_forward.1} parent=11 // pred_fallthru
        _
      // Predicated region
      $region157: #{sparse4d_forward.1} parent=11 // pred_check
        %p1058 = pneg %p888
      $region158: #{sparse4d_forward.1} parent=11 // pred_check_branch
        %1060 = sbr.rel (%p1058) target = $region160
      $region159: #{sparse4d_forward.1} parent=11 // pred_region
        _
      $region160: #{sparse4d_forward.1} parent=11 // pred_fallthru
        _
      // Predicated region
      $region161: #{sparse4d_forward.1} parent=11 // pred_check
        %p1061 = pneg %p909
      $region162: #{sparse4d_forward.1} parent=11 // pred_check_branch
        %1063 = sbr.rel (%p1061) target = $region164
      $region163: #{sparse4d_forward.1} parent=11 // pred_region
        _
      $region164: #{sparse4d_forward.1} parent=11 // pred_fallthru
        _
    $region12: #{sparse4d_forward.1} parent=5 // pred_fallthru
      _
    %p1064 = scmp.lt.s32.totalorder %s85, 2
    // Predicated region
    $region165: #{sparse4d_forward.1} parent=5 // pred_check
      %p1065 = pneg %p1064
    $region166: #{sparse4d_forward.1} parent=5 // pred_check_branch
      %1067 = sbr.rel (%p1065) target = $region168
    $region167: #{sparse4d_forward.1} parent=5 // pred_region
      // Predicated region
      $region169: #{sparse4d_forward.1} parent=167 // pred_check
        %p1068 = pneg %p105
      $region170: #{sparse4d_forward.1} parent=167 // pred_check_branch
        %1070 = sbr.rel (%p1068) target = $region172
      $region171: #{sparse4d_forward.1} parent=167 // pred_region
        %p1071 = scmp.lt.s32.totalorder %s85, 1
        %s1072 = scalar_select %p1071, %s85, 1
        %s1073 = smul.addr %s1072, 4
        %s1074 = smul.addr %s1073, 4
        %s1075 = scalar_lea.vmem %s1, %s1074
      $region172: #{sparse4d_forward.1} parent=167 // pred_fallthru
        _
    $region168: #{sparse4d_forward.1} parent=5 // pred_fallthru
      _
    %p1076 = scmp.le.s32.totalorder 1, %s85
    %p1077 = scmp.lt.s32.totalorder %s85, 3
    %p1078 = pnand %p1076, %p1077
    %p1079 = pneg %p1078
    // Predicated region
    $region173: #{sparse4d_forward.1} parent=5 // pred_check
      _
    $region174: #{sparse4d_forward.1} parent=5 // pred_check_branch
      %1081 = sbr.rel (%p1078) target = $region176
    $region175: #{sparse4d_forward.1} parent=5 // pred_region
      %s1082 = ssub.s32 %s85, 1
      %p1083 = scmp.lt.s32.totalorder %s90, 1
      %s1084 = scalar_select %p1083, %s90, 1
      %s1085 = smul.addr %s1084, 4
      %s1086 = smul.addr %s1085, 4
      %s1087 = scalar_lea.vmem %s1, %s1086
      %p1088 = pneg %p111
      %p1089 = pneg %p108
      %p1090 = pneg %p132
      %p1091 = pneg %p129
      %p1092 = pneg %p153
      %p1093 = pneg %p150
      %p1094 = pneg %p174
      %p1095 = pneg %p171
      %p1096 = pneg %p195
      %p1097 = pneg %p192
      %p1098 = pneg %p216
      %p1099 = pneg %p213
      %p1100 = pneg %p237
      %p1101 = pneg %p234
      %p1102 = pneg %p258
      %p1103 = pneg %p255
      %p1104 = pneg %p279
      %p1105 = pneg %p276
      %p1106 = pneg %p300
      %p1107 = pneg %p297
      %p1108 = pneg %p321
      %p1109 = pneg %p318
      %p1110 = pneg %p342
      %p1111 = pneg %p339
      %p1112 = pneg %p363
      %p1113 = pneg %p360
      %p1114 = pneg %p384
      %p1115 = pneg %p381
      %p1116 = pneg %p405
      %p1117 = pneg %p402
      %p1118 = pneg %p426
      %p1119 = pneg %p423
      %p1120 = pneg %p447
      %p1121 = pneg %p444
      %p1122 = pneg %p468
      %p1123 = pneg %p465
      %p1124 = pneg %p489
      %p1125 = pneg %p486
      %p1126 = pneg %p510
      %p1127 = pneg %p507
      %p1128 = pneg %p531
      %p1129 = pneg %p528
      %p1130 = pneg %p552
      %p1131 = pneg %p549
      %p1132 = pneg %p573
      %p1133 = pneg %p570
      %p1134 = pneg %p594
      %p1135 = pneg %p591
      %p1136 = pneg %p615
      %p1137 = pneg %p612
      %p1138 = pneg %p636
      %p1139 = pneg %p633
      %p1140 = pneg %p657
      %p1141 = pneg %p654
      %p1142 = pneg %p678
      %p1143 = pneg %p675
      %p1144 = pneg %p699
      %p1145 = pneg %p696
      %p1146 = pneg %p720
      %p1147 = pneg %p717
      %p1148 = pneg %p741
      %p1149 = pneg %p738
      %p1150 = pneg %p762
      %p1151 = pneg %p759
      %p1152 = pneg %p783
      %p1153 = pneg %p780
      %p1154 = pneg %p804
      %p1155 = pneg %p801
      %p1156 = pneg %p825
      %p1157 = pneg %p822
      %p1158 = pneg %p846
      %p1159 = pneg %p843
      %p1160 = pneg %p867
      %p1161 = pneg %p864
      %p1162 = pneg %p888
      %p1163 = pneg %p885
      %p1164 = pneg %p909
      %p1165 = pneg %p906
      %p1166 = pneg %p935
      %p1167 = pneg %p932
      %p1168 = scmp.lt.s32.totalorder %s90, 1
      %s1169 = scalar_select %p1168, %s90, 1
      %s1170 = smul.addr %s1169, 2
      %s1171 = smul.addr %s1170, 8
      %s1172 = scalar_lea.vmem %s79, %s1171
      %p1173 = scmp.lt.s32.totalorder %s90, 1
      %s1174 = scalar_select %p1173, %s90, 1
      %s1175 = smul.addr %s1174, 4
      %s1176 = smul.addr %s1175, 4
      %s1177 = scalar_lea.vmem %s1, %s1176
      %p1178 = scmp.lt.s32.totalorder %s90, 1
      %s1179 = scalar_select %p1178, %s90, 1
      %s1180 = smul.addr %s1179, 2
      %s1181 = smul.addr %s1180, 8
      %s1182 = scalar_lea.vmem %s79, %s1181
      %v1185 = vld [vmem:[%s7] sm:$0xf]
      %v1186 = vld [vmem:[%s7 + $0x4] sm:$0xf]
      %v1187 = vld [vmem:[%s7 + $0x8] sm:$0xf]
      %v1188 = vld [vmem:[%s7 + $0xc] sm:$0xf]
      %v1189 = vld [vmem:[%s1177] sm:$0xff]
      %1191 = vst [vmem:[#allocation1] ss:$2 sm:$0xff] %v1189
      %v1192 = vld.sshfl [vmem:[#allocation1] sm:$0xff pattern:$0x75316420]
      %v1193 = vld.sshfl [vmem:[#allocation1 + $0x8] sm:$0xff pattern:$0x75316420]
      %v1196 = vpack.c.bf16 %v1192, %v1192
      %v1197 = vpack.c.bf16 %v1193, %v1193
      %v1198 = vld [vmem:[%s9] sm:$0xff]
      %v1199 = vld [vmem:[%s9 + $0x8] sm:$0xff]
      %v1200 = vld [vmem:[%s9 + $0x10] sm:$0xff]
      %v1201 = vld [vmem:[%s9 + $0x18] sm:$0xff]
      %1203 = vset.pattern.permute.xlu0 0
      %1204 = vperm.xlu0 %1203, %v1198
      %v1205 = vpop.permute.xlu0 %1204
      %1208 = vset.pattern.permute.xlu0 0
      %1209 = vperm.xlu0 %1208, %v1199
      %v1210 = vpop.permute.xlu0 %1209
      %1213 = vset.pattern.permute.xlu0 0
      %1214 = vperm.xlu0 %1213, %v1200
      %v1215 = vpop.permute.xlu0 %1214
      %1218 = vset.pattern.permute.xlu0 0
      %1219 = vperm.xlu0 %1218, %v1201
      %v1220 = vpop.permute.xlu0 %1219
      %v1226 = vunpack.c.l.b16 %v1185
      %v1227 = vunpack.c.l.b16 %v1186
      %v1228 = vunpack.c.l.b16 %v1187
      %v1229 = vunpack.c.l.b16 %v1188
      %v1230 = vpack.c.b16 %v1227, %v1226
      %v1231 = vpack.c.b16 %v1229, %v1228
      %vm1232 = vcmask 31744
      %v1234 = vsel %vm1232, %v1230, 0
      %v1237 = vsel %vm1232, %v1231, 0
      %vm1239 = vcmask 1041408
      %v1241 = vsel %vm1239, %v1196, 0
      %v1244 = vsel %vm1239, %v1197, 0
      %1246 = vmatpush.bf16.msra.mxu0 0
      %1247 = vmatpush.bf16.msra.mxu0 0
      %1248 = vmatpush.bf16.msra.mxu0 0
      %1249 = vmatpush.bf16.msra.mxu0 0
      %1250 = vmatpush.bf16.msra.mxu0 0
      %1251 = vmatpush.bf16.msra.mxu0 0
      %1252 = vmatpush.bf16.msra.mxu0 0
      %1253 = vmatpush.bf16.msra.mxu0 %v1241
      %1254 = vmatmul.bf16.gmra.mxu0 %v1234
      %v1255 = vpop.f32.mrf.mxu0
      %v1256 = vadd.f32 %v1205, %v1255
      %v1257 = vpop.f32.mrf.mxu0
      %v1258 = vadd.f32 %v1210, %v1257
      %1259 = vmatmul.bf16.gmra.mxu0 %v1237
      %v1260 = vpop.f32.mrf.mxu0
      %v1261 = vadd.f32 %v1215, %v1260
      %v1262 = vpop.f32.mrf.mxu0
      %v1263 = vadd.f32 %v1220, %v1262
      %1264 = vdwg.mxu0
      %1265 = vmatpush.bf16.msra.mxu0 0
      %1266 = vmatpush.bf16.msra.mxu0 0
      %1267 = vmatpush.bf16.msra.mxu0 0
      %1268 = vmatpush.bf16.msra.mxu0 0
      %1269 = vmatpush.bf16.msra.mxu0 0
      %1270 = vmatpush.bf16.msra.mxu0 0
      %1271 = vmatpush.bf16.msra.mxu0 0
      %1272 = vmatpush.bf16.msra.mxu0 %v1244
      %1273 = vmatmul.bf16.gmra.mxu0 %v1234
      %v1274 = vpop.f32.mrf.mxu0
      %v1275 = vadd.f32 %v1205, %v1274
      %v1276 = vpop.f32.mrf.mxu0
      %v1277 = vadd.f32 %v1210, %v1276
      %1278 = vmatmul.bf16.gmra.mxu0 %v1237
      %v1279 = vpop.f32.mrf.mxu0
      %v1280 = vadd.f32 %v1215, %v1279
      %v1281 = vpop.f32.mrf.mxu0
      %v1282 = vadd.f32 %v1220, %v1281
      %1283 = vdwg.mxu0
      %v1284 = vmax.f32 %v1256, 0.0
      %v1285 = vmax.f32 %v1275, 0.0
      %v1286 = vmax.f32 %v1258, 0.0
      %v1287 = vmax.f32 %v1277, 0.0
      %v1288 = vmax.f32 %v1261, 0.0
      %v1289 = vmax.f32 %v1280, 0.0
      %v1290 = vmax.f32 %v1263, 0.0
      %v1291 = vmax.f32 %v1282, 0.0
      %v1292 = vpack.c.bf16 %v1286, %v1284
      %v1293 = vpack.c.bf16 %v1287, %v1285
      %v1294 = vpack.c.bf16 %v1290, %v1288
      %v1295 = vpack.c.bf16 %v1291, %v1289
      %1296 = vmatpush.bf16.xpose.msra.mxu0 0
      %1297 = vmatpush.bf16.xpose.msra.mxu0 0
      %1298 = vmatpush.bf16.xpose.msra.mxu0 0
      %1299 = vmatpush.bf16.xpose.msra.mxu0 0
      %1300 = vmatpush.bf16.xpose.msra.mxu0 0
      %1301 = vmatpush.bf16.xpose.msra.mxu0 0
      %1302 = vmatpush.bf16.xpose.msra.mxu0 %v1294
      %1303 = vmatpush.bf16.xpose.msra.mxu0 %v1292
      %1304 = vmatmul.bf16.gmra.mxu0 998259584
      %v1305 = vpop.f32.mrf.mxu0
      %v1306 = vadd.f32 0.0, %v1305
      %v1307 = vpop.f32.mrf.mxu0
      %1308 = vdwg.mxu0
      %1309 = vmatpush.bf16.xpose.msra.mxu0 0
      %1310 = vmatpush.bf16.xpose.msra.mxu0 0
      %1311 = vmatpush.bf16.xpose.msra.mxu0 0
      %1312 = vmatpush.bf16.xpose.msra.mxu0 0
      %1313 = vmatpush.bf16.xpose.msra.mxu0 0
      %1314 = vmatpush.bf16.xpose.msra.mxu0 0
      %1315 = vmatpush.bf16.xpose.msra.mxu0 %v1295
      %1316 = vmatpush.bf16.xpose.msra.mxu0 %v1293
      %1317 = vmatmul.bf16.gmra.mxu0 998259584
      %v1318 = vpop.f32.mrf.mxu0
      %v1319 = vadd.f32 %v1306, %v1318
      %v1320 = vpop.f32.mrf.mxu0
      %1321 = vdwg.mxu0
      %s1322 = scalar_lea.vmem %s1177, 8
      %v1323 = vld [vmem:[%s1322] sm:$0xff]
      %1325 = vst [vmem:[#allocation1] ss:$2 sm:$0xff] %v1323
      %v1326 = vld.sshfl [vmem:[#allocation1] sm:$0xff pattern:$0x75316420]
      %v1327 = vld.sshfl [vmem:[#allocation1 + $0x8] sm:$0xff pattern:$0x75316420]
      %v1330 = vpack.c.bf16 %v1326, %v1326
      %v1331 = vpack.c.bf16 %v1327, %v1327
      %v1333 = vsel %vm1239, %v1330, 0
      %v1336 = vsel %vm1239, %v1331, 0
      %1338 = vmatpush.bf16.msra.mxu0 0
      %1339 = vmatpush.bf16.msra.mxu0 0
      %1340 = vmatpush.bf16.msra.mxu0 0
      %1341 = vmatpush.bf16.msra.mxu0 0
      %1342 = vmatpush.bf16.msra.mxu0 0
      %1343 = vmatpush.bf16.msra.mxu0 0
      %1344 = vmatpush.bf16.msra.mxu0 0
      %1345 = vmatpush.bf16.msra.mxu0 %v1333
      %1346 = vmatmul.bf16.gmra.mxu0 %v1234
      %v1347 = vpop.f32.mrf.mxu0
      %v1348 = vadd.f32 %v1205, %v1347
      %v1349 = vpop.f32.mrf.mxu0
      %v1350 = vadd.f32 %v1210, %v1349
      %1351 = vmatmul.bf16.gmra.mxu0 %v1237
      %v1352 = vpop.f32.mrf.mxu0
      %v1353 = vadd.f32 %v1215, %v1352
      %v1354 = vpop.f32.mrf.mxu0
      %v1355 = vadd.f32 %v1220, %v1354
      %1356 = vdwg.mxu0
      %1357 = vmatpush.bf16.msra.mxu0 0
      %1358 = vmatpush.bf16.msra.mxu0 0
      %1359 = vmatpush.bf16.msra.mxu0 0
      %1360 = vmatpush.bf16.msra.mxu0 0
      %1361 = vmatpush.bf16.msra.mxu0 0
      %1362 = vmatpush.bf16.msra.mxu0 0
      %1363 = vmatpush.bf16.msra.mxu0 0
      %1364 = vmatpush.bf16.msra.mxu0 %v1336
      %1365 = vmatmul.bf16.gmra.mxu0 %v1234
      %v1366 = vpop.f32.mrf.mxu0
      %v1367 = vadd.f32 %v1205, %v1366
      %v1368 = vpop.f32.mrf.mxu0
      %v1369 = vadd.f32 %v1210, %v1368
      %1370 = vmatmul.bf16.gmra.mxu0 %v1237
      %v1371 = vpop.f32.mrf.mxu0
      %v1372 = vadd.f32 %v1215, %v1371
      %v1373 = vpop.f32.mrf.mxu0
      %v1374 = vadd.f32 %v1220, %v1373
      %1375 = vdwg.mxu0
      %v1376 = vmax.f32 %v1348, 0.0
      %v1377 = vmax.f32 %v1367, 0.0
      %v1378 = vmax.f32 %v1350, 0.0
      %v1379 = vmax.f32 %v1369, 0.0
      %v1380 = vmax.f32 %v1353, 0.0
      %v1381 = vmax.f32 %v1372, 0.0
      %v1382 = vmax.f32 %v1355, 0.0
      %v1383 = vmax.f32 %v1374, 0.0
      %v1384 = vpack.c.bf16 %v1378, %v1376
      %v1385 = vpack.c.bf16 %v1379, %v1377
      %v1386 = vpack.c.bf16 %v1382, %v1380
      %v1387 = vpack.c.bf16 %v1383, %v1381
      %1388 = vmatpush.bf16.xpose.msra.mxu0 0
      %1389 = vmatpush.bf16.xpose.msra.mxu0 0
      %1390 = vmatpush.bf16.xpose.msra.mxu0 0
      %1391 = vmatpush.bf16.xpose.msra.mxu0 0
      %1392 = vmatpush.bf16.xpose.msra.mxu0 0
      %1393 = vmatpush.bf16.xpose.msra.mxu0 0
      %1394 = vmatpush.bf16.xpose.msra.mxu0 %v1386
      %1395 = vmatpush.bf16.xpose.msra.mxu0 %v1384
      %1396 = vmatmul.bf16.gmra.mxu0 998259584
      %v1397 = vpop.f32.mrf.mxu0
      %v1398 = vadd.f32 0.0, %v1397
      %v1399 = vpop.f32.mrf.mxu0
      %1400 = vdwg.mxu0
      %1401 = vmatpush.bf16.xpose.msra.mxu0 0
      %1402 = vmatpush.bf16.xpose.msra.mxu0 0
      %1403 = vmatpush.bf16.xpose.msra.mxu0 0
      %1404 = vmatpush.bf16.xpose.msra.mxu0 0
      %1405 = vmatpush.bf16.xpose.msra.mxu0 0
      %1406 = vmatpush.bf16.xpose.msra.mxu0 0
      %1407 = vmatpush.bf16.xpose.msra.mxu0 %v1387
      %1408 = vmatpush.bf16.xpose.msra.mxu0 %v1385
      %1409 = vmatmul.bf16.gmra.mxu0 998259584
      %v1410 = vpop.f32.mrf.mxu0
      %v1411 = vadd.f32 %v1398, %v1410
      %v1412 = vpop.f32.mrf.mxu0
      %1413 = vdwg.mxu0
      %v1415 = vrot.slane %v1319, 7
      %v1418 = vrot.slane %v1411, 6
      %v1420 = vrot.slane %v1411, 5
      %vm1422 = vcmask 1040384
      %v1423 = vsel %vm1422, %v1319, %v1415
      %v1424 = vsel %vm1239, %v1423, %v1418
      %vm1425 = vcmask 1042432
      %v1426 = vsel %vm1425, %v1424, %v1420
      %v1427 = vld [vmem:[%s5] sm:$0xff]
      %v1428 = vld [vmem:[%s5 + $0x8] sm:$0xff]
      %v1429 = vld [vmem:[%s11] sm:$0xf]
      %v1430 = vpack.c.bf16 %v1428, %v1427
      %v1431 = vld [vmem:[%s13] sm:$0x1]
      %v1433 = vperm.slane %v1431, 0
      %vm1435 = vcmask 64512
      %v1437 = vsel %vm1435, %v1430, 0
      %vm1439 = vcmask 1043456
      %v1441 = vsel %vm1439, %v1429, 0
      %1443 = vmatpush.bf16.msra.mxu0 0
      %1444 = vmatpush.bf16.msra.mxu0 0
      %1445 = vmatpush.bf16.msra.mxu0 0
      %1446 = vmatpush.bf16.msra.mxu0 0
      %1447 = vmatpush.bf16.msra.mxu0 0
      %1448 = vmatpush.bf16.msra.mxu0 0
      %1449 = vmatpush.bf16.msra.mxu0 0
      %1450 = vmatpush.bf16.msra.mxu0 %v1441
      %1451 = vmatmul.bf16.gmra.mxu0 %v1437
      %v1452 = vpop.f32.mrf.mxu0
      %v1453 = vadd.f32 %v1433, %v1452
      %v1454 = vpop.f32.mrf.mxu0
      %v1455 = vadd.f32 %v1433, %v1454
      %1456 = vdwg.mxu0
      %v1457 = vmax.f32 %v1453, 0.0
      %v1458 = vmax.f32 %v1455, 0.0
      %v1459 = vld [vmem:[%s15] sm:$0xf]
      %v1460 = vld [vmem:[%s15 + $0x4] sm:$0xf]
      %v1461 = vld [vmem:[%s15 + $0x8] sm:$0xf]
      %v1462 = vld [vmem:[%s15 + $0xc] sm:$0xf]
      %v1463 = vpack.c.bf16 %v1458, %v1457
      %v1464 = vld [vmem:[%s17] sm:$0x1]
      %v1466 = vperm.slane %v1464, 0
      %v1472 = vunpack.c.l.b16 %v1459
      %v1473 = vunpack.c.l.b16 %v1460
      %v1474 = vunpack.c.l.b16 %v1461
      %v1475 = vunpack.c.l.b16 %v1462
      %v1476 = vpack.c.b16 %v1473, %v1472
      %v1477 = vpack.c.b16 %v1475, %v1474
      %vm1480 = vcmask 261120
      %v1482 = vsel %vm1480, %v1463, 0
      %1484 = vmatpush.bf16.msra.mxu0 0
      %1485 = vmatpush.bf16.msra.mxu0 0
      %1486 = vmatpush.bf16.msra.mxu0 0
      %1487 = vmatpush.bf16.msra.mxu0 0
      %1488 = vmatpush.bf16.msra.mxu0 0
      %1489 = vmatpush.bf16.msra.mxu0 0
      %1490 = vmatpush.bf16.msra.mxu0 %v1477
      %1491 = vmatpush.bf16.msra.mxu0 %v1476
      %1492 = vmatmul.bf16.gmra.mxu0 %v1482
      %v1493 = vpop.f32.mrf.mxu0
      %v1494 = vadd.f32 %v1466, %v1493
      %v1495 = vpop.f32.mrf.mxu0
      %v1496 = vadd.f32 %v1466, %v1495
      %1497 = vdwg.mxu0
      %v1498 = vld [vmem:[%s19] sm:$0xf]
      %v1499 = vld [vmem:[%s19 + $0x4] sm:$0xf]
      %v1500 = vld [vmem:[%s19 + $0x8] sm:$0xf]
      %v1501 = vld [vmem:[%s19 + $0xc] sm:$0xf]
      %v1502 = vpack.c.bf16 %v1426, %v1426
      %v1503 = vld [vmem:[%s21] sm:$0x1]
      %v1505 = vperm.slane %v1503, 0
      %v1511 = vunpack.c.l.b16 %v1498
      %v1512 = vunpack.c.l.b16 %v1499
      %v1513 = vunpack.c.l.b16 %v1500
      %v1514 = vunpack.c.l.b16 %v1501
      %v1515 = vpack.c.b16 %v1512, %v1511
      %v1516 = vpack.c.b16 %v1514, %v1513
      %v1520 = vsel %vm1480, %v1502, 0
      %1522 = vmatpush.bf16.msra.mxu0 0
      %1523 = vmatpush.bf16.msra.mxu0 0
      %1524 = vmatpush.bf16.msra.mxu0 0
      %1525 = vmatpush.bf16.msra.mxu0 0
      %1526 = vmatpush.bf16.msra.mxu0 0
      %1527 = vmatpush.bf16.msra.mxu0 0
      %1528 = vmatpush.bf16.msra.mxu0 %v1516
      %1529 = vmatpush.bf16.msra.mxu0 %v1515
      %1530 = vmatmul.bf16.gmra.mxu0 %v1520
      %v1531 = vpop.f32.mrf.mxu0
      %v1532 = vadd.f32 %v1505, %v1531
      %v1533 = vpop.f32.mrf.mxu0
      %1534 = vdwg.mxu0
      %v1535 = vld [vmem:[%s27] sm:$0xf]
      %v1536 = vld [vmem:[%s27 + $0x4] sm:$0xf]
      %v1537 = vld [vmem:[%s27 + $0x8] sm:$0xf]
      %v1538 = vld [vmem:[%s27 + $0xc] sm:$0xf]
      %v1539 = vpack.c.bf16 %v1532, %v1532
      %v1540 = vld [vmem:[%s29] sm:$0x1]
      %v1542 = vperm.slane %v1540, 0
      %v1548 = vunpack.c.l.b16 %v1535
      %v1549 = vunpack.c.l.b16 %v1536
      %v1550 = vunpack.c.l.b16 %v1537
      %v1551 = vunpack.c.l.b16 %v1538
      %v1552 = vpack.c.b16 %v1549, %v1548
      %v1553 = vpack.c.b16 %v1551, %v1550
      %v1557 = vsel %vm1480, %v1539, 0
      %1559 = vmatpush.bf16.msra.mxu0 0
      %1560 = vmatpush.bf16.msra.mxu0 0
      %1561 = vmatpush.bf16.msra.mxu0 0
      %1562 = vmatpush.bf16.msra.mxu0 0
      %1563 = vmatpush.bf16.msra.mxu0 0
      %1564 = vmatpush.bf16.msra.mxu0 0
      %1565 = vmatpush.bf16.msra.mxu0 %v1553
      %1566 = vmatpush.bf16.msra.mxu0 %v1552
      %1567 = vmatmul.bf16.gmra.mxu0 %v1557
      %v1568 = vpop.f32.mrf.mxu0
      %v1569 = vadd.f32 %v1542, %v1568
      %v1570 = vpop.f32.mrf.mxu0
      %1571 = vdwg.mxu0
      %v1572 = vld [vmem:[%s31] sm:$0xf]
      %v1573 = vld [vmem:[%s31 + $0x4] sm:$0xf]
      %v1574 = vld [vmem:[%s31 + $0x8] sm:$0xf]
      %v1575 = vld [vmem:[%s31 + $0xc] sm:$0xf]
      %v1576 = vld [vmem:[%s33] sm:$0x1]
      %v1578 = vperm.slane %v1576, 0
      %v1584 = vunpack.c.l.b16 %v1572
      %v1585 = vunpack.c.l.b16 %v1573
      %v1586 = vunpack.c.l.b16 %v1574
      %v1587 = vunpack.c.l.b16 %v1575
      %v1588 = vpack.c.b16 %v1585, %v1584
      %v1589 = vpack.c.b16 %v1587, %v1586
      %1592 = vmatpush.bf16.msra.mxu0 0
      %1593 = vmatpush.bf16.msra.mxu0 0
      %1594 = vmatpush.bf16.msra.mxu0 0
      %1595 = vmatpush.bf16.msra.mxu0 0
      %1596 = vmatpush.bf16.msra.mxu0 0
      %1597 = vmatpush.bf16.msra.mxu0 0
      %1598 = vmatpush.bf16.msra.mxu0 %v1589
      %1599 = vmatpush.bf16.msra.mxu0 %v1588
      %1600 = vmatmul.bf16.gmra.mxu0 %v1557
      %v1601 = vpop.f32.mrf.mxu0
      %v1602 = vadd.f32 %v1578, %v1601
      %v1603 = vpop.f32.mrf.mxu0
      %1604 = vdwg.mxu0
      %v1605 = vld [vmem:[%s3] sm:$0xff]
      %v1606 = vld [vmem:[%s3 + $0x8] sm:$0xff]
      %v1607 = vld [vmem:[%s39] sm:$0xf]
      %v1608 = vld [vmem:[%s41] sm:$0x1]
      %v1610 = vperm.slane %v1608, 0
      %v1613 = vsel %vm1439, %v1607, 0
      %1615 = vmatpush.bf16.msra.mxu0 0
      %1616 = vmatpush.bf16.msra.mxu0 0
      %1617 = vmatpush.bf16.msra.mxu0 0
      %1618 = vmatpush.bf16.msra.mxu0 0
      %1619 = vmatpush.bf16.msra.mxu0 0
      %1620 = vmatpush.bf16.msra.mxu0 0
      %1621 = vmatpush.bf16.msra.mxu0 0
      %1622 = vmatpush.bf16.msra.mxu0 %v1613
      %1623 = vmatmul.bf16.gmra.mxu0 %v1437
      %v1624 = vpop.f32.mrf.mxu0
      %v1625 = vadd.f32 %v1610, %v1624
      %v1626 = vpop.f32.mrf.mxu0
      %v1627 = vadd.f32 %v1610, %v1626
      %1628 = vdwg.mxu0
      %v1629 = vtanh.pop %v1625
      %v1630 = vtanh.pop %v1627
      %v1631 = vadd.f32 %v1605, %v1494
      %v1632 = vadd.f32 %v1606, %v1496
      %v1633 = vld [vmem:[%s23] sm:$0xf]
      %v1634 = vld [vmem:[%s23 + $0x4] sm:$0xf]
      %v1635 = vld [vmem:[%s23 + $0x8] sm:$0xf]
      %v1636 = vld [vmem:[%s23 + $0xc] sm:$0xf]
      %v1637 = vpack.c.bf16 %v1632, %v1631
      %v1638 = vld [vmem:[%s25] sm:$0x1]
      %v1640 = vperm.slane %v1638, 0
      %v1646 = vunpack.c.l.b16 %v1633
      %v1647 = vunpack.c.l.b16 %v1634
      %v1648 = vunpack.c.l.b16 %v1635
      %v1649 = vunpack.c.l.b16 %v1636
      %v1650 = vpack.c.b16 %v1647, %v1646
      %v1651 = vpack.c.b16 %v1649, %v1648
      %v1655 = vsel %vm1480, %v1637, 0
      %1657 = vmatpush.bf16.msra.mxu0 0
      %1658 = vmatpush.bf16.msra.mxu0 0
      %1659 = vmatpush.bf16.msra.mxu0 0
      %1660 = vmatpush.bf16.msra.mxu0 0
      %1661 = vmatpush.bf16.msra.mxu0 0
      %1662 = vmatpush.bf16.msra.mxu0 0
      %1663 = vmatpush.bf16.msra.mxu0 %v1651
      %1664 = vmatpush.bf16.msra.mxu0 %v1650
      %1665 = vmatmul.bf16.gmra.mxu0 %v1655
      %v1666 = vpop.f32.mrf.mxu0
      %v1667 = vadd.f32 %v1640, %v1666
      %v1668 = vpop.f32.mrf.mxu0
      %v1669 = vadd.f32 %v1640, %v1668
      %1670 = vdwg.mxu0
      %v1671 = vpack.c.bf16 %v1669, %v1667
      %v1672 = vpack.c.bf16 %v1569, %v1569
      %v1674 = vsel %vm1435, %v1671, 0
      %v1677 = vsel %vm1435, %v1672, 0
      %1679 = vmatpush.bf16.xpose.msra.mxu0 0
      %1680 = vmatpush.bf16.xpose.msra.mxu0 0
      %1681 = vmatpush.bf16.xpose.msra.mxu0 0
      %1682 = vmatpush.bf16.xpose.msra.mxu0 0
      %1683 = vmatpush.bf16.xpose.msra.mxu0 0
      %1684 = vmatpush.bf16.xpose.msra.mxu0 0
      %1685 = vmatpush.bf16.xpose.msra.mxu0 0
      %1686 = vmatpush.bf16.xpose.msra.mxu0 %v1677
      %1687 = vmatmul.bf16.gmra.mxu0 %v1674
      %v1688 = vpop.f32.mrf.mxu0
      %v1689 = vadd.f32 0.0, %v1688
      %v1690 = vpop.f32.mrf.mxu0
      %v1691 = vadd.f32 0.0, %v1690
      %1692 = vdwg.mxu0
      %1694 = vrot.lane.b32.xlu0 %v1671, 120
      %v1695 = vpop.permute.xlu0 %1694
      %1697 = vrot.lane.b32.xlu0 %v1672, 120
      %v1698 = vpop.permute.xlu0 %1697
      %v1700 = vsel %vm1435, %v1695, 0
      %v1703 = vsel %vm1435, %v1698, 0
      %1705 = vmatpush.bf16.xpose.msra.mxu0 0
      %1706 = vmatpush.bf16.xpose.msra.mxu0 0
      %1707 = vmatpush.bf16.xpose.msra.mxu0 0
      %1708 = vmatpush.bf16.xpose.msra.mxu0 0
      %1709 = vmatpush.bf16.xpose.msra.mxu0 0
      %1710 = vmatpush.bf16.xpose.msra.mxu0 0
      %1711 = vmatpush.bf16.xpose.msra.mxu0 0
      %1712 = vmatpush.bf16.xpose.msra.mxu0 %v1703
      %1713 = vmatmul.bf16.gmra.mxu0 %v1700
      %v1714 = vpop.f32.mrf.mxu0
      %v1715 = vadd.f32 0.0, %v1714
      %v1716 = vpop.f32.mrf.mxu0
      %v1717 = vadd.f32 0.0, %v1716
      %1718 = vdwg.mxu0
      %1719 = vrot.lane.b32.xlu0 %v1671, 112
      %v1720 = vpop.permute.xlu0 %1719
      %1721 = vrot.lane.b32.xlu0 %v1672, 112
      %v1722 = vpop.permute.xlu0 %1721
      %v1724 = vsel %vm1435, %v1720, 0
      %v1727 = vsel %vm1435, %v1722, 0
      %1729 = vmatpush.bf16.xpose.msra.mxu0 0
      %1730 = vmatpush.bf16.xpose.msra.mxu0 0
      %1731 = vmatpush.bf16.xpose.msra.mxu0 0
      %1732 = vmatpush.bf16.xpose.msra.mxu0 0
      %1733 = vmatpush.bf16.xpose.msra.mxu0 0
      %1734 = vmatpush.bf16.xpose.msra.mxu0 0
      %1735 = vmatpush.bf16.xpose.msra.mxu0 0
      %1736 = vmatpush.bf16.xpose.msra.mxu0 %v1727
      %1737 = vmatmul.bf16.gmra.mxu0 %v1724
      %v1738 = vpop.f32.mrf.mxu0
      %v1739 = vadd.f32 0.0, %v1738
      %v1740 = vpop.f32.mrf.mxu0
      %v1741 = vadd.f32 0.0, %v1740
      %1742 = vdwg.mxu0
      %1743 = vrot.lane.b32.xlu0 %v1671, 104
      %v1744 = vpop.permute.xlu0 %1743
      %1745 = vrot.lane.b32.xlu0 %v1672, 104
      %v1746 = vpop.permute.xlu0 %1745
      %v1748 = vsel %vm1435, %v1744, 0
      %v1751 = vsel %vm1435, %v1746, 0
      %1753 = vmatpush.bf16.xpose.msra.mxu0 0
      %1754 = vmatpush.bf16.xpose.msra.mxu0 0
      %1755 = vmatpush.bf16.xpose.msra.mxu0 0
      %1756 = vmatpush.bf16.xpose.msra.mxu0 0
      %1757 = vmatpush.bf16.xpose.msra.mxu0 0
      %1758 = vmatpush.bf16.xpose.msra.mxu0 0
      %1759 = vmatpush.bf16.xpose.msra.mxu0 0
      %1760 = vmatpush.bf16.xpose.msra.mxu0 %v1751
      %1761 = vmatmul.bf16.gmra.mxu0 %v1748
      %v1762 = vpop.f32.mrf.mxu0
      %v1763 = vadd.f32 0.0, %v1762
      %v1764 = vpop.f32.mrf.mxu0
      %v1765 = vadd.f32 0.0, %v1764
      %1766 = vdwg.mxu0
      %v1767 = vmul.f32 %v1689, 0.35355338
      %v1768 = vmul.f32 %v1691, 0.35355338
      %v1769 = vmul.f32 %v1715, 0.35355338
      %v1770 = vmul.f32 %v1717, 0.35355338
      %v1771 = vmul.f32 %v1739, 0.35355338
      %v1772 = vmul.f32 %v1741, 0.35355338
      %v1773 = vmul.f32 %v1763, 0.35355338
      %v1774 = vmul.f32 %v1765, 0.35355338
      %v1775 = vsel %vm1232, %v1767, -inf
      %1776 = vmax.xlane.f32.xlu0 %v1775
      %v1777 = vpop.xlane.xlu0 %1776
      %v1778 = vsel %vm1232, %v1768, -inf
      %1779 = vmax.xlane.f32.xlu0 %v1778
      %v1780 = vpop.xlane.xlu0 %1779
      %v1781 = vsel %vm1232, %v1769, -inf
      %1782 = vmax.xlane.f32.xlu0 %v1781
      %v1783 = vpop.xlane.xlu0 %1782
      %v1784 = vsel %vm1232, %v1770, -inf
      %1785 = vmax.xlane.f32.xlu0 %v1784
      %v1786 = vpop.xlane.xlu0 %1785
      %v1787 = vsel %vm1232, %v1771, -inf
      %1788 = vmax.xlane.f32.xlu0 %v1787
      %v1789 = vpop.xlane.xlu0 %1788
      %v1790 = vsel %vm1232, %v1772, -inf
      %1791 = vmax.xlane.f32.xlu0 %v1790
      %v1792 = vpop.xlane.xlu0 %1791
      %v1793 = vsel %vm1232, %v1773, -inf
      %1794 = vmax.xlane.f32.xlu0 %v1793
      %v1795 = vpop.xlane.xlu0 %1794
      %v1796 = vsel %vm1232, %v1774, -inf
      %1797 = vmax.xlane.f32.xlu0 %v1796
      %v1798 = vpop.xlane.xlu0 %1797
      %v1799 = vsub.f32 %v1767, %v1777
      %v1800 = vsub.f32 %v1768, %v1780
      %v1801 = vsub.f32 %v1769, %v1783
      %v1802 = vsub.f32 %v1770, %v1786
      %v1803 = vsub.f32 %v1771, %v1789
      %v1804 = vsub.f32 %v1772, %v1792
      %v1805 = vsub.f32 %v1773, %v1795
      %v1806 = vsub.f32 %v1774, %v1798
      %v1807 = vmul.f32 %v1799, 1.442695
      %v1808 = vpow.pop %v1807
      %v1809 = vmul.f32 %v1800, 1.442695
      %v1810 = vpow.pop %v1809
      %v1811 = vmul.f32 %v1801, 1.442695
      %v1812 = vpow.pop %v1811
      %v1813 = vmul.f32 %v1802, 1.442695
      %v1814 = vpow.pop %v1813
      %v1815 = vmul.f32 %v1803, 1.442695
      %v1816 = vpow.pop %v1815
      %v1817 = vmul.f32 %v1804, 1.442695
      %v1818 = vpow.pop %v1817
      %v1819 = vmul.f32 %v1805, 1.442695
      %v1820 = vpow.pop %v1819
      %v1821 = vmul.f32 %v1806, 1.442695
      %v1822 = vpow.pop %v1821
      %v1823 = vsel %vm1232, %v1808, 0.0
      %1824 = vadd.xlane.f32.xlu0 %v1823
      %v1825 = vpop.xlane.xlu0 %1824
      %v1826 = vsel %vm1232, %v1810, 0.0
      %1827 = vadd.xlane.f32.xlu0 %v1826
      %v1828 = vpop.xlane.xlu0 %1827
      %v1829 = vsel %vm1232, %v1812, 0.0
      %1830 = vadd.xlane.f32.xlu0 %v1829
      %v1831 = vpop.xlane.xlu0 %1830
      %v1832 = vsel %vm1232, %v1814, 0.0
      %1833 = vadd.xlane.f32.xlu0 %v1832
      %v1834 = vpop.xlane.xlu0 %1833
      %v1835 = vsel %vm1232, %v1816, 0.0
      %1836 = vadd.xlane.f32.xlu0 %v1835
      %v1837 = vpop.xlane.xlu0 %1836
      %v1838 = vsel %vm1232, %v1818, 0.0
      %1839 = vadd.xlane.f32.xlu0 %v1838
      %v1840 = vpop.xlane.xlu0 %1839
      %v1841 = vsel %vm1232, %v1820, 0.0
      %1842 = vadd.xlane.f32.xlu0 %v1841
      %v1843 = vpop.xlane.xlu0 %1842
      %v1844 = vsel %vm1232, %v1822, 0.0
      %1845 = vadd.xlane.f32.xlu0 %v1844
      %v1846 = vpop.xlane.xlu0 %1845
      %v1847 = vrcp.pop %v1825
      %v1848 = vrcp.pop %v1828
      %v1849 = vrcp.pop %v1831
      %v1850 = vrcp.pop %v1834
      %v1851 = vrcp.pop %v1837
      %v1852 = vrcp.pop %v1840
      %v1853 = vrcp.pop %v1843
      %v1854 = vrcp.pop %v1846
      %v1855 = vmul.f32 %v1808, %v1847
      %v1856 = vmul.f32 %v1810, %v1848
      %v1857 = vmul.f32 %v1812, %v1849
      %v1858 = vmul.f32 %v1814, %v1850
      %v1859 = vmul.f32 %v1816, %v1851
      %v1860 = vmul.f32 %v1818, %v1852
      %v1861 = vmul.f32 %v1820, %v1853
      %v1862 = vmul.f32 %v1822, %v1854
      %v1863 = vpack.c.bf16 %v1856, %v1855
      %v1864 = vpack.c.bf16 %v1602, %v1602
      %v1866 = vsel %vm1232, %v1863, 0
      %v1869 = vsel %vm1239, %v1864, 0
      %1871 = vmatpush.bf16.msra.mxu0 0
      %1872 = vmatpush.bf16.msra.mxu0 0
      %1873 = vmatpush.bf16.msra.mxu0 0
      %1874 = vmatpush.bf16.msra.mxu0 0
      %1875 = vmatpush.bf16.msra.mxu0 0
      %1876 = vmatpush.bf16.msra.mxu0 0
      %1877 = vmatpush.bf16.msra.mxu0 0
      %1878 = vmatpush.bf16.msra.mxu0 %v1869
      %1879 = vmatmul.bf16.gmra.mxu0 %v1866
      %v1880 = vpop.f32.mrf.mxu0
      %v1881 = vadd.f32 0.0, %v1880
      %v1882 = vpop.f32.mrf.mxu0
      %v1883 = vadd.f32 0.0, %v1882
      %1884 = vdwg.mxu0
      %v1885 = vpack.c.bf16 %v1858, %v1857
      %1887 = vrot.lane.b32.xlu0 %v1864, 120
      %v1888 = vpop.permute.xlu0 %1887
      %v1890 = vsel %vm1232, %v1885, 0
      %v1893 = vsel %vm1239, %v1888, 0
      %1895 = vmatpush.bf16.msra.mxu0 0
      %1896 = vmatpush.bf16.msra.mxu0 0
      %1897 = vmatpush.bf16.msra.mxu0 0
      %1898 = vmatpush.bf16.msra.mxu0 0
      %1899 = vmatpush.bf16.msra.mxu0 0
      %1900 = vmatpush.bf16.msra.mxu0 0
      %1901 = vmatpush.bf16.msra.mxu0 0
      %1902 = vmatpush.bf16.msra.mxu0 %v1893
      %1903 = vmatmul.bf16.gmra.mxu0 %v1890
      %v1904 = vpop.f32.mrf.mxu0
      %v1905 = vadd.f32 0.0, %v1904
      %v1906 = vpop.f32.mrf.mxu0
      %v1907 = vadd.f32 0.0, %v1906
      %1908 = vdwg.mxu0
      %v1909 = vpack.c.bf16 %v1860, %v1859
      %1910 = vrot.lane.b32.xlu0 %v1864, 112
      %v1911 = vpop.permute.xlu0 %1910
      %v1913 = vsel %vm1232, %v1909, 0
      %v1916 = vsel %vm1239, %v1911, 0
      %1918 = vmatpush.bf16.msra.mxu0 0
      %1919 = vmatpush.bf16.msra.mxu0 0
      %1920 = vmatpush.bf16.msra.mxu0 0
      %1921 = vmatpush.bf16.msra.mxu0 0
      %1922 = vmatpush.bf16.msra.mxu0 0
      %1923 = vmatpush.bf16.msra.mxu0 0
      %1924 = vmatpush.bf16.msra.mxu0 0
      %1925 = vmatpush.bf16.msra.mxu0 %v1916
      %1926 = vmatmul.bf16.gmra.mxu0 %v1913
      %v1927 = vpop.f32.mrf.mxu0
      %v1928 = vadd.f32 0.0, %v1927
      %v1929 = vpop.f32.mrf.mxu0
      %v1930 = vadd.f32 0.0, %v1929
      %1931 = vdwg.mxu0
      %v1932 = vpack.c.bf16 %v1862, %v1861
      %1933 = vrot.lane.b32.xlu0 %v1864, 104
      %v1934 = vpop.permute.xlu0 %1933
      %v1936 = vsel %vm1232, %v1932, 0
      %v1939 = vsel %vm1239, %v1934, 0
      %1941 = vmatpush.bf16.msra.mxu0 0
      %1942 = vmatpush.bf16.msra.mxu0 0
      %1943 = vmatpush.bf16.msra.mxu0 0
      %1944 = vmatpush.bf16.msra.mxu0 0
      %1945 = vmatpush.bf16.msra.mxu0 0
      %1946 = vmatpush.bf16.msra.mxu0 0
      %1947 = vmatpush.bf16.msra.mxu0 0
      %1948 = vmatpush.bf16.msra.mxu0 %v1939
      %1949 = vmatmul.bf16.gmra.mxu0 %v1936
      %v1950 = vpop.f32.mrf.mxu0
      %v1951 = vadd.f32 0.0, %v1950
      %v1952 = vpop.f32.mrf.mxu0
      %v1953 = vadd.f32 0.0, %v1952
      %1954 = vdwg.mxu0
      %1957 = vrot.lane.b32.xlu0 %v1905, 8
      %v1958 = vpop.permute.xlu0 %1957
      %1959 = vrot.lane.b32.xlu0 %v1907, 8
      %v1960 = vpop.permute.xlu0 %1959
      %1965 = vrot.lane.b32.xlu0 %v1928, 16
      %v1966 = vpop.permute.xlu0 %1965
      %1967 = vrot.lane.b32.xlu0 %v1930, 16
      %v1968 = vpop.permute.xlu0 %1967
      %1973 = vrot.lane.b32.xlu0 %v1951, 24
      %v1974 = vpop.permute.xlu0 %1973
      %1975 = vrot.lane.b32.xlu0 %v1953, 24
      %v1976 = vpop.permute.xlu0 %1975
      %v1979 = vsel %vm1435, %v1881, %v1958
      %v1980 = vsel %vm1435, %v1883, %v1960
      %vm1981 = vcmask 130048
      %v1982 = vsel %vm1981, %v1979, %v1966
      %v1983 = vsel %vm1981, %v1980, %v1968
      %vm1984 = vcmask 195584
      %v1985 = vsel %vm1984, %v1982, %v1974
      %v1986 = vsel %vm1984, %v1983, %v1976
      %v1987 = vld [vmem:[%s35] sm:$0xf]
      %v1988 = vld [vmem:[%s35 + $0x4] sm:$0xf]
      %v1989 = vld [vmem:[%s35 + $0x8] sm:$0xf]
      %v1990 = vld [vmem:[%s35 + $0xc] sm:$0xf]
      %v1991 = vpack.c.bf16 %v1986, %v1985
      %v1996 = vunpack.c.l.b16 %v1987
      %v1997 = vunpack.c.l.b16 %v1988
      %v1998 = vunpack.c.l.b16 %v1989
      %v1999 = vunpack.c.l.b16 %v1990
      %v2000 = vpack.c.b16 %v1997, %v1996
      %v2001 = vpack.c.b16 %v1999, %v1998
      %v2005 = vsel %vm1480, %v1991, 0
      %2007 = vmatpush.bf16.msra.mxu0 0
      %2008 = vmatpush.bf16.msra.mxu0 0
      %2009 = vmatpush.bf16.msra.mxu0 0
      %2010 = vmatpush.bf16.msra.mxu0 0
      %2011 = vmatpush.bf16.msra.mxu0 0
      %2012 = vmatpush.bf16.msra.mxu0 0
      %2013 = vmatpush.bf16.msra.mxu0 %v2001
      %2014 = vmatpush.bf16.msra.mxu0 %v2000
      %2015 = vmatmul.bf16.gmra.mxu0 %v2005
      %v2016 = vpop.f32.mrf.mxu0
      %v2017 = vadd.f32 0.0, %v2016
      %v2018 = vpop.f32.mrf.mxu0
      %v2019 = vadd.f32 0.0, %v2018
      %2020 = vdwg.mxu0
      %v2021 = vadd.f32 %v1605, %v2017
      %v2022 = vadd.f32 %v1606, %v2019
      %v2023 = vld [vmem:[%s37] sm:$0x1]
      %v2025 = vperm.slane %v2023, 0
      %v2027 = vadd.f32 %v2021, %v2025
      %v2028 = vadd.f32 %v2022, %v2025
      %v2029 = vadd.f32 %v2027, %v1494
      %v2030 = vadd.f32 %v2028, %v1496
      %v2031 = vld [vmem:[%s43] sm:$0xf]
      %v2032 = vld [vmem:[%s43 + $0x4] sm:$0xf]
      %v2033 = vld [vmem:[%s43 + $0x8] sm:$0xf]
      %v2034 = vld [vmem:[%s43 + $0xc] sm:$0xf]
      %v2035 = vpack.c.bf16 %v2030, %v2029
      %v2036 = vld [vmem:[%s45] sm:$0x1]
      %v2038 = vperm.slane %v2036, 0
      %v2044 = vunpack.c.l.b16 %v2031
      %v2045 = vunpack.c.l.b16 %v2032
      %v2046 = vunpack.c.l.b16 %v2033
      %v2047 = vunpack.c.l.b16 %v2034
      %v2048 = vpack.c.b16 %v2045, %v2044
      %v2049 = vpack.c.b16 %v2047, %v2046
      %v2053 = vsel %vm1480, %v2035, 0
      %2055 = vmatpush.bf16.msra.mxu0 0
      %2056 = vmatpush.bf16.msra.mxu0 0
      %2057 = vmatpush.bf16.msra.mxu0 0
      %2058 = vmatpush.bf16.msra.mxu0 0
      %2059 = vmatpush.bf16.msra.mxu0 0
      %2060 = vmatpush.bf16.msra.mxu0 0
      %2061 = vmatpush.bf16.msra.mxu0 %v2049
      %2062 = vmatpush.bf16.msra.mxu0 %v2048
      %2063 = vmatmul.bf16.gmra.mxu0 %v2053
      %v2064 = vpop.f32.mrf.mxu0
      %v2065 = vadd.f32 %v2038, %v2064
      %v2066 = vpop.f32.mrf.mxu0
      %v2067 = vadd.f32 %v2038, %v2066
      %2068 = vdwg.mxu0
      %v2069 = vld [vmem:[%s47] sm:$0xf]
      %v2070 = vld [vmem:[%s47 + $0x4] sm:$0xf]
      %v2071 = vld [vmem:[%s47 + $0x8] sm:$0xf]
      %v2072 = vld [vmem:[%s47 + $0xc] sm:$0xf]
      %v2073 = vld [vmem:[%s49] sm:$0x1]
      %v2075 = vperm.slane %v2073, 0
      %v2081 = vunpack.c.l.b16 %v2069
      %v2082 = vunpack.c.l.b16 %v2070
      %v2083 = vunpack.c.l.b16 %v2071
      %v2084 = vunpack.c.l.b16 %v2072
      %v2085 = vpack.c.b16 %v2082, %v2081
      %v2086 = vpack.c.b16 %v2084, %v2083
      %2089 = vmatpush.bf16.msra.mxu0 0
      %2090 = vmatpush.bf16.msra.mxu0 0
      %2091 = vmatpush.bf16.msra.mxu0 0
      %2092 = vmatpush.bf16.msra.mxu0 0
      %2093 = vmatpush.bf16.msra.mxu0 0
      %2094 = vmatpush.bf16.msra.mxu0 0
      %2095 = vmatpush.bf16.msra.mxu0 %v2086
      %2096 = vmatpush.bf16.msra.mxu0 %v2085
      %2097 = vmatmul.bf16.gmra.mxu0 %v2053
      %v2098 = vpop.f32.mrf.mxu0
      %v2099 = vadd.f32 %v2075, %v2098
      %v2100 = vpop.f32.mrf.mxu0
      %v2101 = vadd.f32 %v2075, %v2100
      %2102 = vdwg.mxu0
      %v2103 = vld [vmem:[%s51] sm:$0xf]
      %v2104 = vld [vmem:[%s51 + $0x4] sm:$0xf]
      %v2105 = vld [vmem:[%s51 + $0x8] sm:$0xf]
      %v2106 = vld [vmem:[%s51 + $0xc] sm:$0xf]
      %v2107 = vpack.c.bf16 %v2028, %v2027
      %v2108 = vld [vmem:[%s53] sm:$0x1]
      %v2110 = vperm.slane %v2108, 0
      %v2116 = vunpack.c.l.b16 %v2103
      %v2117 = vunpack.c.l.b16 %v2104
      %v2118 = vunpack.c.l.b16 %v2105
      %v2119 = vunpack.c.l.b16 %v2106
      %v2120 = vpack.c.b16 %v2117, %v2116
      %v2121 = vpack.c.b16 %v2119, %v2118
      %v2125 = vsel %vm1480, %v2107, 0
      %2127 = vmatpush.bf16.msra.mxu0 0
      %2128 = vmatpush.bf16.msra.mxu0 0
      %2129 = vmatpush.bf16.msra.mxu0 0
      %2130 = vmatpush.bf16.msra.mxu0 0
      %2131 = vmatpush.bf16.msra.mxu0 0
      %2132 = vmatpush.bf16.msra.mxu0 0
      %2133 = vmatpush.bf16.msra.mxu0 %v2121
      %2134 = vmatpush.bf16.msra.mxu0 %v2120
      %2135 = vmatmul.bf16.gmra.mxu0 %v2125
      %v2136 = vpop.f32.mrf.mxu0
      %v2137 = vadd.f32 %v2110, %v2136
      %v2138 = vpop.f32.mrf.mxu0
      %v2139 = vadd.f32 %v2110, %v2138
      %2140 = vdwg.mxu0
      %v2141 = vpack.c.bf16 %v2067, %v2065
      %v2142 = vpack.c.bf16 %v2101, %v2099
      %v2144 = vsel %vm1435, %v2141, 0
      %v2147 = vsel %vm1435, %v2142, 0
      %2149 = vmatpush.bf16.xpose.msra.mxu0 0
      %2150 = vmatpush.bf16.xpose.msra.mxu0 0
      %2151 = vmatpush.bf16.xpose.msra.mxu0 0
      %2152 = vmatpush.bf16.xpose.msra.mxu0 0
      %2153 = vmatpush.bf16.xpose.msra.mxu0 0
      %2154 = vmatpush.bf16.xpose.msra.mxu0 0
      %2155 = vmatpush.bf16.xpose.msra.mxu0 0
      %2156 = vmatpush.bf16.xpose.msra.mxu0 %v2147
      %2157 = vmatmul.bf16.gmra.mxu0 %v2144
      %v2158 = vpop.f32.mrf.mxu0
      %v2159 = vadd.f32 0.0, %v2158
      %v2160 = vpop.f32.mrf.mxu0
      %v2161 = vadd.f32 0.0, %v2160
      %2162 = vdwg.mxu0
      %2164 = vrot.lane.b32.xlu0 %v2141, 120
      %v2165 = vpop.permute.xlu0 %2164
      %2167 = vrot.lane.b32.xlu0 %v2142, 120
      %v2168 = vpop.permute.xlu0 %2167
      %v2170 = vsel %vm1435, %v2165, 0
      %v2173 = vsel %vm1435, %v2168, 0
      %2175 = vmatpush.bf16.xpose.msra.mxu0 0
      %2176 = vmatpush.bf16.xpose.msra.mxu0 0
      %2177 = vmatpush.bf16.xpose.msra.mxu0 0
      %2178 = vmatpush.bf16.xpose.msra.mxu0 0
      %2179 = vmatpush.bf16.xpose.msra.mxu0 0
      %2180 = vmatpush.bf16.xpose.msra.mxu0 0
      %2181 = vmatpush.bf16.xpose.msra.mxu0 0
      %2182 = vmatpush.bf16.xpose.msra.mxu0 %v2173
      %2183 = vmatmul.bf16.gmra.mxu0 %v2170
      %v2184 = vpop.f32.mrf.mxu0
      %v2185 = vadd.f32 0.0, %v2184
      %v2186 = vpop.f32.mrf.mxu0
      %v2187 = vadd.f32 0.0, %v2186
      %2188 = vdwg.mxu0
      %2189 = vrot.lane.b32.xlu0 %v2141, 112
      %v2190 = vpop.permute.xlu0 %2189
      %2191 = vrot.lane.b32.xlu0 %v2142, 112
      %v2192 = vpop.permute.xlu0 %2191
      %v2194 = vsel %vm1435, %v2190, 0
      %v2197 = vsel %vm1435, %v2192, 0
      %2199 = vmatpush.bf16.xpose.msra.mxu0 0
      %2200 = vmatpush.bf16.xpose.msra.mxu0 0
      %2201 = vmatpush.bf16.xpose.msra.mxu0 0
      %2202 = vmatpush.bf16.xpose.msra.mxu0 0
      %2203 = vmatpush.bf16.xpose.msra.mxu0 0
      %2204 = vmatpush.bf16.xpose.msra.mxu0 0
      %2205 = vmatpush.bf16.xpose.msra.mxu0 0
      %2206 = vmatpush.bf16.xpose.msra.mxu0 %v2197
      %2207 = vmatmul.bf16.gmra.mxu0 %v2194
      %v2208 = vpop.f32.mrf.mxu0
      %v2209 = vadd.f32 0.0, %v2208
      %v2210 = vpop.f32.mrf.mxu0
      %v2211 = vadd.f32 0.0, %v2210
      %2212 = vdwg.mxu0
      %2213 = vrot.lane.b32.xlu0 %v2141, 104
      %v2214 = vpop.permute.xlu0 %2213
      %2215 = vrot.lane.b32.xlu0 %v2142, 104
      %v2216 = vpop.permute.xlu0 %2215
      %v2218 = vsel %vm1435, %v2214, 0
      %v2221 = vsel %vm1435, %v2216, 0
      %2223 = vmatpush.bf16.xpose.msra.mxu0 0
      %2224 = vmatpush.bf16.xpose.msra.mxu0 0
      %2225 = vmatpush.bf16.xpose.msra.mxu0 0
      %2226 = vmatpush.bf16.xpose.msra.mxu0 0
      %2227 = vmatpush.bf16.xpose.msra.mxu0 0
      %2228 = vmatpush.bf16.xpose.msra.mxu0 0
      %2229 = vmatpush.bf16.xpose.msra.mxu0 0
      %2230 = vmatpush.bf16.xpose.msra.mxu0 %v2221
      %2231 = vmatmul.bf16.gmra.mxu0 %v2218
      %v2232 = vpop.f32.mrf.mxu0
      %v2233 = vadd.f32 0.0, %v2232
      %v2234 = vpop.f32.mrf.mxu0
      %v2235 = vadd.f32 0.0, %v2234
      %2236 = vdwg.mxu0
      %v2237 = vmul.f32 %v2159, 0.35355338
      %v2238 = vmul.f32 %v2161, 0.35355338
      %v2239 = vmul.f32 %v2185, 0.35355338
      %v2240 = vmul.f32 %v2187, 0.35355338
      %v2241 = vmul.f32 %v2209, 0.35355338
      %v2242 = vmul.f32 %v2211, 0.35355338
      %v2243 = vmul.f32 %v2233, 0.35355338
      %v2244 = vmul.f32 %v2235, 0.35355338
      %v2245 = vsel %vm1981, %v2237, -inf
      %2246 = vmax.xlane.f32.xlu0 %v2245
      %v2247 = vpop.xlane.xlu0 %2246
      %v2248 = vsel %vm1981, %v2238, -inf
      %2249 = vmax.xlane.f32.xlu0 %v2248
      %v2250 = vpop.xlane.xlu0 %2249
      %v2251 = vsel %vm1981, %v2239, -inf
      %2252 = vmax.xlane.f32.xlu0 %v2251
      %v2253 = vpop.xlane.xlu0 %2252
      %v2254 = vsel %vm1981, %v2240, -inf
      %2255 = vmax.xlane.f32.xlu0 %v2254
      %v2256 = vpop.xlane.xlu0 %2255
      %v2257 = vsel %vm1981, %v2241, -inf
      %2258 = vmax.xlane.f32.xlu0 %v2257
      %v2259 = vpop.xlane.xlu0 %2258
      %v2260 = vsel %vm1981, %v2242, -inf
      %2261 = vmax.xlane.f32.xlu0 %v2260
      %v2262 = vpop.xlane.xlu0 %2261
      %v2263 = vsel %vm1981, %v2243, -inf
      %2264 = vmax.xlane.f32.xlu0 %v2263
      %v2265 = vpop.xlane.xlu0 %2264
      %v2266 = vsel %vm1981, %v2244, -inf
      %2267 = vmax.xlane.f32.xlu0 %v2266
      %v2268 = vpop.xlane.xlu0 %2267
      %v2269 = vsub.f32 %v2237, %v2247
      %v2270 = vsub.f32 %v2238, %v2250
      %v2271 = vsub.f32 %v2239, %v2253
      %v2272 = vsub.f32 %v2240, %v2256
      %v2273 = vsub.f32 %v2241, %v2259
      %v2274 = vsub.f32 %v2242, %v2262
      %v2275 = vsub.f32 %v2243, %v2265
      %v2276 = vsub.f32 %v2244, %v2268
      %v2277 = vmul.f32 %v2269, 1.442695
      %v2278 = vpow.pop %v2277
      %v2279 = vmul.f32 %v2270, 1.442695
      %v2280 = vpow.pop %v2279
      %v2281 = vmul.f32 %v2271, 1.442695
      %v2282 = vpow.pop %v2281
      %v2283 = vmul.f32 %v2272, 1.442695
      %v2284 = vpow.pop %v2283
      %v2285 = vmul.f32 %v2273, 1.442695
      %v2286 = vpow.pop %v2285
      %v2287 = vmul.f32 %v2274, 1.442695
      %v2288 = vpow.pop %v2287
      %v2289 = vmul.f32 %v2275, 1.442695
      %v2290 = vpow.pop %v2289
      %v2291 = vmul.f32 %v2276, 1.442695
      %v2292 = vpow.pop %v2291
      %v2293 = vsel %vm1981, %v2278, 0.0
      %2294 = vadd.xlane.f32.xlu0 %v2293
      %v2295 = vpop.xlane.xlu0 %2294
      %v2296 = vsel %vm1981, %v2280, 0.0
      %2297 = vadd.xlane.f32.xlu0 %v2296
      %v2298 = vpop.xlane.xlu0 %2297
      %v2299 = vsel %vm1981, %v2282, 0.0
      %2300 = vadd.xlane.f32.xlu0 %v2299
      %v2301 = vpop.xlane.xlu0 %2300
      %v2302 = vsel %vm1981, %v2284, 0.0
      %2303 = vadd.xlane.f32.xlu0 %v2302
      %v2304 = vpop.xlane.xlu0 %2303
      %v2305 = vsel %vm1981, %v2286, 0.0
      %2306 = vadd.xlane.f32.xlu0 %v2305
      %v2307 = vpop.xlane.xlu0 %2306
      %v2308 = vsel %vm1981, %v2288, 0.0
      %2309 = vadd.xlane.f32.xlu0 %v2308
      %v2310 = vpop.xlane.xlu0 %2309
      %v2311 = vsel %vm1981, %v2290, 0.0
      %2312 = vadd.xlane.f32.xlu0 %v2311
      %v2313 = vpop.xlane.xlu0 %2312
      %v2314 = vsel %vm1981, %v2292, 0.0
      %2315 = vadd.xlane.f32.xlu0 %v2314
      %v2316 = vpop.xlane.xlu0 %2315
      %v2317 = vrcp.pop %v2295
      %v2318 = vrcp.pop %v2298
      %v2319 = vrcp.pop %v2301
      %v2320 = vrcp.pop %v2304
      %v2321 = vrcp.pop %v2307
      %v2322 = vrcp.pop %v2310
      %v2323 = vrcp.pop %v2313
      %v2324 = vrcp.pop %v2316
      %v2325 = vmul.f32 %v2278, %v2317
      %v2326 = vmul.f32 %v2280, %v2318
      %v2327 = vmul.f32 %v2282, %v2319
      %v2328 = vmul.f32 %v2284, %v2320
      %v2329 = vmul.f32 %v2286, %v2321
      %v2330 = vmul.f32 %v2288, %v2322
      %v2331 = vmul.f32 %v2290, %v2323
      %v2332 = vmul.f32 %v2292, %v2324
      %v2333 = vpack.c.bf16 %v2326, %v2325
      %v2334 = vpack.c.bf16 %v2139, %v2137
      %v2336 = vsel %vm1981, %v2333, 0
      %2338 = vmatpush.bf16.msra.mxu0 0
      %2339 = vmatpush.bf16.msra.mxu0 0
      %2340 = vmatpush.bf16.msra.mxu0 0
      %2341 = vmatpush.bf16.msra.mxu0 0
      %2342 = vmatpush.bf16.msra.mxu0 0
      %2343 = vmatpush.bf16.msra.mxu0 0
      %2344 = vmatpush.bf16.msra.mxu0 0
      %2345 = vmatpush.bf16.msra.mxu0 %v2334
      %2346 = vmatmul.bf16.gmra.mxu0 %v2336
      %v2347 = vpop.f32.mrf.mxu0
      %v2348 = vadd.f32 0.0, %v2347
      %v2349 = vpop.f32.mrf.mxu0
      %v2350 = vadd.f32 0.0, %v2349
      %2351 = vdwg.mxu0
      %v2352 = vpack.c.bf16 %v2328, %v2327
      %2354 = vrot.lane.b32.xlu0 %v2334, 120
      %v2355 = vpop.permute.xlu0 %2354
      %v2358 = vsel %vm1981, %v2352, 0
      %2360 = vmatpush.bf16.msra.mxu0 0
      %2361 = vmatpush.bf16.msra.mxu0 0
      %2362 = vmatpush.bf16.msra.mxu0 0
      %2363 = vmatpush.bf16.msra.mxu0 0
      %2364 = vmatpush.bf16.msra.mxu0 0
      %2365 = vmatpush.bf16.msra.mxu0 0
      %2366 = vmatpush.bf16.msra.mxu0 0
      %2367 = vmatpush.bf16.msra.mxu0 %v2355
      %2368 = vmatmul.bf16.gmra.mxu0 %v2358
      %v2369 = vpop.f32.mrf.mxu0
      %v2370 = vadd.f32 0.0, %v2369
      %v2371 = vpop.f32.mrf.mxu0
      %v2372 = vadd.f32 0.0, %v2371
      %2373 = vdwg.mxu0
      %v2374 = vpack.c.bf16 %v2330, %v2329
      %2375 = vrot.lane.b32.xlu0 %v2334, 112
      %v2376 = vpop.permute.xlu0 %2375
      %v2379 = vsel %vm1981, %v2374, 0
      %2381 = vmatpush.bf16.msra.mxu0 0
      %2382 = vmatpush.bf16.msra.mxu0 0
      %2383 = vmatpush.bf16.msra.mxu0 0
      %2384 = vmatpush.bf16.msra.mxu0 0
      %2385 = vmatpush.bf16.msra.mxu0 0
      %2386 = vmatpush.bf16.msra.mxu0 0
      %2387 = vmatpush.bf16.msra.mxu0 0
      %2388 = vmatpush.bf16.msra.mxu0 %v2376
      %2389 = vmatmul.bf16.gmra.mxu0 %v2379
      %v2390 = vpop.f32.mrf.mxu0
      %v2391 = vadd.f32 0.0, %v2390
      %v2392 = vpop.f32.mrf.mxu0
      %v2393 = vadd.f32 0.0, %v2392
      %2394 = vdwg.mxu0
      %v2395 = vpack.c.bf16 %v2332, %v2331
      %2396 = vrot.lane.b32.xlu0 %v2334, 104
      %v2397 = vpop.permute.xlu0 %2396
      %v2400 = vsel %vm1981, %v2395, 0
      %2402 = vmatpush.bf16.msra.mxu0 0
      %2403 = vmatpush.bf16.msra.mxu0 0
      %2404 = vmatpush.bf16.msra.mxu0 0
      %2405 = vmatpush.bf16.msra.mxu0 0
      %2406 = vmatpush.bf16.msra.mxu0 0
      %2407 = vmatpush.bf16.msra.mxu0 0
      %2408 = vmatpush.bf16.msra.mxu0 0
      %2409 = vmatpush.bf16.msra.mxu0 %v2397
      %2410 = vmatmul.bf16.gmra.mxu0 %v2400
      %v2411 = vpop.f32.mrf.mxu0
      %v2412 = vadd.f32 0.0, %v2411
      %v2413 = vpop.f32.mrf.mxu0
      %v2414 = vadd.f32 0.0, %v2413
      %2415 = vdwg.mxu0
      %2418 = vrot.lane.b32.xlu0 %v2370, 8
      %v2419 = vpop.permute.xlu0 %2418
      %2420 = vrot.lane.b32.xlu0 %v2372, 8
      %v2421 = vpop.permute.xlu0 %2420
      %2426 = vrot.lane.b32.xlu0 %v2391, 16
      %v2427 = vpop.permute.xlu0 %2426
      %2428 = vrot.lane.b32.xlu0 %v2393, 16
      %v2429 = vpop.permute.xlu0 %2428
      %2434 = vrot.lane.b32.xlu0 %v2412, 24
      %v2435 = vpop.permute.xlu0 %2434
      %2436 = vrot.lane.b32.xlu0 %v2414, 24
      %v2437 = vpop.permute.xlu0 %2436
      %v2440 = vsel %vm1435, %v2348, %v2419
      %v2441 = vsel %vm1435, %v2350, %v2421
      %v2442 = vsel %vm1981, %v2440, %v2427
      %v2443 = vsel %vm1981, %v2441, %v2429
      %v2444 = vsel %vm1984, %v2442, %v2435
      %v2445 = vsel %vm1984, %v2443, %v2437
      %v2446 = vld [vmem:[%s55] sm:$0xf]
      %v2447 = vld [vmem:[%s55 + $0x4] sm:$0xf]
      %v2448 = vld [vmem:[%s55 + $0x8] sm:$0xf]
      %v2449 = vld [vmem:[%s55 + $0xc] sm:$0xf]
      %v2450 = vpack.c.bf16 %v2445, %v2444
      %v2455 = vunpack.c.l.b16 %v2446
      %v2456 = vunpack.c.l.b16 %v2447
      %v2457 = vunpack.c.l.b16 %v2448
      %v2458 = vunpack.c.l.b16 %v2449
      %v2459 = vpack.c.b16 %v2456, %v2455
      %v2460 = vpack.c.b16 %v2458, %v2457
      %v2464 = vsel %vm1480, %v2450, 0
      %2466 = vmatpush.bf16.msra.mxu0 0
      %2467 = vmatpush.bf16.msra.mxu0 0
      %2468 = vmatpush.bf16.msra.mxu0 0
      %2469 = vmatpush.bf16.msra.mxu0 0
      %2470 = vmatpush.bf16.msra.mxu0 0
      %2471 = vmatpush.bf16.msra.mxu0 0
      %2472 = vmatpush.bf16.msra.mxu0 %v2460
      %2473 = vmatpush.bf16.msra.mxu0 %v2459
      %2474 = vmatmul.bf16.gmra.mxu0 %v2464
      %v2475 = vpop.f32.mrf.mxu0
      %v2476 = vadd.f32 0.0, %v2475
      %v2477 = vpop.f32.mrf.mxu0
      %v2478 = vadd.f32 0.0, %v2477
      %2479 = vdwg.mxu0
      %v2480 = vadd.f32 %v2027, %v2476
      %v2481 = vadd.f32 %v2028, %v2478
      %v2482 = vld [vmem:[%s57] sm:$0x1]
      %v2484 = vperm.slane %v2482, 0
      %v2486 = vadd.f32 %v2480, %v2484
      %v2487 = vadd.f32 %v2481, %v2484
      %v2488 = vld [vmem:[%s59] sm:$0xf]
      %v2489 = vld [vmem:[%s59 + $0x4] sm:$0xf]
      %v2490 = vld [vmem:[%s59 + $0x8] sm:$0xf]
      %v2491 = vld [vmem:[%s59 + $0xc] sm:$0xf]
      %v2492 = vpack.c.bf16 %v2487, %v2486
      %v2493 = vld [vmem:[%s61] sm:$0x1]
      %v2495 = vperm.slane %v2493, 0
      %v2501 = vunpack.c.l.b16 %v2488
      %v2502 = vunpack.c.l.b16 %v2489
      %v2503 = vunpack.c.l.b16 %v2490
      %v2504 = vunpack.c.l.b16 %v2491
      %v2505 = vpack.c.b16 %v2502, %v2501
      %v2506 = vpack.c.b16 %v2504, %v2503
      %v2510 = vsel %vm1480, %v2492, 0
      %2512 = vmatpush.bf16.msra.mxu0 0
      %2513 = vmatpush.bf16.msra.mxu0 0
      %2514 = vmatpush.bf16.msra.mxu0 0
      %2515 = vmatpush.bf16.msra.mxu0 0
      %2516 = vmatpush.bf16.msra.mxu0 0
      %2517 = vmatpush.bf16.msra.mxu0 0
      %2518 = vmatpush.bf16.msra.mxu0 %v2506
      %2519 = vmatpush.bf16.msra.mxu0 %v2505
      %2520 = vmatmul.bf16.gmra.mxu0 %v2510
      %v2521 = vpop.f32.mrf.mxu0
      %v2522 = vadd.f32 %v2495, %v2521
      %v2523 = vpop.f32.mrf.mxu0
      %v2524 = vadd.f32 %v2495, %v2523
      %2525 = vdwg.mxu0
      %v2526 = vmax.f32 %v2522, 0.0
      %v2527 = vmax.f32 %v2524, 0.0
      %v2528 = vld [vmem:[%s63] sm:$0xf]
      %v2529 = vld [vmem:[%s63 + $0x4] sm:$0xf]
      %v2530 = vld [vmem:[%s63 + $0x8] sm:$0xf]
      %v2531 = vld [vmem:[%s63 + $0xc] sm:$0xf]
      %v2532 = vld [vmem:[%s63 + $0x10] sm:$0xf]
      %v2533 = vld [vmem:[%s63 + $0x14] sm:$0xf]
      %v2534 = vld [vmem:[%s63 + $0x18] sm:$0xf]
      %v2535 = vld [vmem:[%s63 + $0x1c] sm:$0xf]
      %v2536 = vld [vmem:[%s63 + $0x20] sm:$0xf]
      %v2537 = vld [vmem:[%s63 + $0x24] sm:$0xf]
      %v2538 = vld [vmem:[%s63 + $0x28] sm:$0xf]
      %v2539 = vld [vmem:[%s63 + $0x2c] sm:$0xf]
      %v2540 = vld [vmem:[%s63 + $0x30] sm:$0xf]
      %v2541 = vld [vmem:[%s63 + $0x34] sm:$0xf]
      %v2542 = vld [vmem:[%s63 + $0x38] sm:$0xf]
      %v2543 = vld [vmem:[%s63 + $0x3c] sm:$0xf]
      %v2544 = vpack.c.bf16 %v2527, %v2526
      %v2561 = vunpack.c.l.b16 %v2528
      %v2562 = vunpack.c.l.b16 %v2529
      %v2563 = vunpack.c.l.b16 %v2530
      %v2564 = vunpack.c.l.b16 %v2531
      %v2565 = vunpack.c.l.b16 %v2532
      %v2566 = vunpack.c.l.b16 %v2533
      %v2567 = vunpack.c.l.b16 %v2534
      %v2568 = vunpack.c.l.b16 %v2535
      %v2569 = vunpack.c.l.b16 %v2536
      %v2570 = vunpack.c.l.b16 %v2537
      %v2571 = vunpack.c.l.b16 %v2538
      %v2572 = vunpack.c.l.b16 %v2539
      %v2573 = vunpack.c.l.b16 %v2540
      %v2574 = vunpack.c.l.b16 %v2541
      %v2575 = vunpack.c.l.b16 %v2542
      %v2576 = vunpack.c.l.b16 %v2543
      %v2577 = vpack.c.b16 %v2562, %v2561
      %v2578 = vpack.c.b16 %v2564, %v2563
      %v2579 = vpack.c.b16 %v2566, %v2565
      %v2580 = vpack.c.b16 %v2568, %v2567
      %v2581 = vpack.c.b16 %v2570, %v2569
      %v2582 = vpack.c.b16 %v2572, %v2571
      %v2583 = vpack.c.b16 %v2574, %v2573
      %v2584 = vpack.c.b16 %v2576, %v2575
      %2593 = vmatpush.bf16.msra.mxu0 %v2584
      %2594 = vmatpush.bf16.msra.mxu0 %v2583
      %2595 = vmatpush.bf16.msra.mxu0 %v2582
      %2596 = vmatpush.bf16.msra.mxu0 %v2581
      %2597 = vmatpush.bf16.msra.mxu0 %v2580
      %2598 = vmatpush.bf16.msra.mxu0 %v2579
      %2599 = vmatpush.bf16.msra.mxu0 %v2578
      %2600 = vmatpush.bf16.msra.mxu0 %v2577
      %2601 = vmatmul.bf16.gmra.mxu0 %v2544
      %v2602 = vpop.f32.mrf.mxu0
      %v2603 = vadd.f32 0.0, %v2602
      %v2604 = vpop.f32.mrf.mxu0
      %v2605 = vadd.f32 0.0, %v2604
      %2606 = vdwg.mxu0
      %v2607 = vadd.f32 %v2486, %v2603
      %v2608 = vadd.f32 %v2487, %v2605
      %v2609 = vld [vmem:[%s65] sm:$0x1]
      %v2611 = vperm.slane %v2609, 0
      %v2613 = vadd.f32 %v2607, %v2611
      %v2614 = vadd.f32 %v2608, %v2611
      %v2615 = vadd.f32 %v2613, %v1494
      %v2616 = vadd.f32 %v2614, %v1496
      %v2617 = vld [vmem:[%s67] sm:$0xf]
      %v2618 = vld [vmem:[%s67 + $0x4] sm:$0xf]
      %v2619 = vld [vmem:[%s67 + $0x8] sm:$0xf]
      %v2620 = vld [vmem:[%s67 + $0xc] sm:$0xf]
      %v2621 = vpack.c.bf16 %v2616, %v2615
      %v2622 = vld [vmem:[%s69] sm:$0x1]
      %v2624 = vperm.slane %v2622, 0
      %v2630 = vunpack.c.l.b16 %v2617
      %v2631 = vunpack.c.l.b16 %v2618
      %v2632 = vunpack.c.l.b16 %v2619
      %v2633 = vunpack.c.l.b16 %v2620
      %v2634 = vpack.c.b16 %v2631, %v2630
      %v2635 = vpack.c.b16 %v2633, %v2632
      %v2639 = vsel %vm1480, %v2621, 0
      %2641 = vmatpush.bf16.msra.mxu0 0
      %2642 = vmatpush.bf16.msra.mxu0 0
      %2643 = vmatpush.bf16.msra.mxu0 0
      %2644 = vmatpush.bf16.msra.mxu0 0
      %2645 = vmatpush.bf16.msra.mxu0 0
      %2646 = vmatpush.bf16.msra.mxu0 0
      %2647 = vmatpush.bf16.msra.mxu0 %v2635
      %2648 = vmatpush.bf16.msra.mxu0 %v2634
      %2649 = vmatmul.bf16.gmra.mxu0 %v2639
      %v2650 = vpop.f32.mrf.mxu0
      %v2651 = vadd.f32 %v2624, %v2650
      %v2652 = vpop.f32.mrf.mxu0
      %v2653 = vadd.f32 %v2624, %v2652
      %2654 = vdwg.mxu0
      %v2655 = vmax.f32 %v2651, 0.0
      %v2656 = vmax.f32 %v2653, 0.0
      %v2657 = vld [vmem:[%s71] sm:$0xf]
      %v2658 = vld [vmem:[%s71 + $0x4] sm:$0xf]
      %v2659 = vld [vmem:[%s71 + $0x8] sm:$0xf]
      %v2660 = vld [vmem:[%s71 + $0xc] sm:$0xf]
      %v2661 = vpack.c.bf16 %v2656, %v2655
      %v2666 = vunpack.c.l.b16 %v2657
      %v2667 = vunpack.c.l.b16 %v2658
      %v2668 = vunpack.c.l.b16 %v2659
      %v2669 = vunpack.c.l.b16 %v2660
      %v2670 = vpack.c.b16 %v2667, %v2666
      %v2671 = vpack.c.b16 %v2669, %v2668
      %v2675 = vsel %vm1480, %v2661, 0
      %2677 = vmatpush.bf16.msra.mxu0 0
      %2678 = vmatpush.bf16.msra.mxu0 0
      %2679 = vmatpush.bf16.msra.mxu0 0
      %2680 = vmatpush.bf16.msra.mxu0 0
      %2681 = vmatpush.bf16.msra.mxu0 0
      %2682 = vmatpush.bf16.msra.mxu0 0
      %2683 = vmatpush.bf16.msra.mxu0 %v2671
      %2684 = vmatpush.bf16.msra.mxu0 %v2670
      %2685 = vmatmul.bf16.gmra.mxu0 %v2675
      %v2686 = vpop.f32.mrf.mxu0
      %v2687 = vadd.f32 0.0, %v2686
      %v2688 = vpop.f32.mrf.mxu0
      %v2689 = vadd.f32 0.0, %v2688
      %2690 = vdwg.mxu0
      %v2691 = vadd.f32 %v1427, %v2687
      %v2692 = vadd.f32 %v1428, %v2689
      %v2693 = vld [vmem:[%s73] sm:$0x1]
      %v2695 = vperm.slane %v2693, 0
      %v2697 = vadd.f32 %v2691, %v2695
      %v2698 = vadd.f32 %v2692, %v2695
      %v2699 = vld [vmem:[%s75] sm:$0xf]
      %v2700 = vld [vmem:[%s75 + $0x4] sm:$0xf]
      %v2701 = vld [vmem:[%s75 + $0x8] sm:$0xf]
      %v2702 = vld [vmem:[%s75 + $0xc] sm:$0xf]
      %v2703 = vld [vmem:[%s77] sm:$0x1]
      %v2705 = vperm.slane %v2703, 0
      %v2711 = vunpack.c.l.b16 %v2699
      %v2712 = vunpack.c.l.b16 %v2700
      %v2713 = vunpack.c.l.b16 %v2701
      %v2714 = vunpack.c.l.b16 %v2702
      %v2715 = vpack.c.b16 %v2712, %v2711
      %v2716 = vpack.c.b16 %v2714, %v2713
      %2719 = vmatpush.bf16.msra.mxu0 0
      %2720 = vmatpush.bf16.msra.mxu0 0
      %2721 = vmatpush.bf16.msra.mxu0 0
      %2722 = vmatpush.bf16.msra.mxu0 0
      %2723 = vmatpush.bf16.msra.mxu0 0
      %2724 = vmatpush.bf16.msra.mxu0 0
      %2725 = vmatpush.bf16.msra.mxu0 %v2716
      %2726 = vmatpush.bf16.msra.mxu0 %v2715
      %2727 = vmatmul.bf16.gmra.mxu0 %v2675
      %v2728 = vpop.f32.mrf.mxu0
      %v2729 = vadd.f32 %v2705, %v2728
      %v2730 = vpop.f32.mrf.mxu0
      %v2731 = vadd.f32 %v2705, %v2730
      %2732 = vdwg.mxu0
      %2735 = vrot.lane.b32.xlu0 %v2729, 8
      %v2736 = vpop.permute.xlu0 %2735
      %2737 = vrot.lane.b32.xlu0 %v2731, 8
      %v2738 = vpop.permute.xlu0 %2737
      %2743 = vrot.lane.b32.xlu0 %v1629, 10
      %v2744 = vpop.permute.xlu0 %2743
      %2745 = vrot.lane.b32.xlu0 %v1630, 10
      %v2746 = vpop.permute.xlu0 %2745
      %v2749 = vsel %vm1435, %v2697, %v2736
      %v2750 = vsel %vm1435, %v2698, %v2738
      %vm2751 = vcmask 80896
      %v2752 = vsel %vm2751, %v2749, %v2744
      %v2753 = vsel %vm2751, %v2750, %v2746
      %vm2754 = vcmask 113664
      %v2755 = vsel %vm2754, %v2752, 0.0
      %v2756 = vsel %vm2754, %v2753, 0.0
      %v2757 = vpack.c.bf16 %v2698, %v2697
      %v2759 = vsel %vm1435, %v2757, 0
      %2761 = vmatpush.bf16.msra.mxu0 0
      %2762 = vmatpush.bf16.msra.mxu0 0
      %2763 = vmatpush.bf16.msra.mxu0 0
      %2764 = vmatpush.bf16.msra.mxu0 0
      %2765 = vmatpush.bf16.msra.mxu0 0
      %2766 = vmatpush.bf16.msra.mxu0 0
      %2767 = vmatpush.bf16.msra.mxu0 0
      %2768 = vmatpush.bf16.msra.mxu0 %v1613
      %2769 = vmatmul.bf16.gmra.mxu0 %v2759
      %v2770 = vpop.f32.mrf.mxu0
      %v2771 = vadd.f32 %v1610, %v2770
      %v2772 = vpop.f32.mrf.mxu0
      %v2773 = vadd.f32 %v1610, %v2772
      %2774 = vdwg.mxu0
      %v2775 = vtanh.pop %v2771
      %v2776 = vtanh.pop %v2773
      %2777 = vmatpush.bf16.msra.mxu0 0
      %2778 = vmatpush.bf16.msra.mxu0 0
      %2779 = vmatpush.bf16.msra.mxu0 0
      %2780 = vmatpush.bf16.msra.mxu0 0
      %2781 = vmatpush.bf16.msra.mxu0 0
      %2782 = vmatpush.bf16.msra.mxu0 0
      %2783 = vmatpush.bf16.msra.mxu0 %v1651
      %2784 = vmatpush.bf16.msra.mxu0 %v1650
      %2785 = vmatmul.bf16.gmra.mxu0 %v2639
      %v2786 = vpop.f32.mrf.mxu0
      %v2787 = vadd.f32 %v1640, %v2786
      %v2788 = vpop.f32.mrf.mxu0
      %v2789 = vadd.f32 %v1640, %v2788
      %2790 = vdwg.mxu0
      %v2791 = vpack.c.bf16 %v2789, %v2787
      %v2793 = vsel %vm1435, %v2791, 0
      %2795 = vmatpush.bf16.xpose.msra.mxu0 0
      %2796 = vmatpush.bf16.xpose.msra.mxu0 0
      %2797 = vmatpush.bf16.xpose.msra.mxu0 0
      %2798 = vmatpush.bf16.xpose.msra.mxu0 0
      %2799 = vmatpush.bf16.xpose.msra.mxu0 0
      %2800 = vmatpush.bf16.xpose.msra.mxu0 0
      %2801 = vmatpush.bf16.xpose.msra.mxu0 0
      %2802 = vmatpush.bf16.xpose.msra.mxu0 %v1677
      %2803 = vmatmul.bf16.gmra.mxu0 %v2793
      %v2804 = vpop.f32.mrf.mxu0
      %v2805 = vadd.f32 0.0, %v2804
      %v2806 = vpop.f32.mrf.mxu0
      %v2807 = vadd.f32 0.0, %v2806
      %2808 = vdwg.mxu0
      %2810 = vrot.lane.b32.xlu0 %v2791, 120
      %v2811 = vpop.permute.xlu0 %2810
      %v2813 = vsel %vm1435, %v2811, 0
      %2815 = vmatpush.bf16.xpose.msra.mxu0 0
      %2816 = vmatpush.bf16.xpose.msra.mxu0 0
      %2817 = vmatpush.bf16.xpose.msra.mxu0 0
      %2818 = vmatpush.bf16.xpose.msra.mxu0 0
      %2819 = vmatpush.bf16.xpose.msra.mxu0 0
      %2820 = vmatpush.bf16.xpose.msra.mxu0 0
      %2821 = vmatpush.bf16.xpose.msra.mxu0 0
      %2822 = vmatpush.bf16.xpose.msra.mxu0 %v1703
      %2823 = vmatmul.bf16.gmra.mxu0 %v2813
      %v2824 = vpop.f32.mrf.mxu0
      %v2825 = vadd.f32 0.0, %v2824
      %v2826 = vpop.f32.mrf.mxu0
      %v2827 = vadd.f32 0.0, %v2826
      %2828 = vdwg.mxu0
      %2829 = vrot.lane.b32.xlu0 %v2791, 112
      %v2830 = vpop.permute.xlu0 %2829
      %v2832 = vsel %vm1435, %v2830, 0
      %2834 = vmatpush.bf16.xpose.msra.mxu0 0
      %2835 = vmatpush.bf16.xpose.msra.mxu0 0
      %2836 = vmatpush.bf16.xpose.msra.mxu0 0
      %2837 = vmatpush.bf16.xpose.msra.mxu0 0
      %2838 = vmatpush.bf16.xpose.msra.mxu0 0
      %2839 = vmatpush.bf16.xpose.msra.mxu0 0
      %2840 = vmatpush.bf16.xpose.msra.mxu0 0
      %2841 = vmatpush.bf16.xpose.msra.mxu0 %v1727
      %2842 = vmatmul.bf16.gmra.mxu0 %v2832
      %v2843 = vpop.f32.mrf.mxu0
      %v2844 = vadd.f32 0.0, %v2843
      %v2845 = vpop.f32.mrf.mxu0
      %v2846 = vadd.f32 0.0, %v2845
      %2847 = vdwg.mxu0
      %2848 = vrot.lane.b32.xlu0 %v2791, 104
      %v2849 = vpop.permute.xlu0 %2848
      %v2851 = vsel %vm1435, %v2849, 0
      %2853 = vmatpush.bf16.xpose.msra.mxu0 0
      %2854 = vmatpush.bf16.xpose.msra.mxu0 0
      %2855 = vmatpush.bf16.xpose.msra.mxu0 0
      %2856 = vmatpush.bf16.xpose.msra.mxu0 0
      %2857 = vmatpush.bf16.xpose.msra.mxu0 0
      %2858 = vmatpush.bf16.xpose.msra.mxu0 0
      %2859 = vmatpush.bf16.xpose.msra.mxu0 0
      %2860 = vmatpush.bf16.xpose.msra.mxu0 %v1751
      %2861 = vmatmul.bf16.gmra.mxu0 %v2851
      %v2862 = vpop.f32.mrf.mxu0
      %v2863 = vadd.f32 0.0, %v2862
      %v2864 = vpop.f32.mrf.mxu0
      %v2865 = vadd.f32 0.0, %v2864
      %2866 = vdwg.mxu0
      %v2867 = vmul.f32 %v2805, 0.35355338
      %v2868 = vmul.f32 %v2807, 0.35355338
      %v2869 = vmul.f32 %v2825, 0.35355338
      %v2870 = vmul.f32 %v2827, 0.35355338
      %v2871 = vmul.f32 %v2844, 0.35355338
      %v2872 = vmul.f32 %v2846, 0.35355338
      %v2873 = vmul.f32 %v2863, 0.35355338
      %v2874 = vmul.f32 %v2865, 0.35355338
      %v2875 = vsel %vm1232, %v2867, -inf
      %2876 = vmax.xlane.f32.xlu0 %v2875
      %v2877 = vpop.xlane.xlu0 %2876
      %v2878 = vsel %vm1232, %v2868, -inf
      %2879 = vmax.xlane.f32.xlu0 %v2878
      %v2880 = vpop.xlane.xlu0 %2879
      %v2881 = vsel %vm1232, %v2869, -inf
      %2882 = vmax.xlane.f32.xlu0 %v2881
      %v2883 = vpop.xlane.xlu0 %2882
      %v2884 = vsel %vm1232, %v2870, -inf
      %2885 = vmax.xlane.f32.xlu0 %v2884
      %v2886 = vpop.xlane.xlu0 %2885
      %v2887 = vsel %vm1232, %v2871, -inf
      %2888 = vmax.xlane.f32.xlu0 %v2887
      %v2889 = vpop.xlane.xlu0 %2888
      %v2890 = vsel %vm1232, %v2872, -inf
      %2891 = vmax.xlane.f32.xlu0 %v2890
      %v2892 = vpop.xlane.xlu0 %2891
      %v2893 = vsel %vm1232, %v2873, -inf
      %2894 = vmax.xlane.f32.xlu0 %v2893
      %v2895 = vpop.xlane.xlu0 %2894
      %v2896 = vsel %vm1232, %v2874, -inf
      %2897 = vmax.xlane.f32.xlu0 %v2896
      %v2898 = vpop.xlane.xlu0 %2897
      %v2899 = vsub.f32 %v2867, %v2877
      %v2900 = vsub.f32 %v2868, %v2880
      %v2901 = vsub.f32 %v2869, %v2883
      %v2902 = vsub.f32 %v2870, %v2886
      %v2903 = vsub.f32 %v2871, %v2889
      %v2904 = vsub.f32 %v2872, %v2892
      %v2905 = vsub.f32 %v2873, %v2895
      %v2906 = vsub.f32 %v2874, %v2898
      %v2907 = vmul.f32 %v2899, 1.442695
      %v2908 = vpow.pop %v2907
      %v2909 = vmul.f32 %v2900, 1.442695
      %v2910 = vpow.pop %v2909
      %v2911 = vmul.f32 %v2901, 1.442695
      %v2912 = vpow.pop %v2911
      %v2913 = vmul.f32 %v2902, 1.442695
      %v2914 = vpow.pop %v2913
      %v2915 = vmul.f32 %v2903, 1.442695
      %v2916 = vpow.pop %v2915
      %v2917 = vmul.f32 %v2904, 1.442695
      %v2918 = vpow.pop %v2917
      %v2919 = vmul.f32 %v2905, 1.442695
      %v2920 = vpow.pop %v2919
      %v2921 = vmul.f32 %v2906, 1.442695
      %v2922 = vpow.pop %v2921
      %v2923 = vsel %vm1232, %v2908, 0.0
      %2924 = vadd.xlane.f32.xlu0 %v2923
      %v2925 = vpop.xlane.xlu0 %2924
      %v2926 = vsel %vm1232, %v2910, 0.0
      %2927 = vadd.xlane.f32.xlu0 %v2926
      %v2928 = vpop.xlane.xlu0 %2927
      %v2929 = vsel %vm1232, %v2912, 0.0
      %2930 = vadd.xlane.f32.xlu0 %v2929
      %v2931 = vpop.xlane.xlu0 %2930
      %v2932 = vsel %vm1232, %v2914, 0.0
      %2933 = vadd.xlane.f32.xlu0 %v2932
      %v2934 = vpop.xlane.xlu0 %2933
      %v2935 = vsel %vm1232, %v2916, 0.0
      %2936 = vadd.xlane.f32.xlu0 %v2935
      %v2937 = vpop.xlane.xlu0 %2936
      %v2938 = vsel %vm1232, %v2918, 0.0
      %2939 = vadd.xlane.f32.xlu0 %v2938
      %v2940 = vpop.xlane.xlu0 %2939
      %v2941 = vsel %vm1232, %v2920, 0.0
      %2942 = vadd.xlane.f32.xlu0 %v2941
      %v2943 = vpop.xlane.xlu0 %2942
      %v2944 = vsel %vm1232, %v2922, 0.0
      %2945 = vadd.xlane.f32.xlu0 %v2944
      %v2946 = vpop.xlane.xlu0 %2945
      %v2947 = vrcp.pop %v2925
      %v2948 = vrcp.pop %v2928
      %v2949 = vrcp.pop %v2931
      %v2950 = vrcp.pop %v2934
      %v2951 = vrcp.pop %v2937
      %v2952 = vrcp.pop %v2940
      %v2953 = vrcp.pop %v2943
      %v2954 = vrcp.pop %v2946
      %v2955 = vmul.f32 %v2908, %v2947
      %v2956 = vmul.f32 %v2910, %v2948
      %v2957 = vmul.f32 %v2912, %v2949
      %v2958 = vmul.f32 %v2914, %v2950
      %v2959 = vmul.f32 %v2916, %v2951
      %v2960 = vmul.f32 %v2918, %v2952
      %v2961 = vmul.f32 %v2920, %v2953
      %v2962 = vmul.f32 %v2922, %v2954
      %v2963 = vpack.c.bf16 %v2956, %v2955
      %v2965 = vsel %vm1232, %v2963, 0
      %2967 = vmatpush.bf16.msra.mxu0 0
      %2968 = vmatpush.bf16.msra.mxu0 0
      %2969 = vmatpush.bf16.msra.mxu0 0
      %2970 = vmatpush.bf16.msra.mxu0 0
      %2971 = vmatpush.bf16.msra.mxu0 0
      %2972 = vmatpush.bf16.msra.mxu0 0
      %2973 = vmatpush.bf16.msra.mxu0 0
      %2974 = vmatpush.bf16.msra.mxu0 %v1869
      %2975 = vmatmul.bf16.gmra.mxu0 %v2965
      %v2976 = vpop.f32.mrf.mxu0
      %v2977 = vadd.f32 0.0, %v2976
      %v2978 = vpop.f32.mrf.mxu0
      %v2979 = vadd.f32 0.0, %v2978
      %2980 = vdwg.mxu0
      %v2981 = vpack.c.bf16 %v2958, %v2957
      %v2983 = vsel %vm1232, %v2981, 0
      %2985 = vmatpush.bf16.msra.mxu0 0
      %2986 = vmatpush.bf16.msra.mxu0 0
      %2987 = vmatpush.bf16.msra.mxu0 0
      %2988 = vmatpush.bf16.msra.mxu0 0
      %2989 = vmatpush.bf16.msra.mxu0 0
      %2990 = vmatpush.bf16.msra.mxu0 0
      %2991 = vmatpush.bf16.msra.mxu0 0
      %2992 = vmatpush.bf16.msra.mxu0 %v1893
      %2993 = vmatmul.bf16.gmra.mxu0 %v2983
      %v2994 = vpop.f32.mrf.mxu0
      %v2995 = vadd.f32 0.0, %v2994
      %v2996 = vpop.f32.mrf.mxu0
      %v2997 = vadd.f32 0.0, %v2996
      %2998 = vdwg.mxu0
      %v2999 = vpack.c.bf16 %v2960, %v2959
      %v3001 = vsel %vm1232, %v2999, 0
      %3003 = vmatpush.bf16.msra.mxu0 0
      %3004 = vmatpush.bf16.msra.mxu0 0
      %3005 = vmatpush.bf16.msra.mxu0 0
      %3006 = vmatpush.bf16.msra.mxu0 0
      %3007 = vmatpush.bf16.msra.mxu0 0
      %3008 = vmatpush.bf16.msra.mxu0 0
      %3009 = vmatpush.bf16.msra.mxu0 0
      %3010 = vmatpush.bf16.msra.mxu0 %v1916
      %3011 = vmatmul.bf16.gmra.mxu0 %v3001
      %v3012 = vpop.f32.mrf.mxu0
      %v3013 = vadd.f32 0.0, %v3012
      %v3014 = vpop.f32.mrf.mxu0
      %v3015 = vadd.f32 0.0, %v3014
      %3016 = vdwg.mxu0
      %v3017 = vpack.c.bf16 %v2962, %v2961
      %v3019 = vsel %vm1232, %v3017, 0
      %3021 = vmatpush.bf16.msra.mxu0 0
      %3022 = vmatpush.bf16.msra.mxu0 0
      %3023 = vmatpush.bf16.msra.mxu0 0
      %3024 = vmatpush.bf16.msra.mxu0 0
      %3025 = vmatpush.bf16.msra.mxu0 0
      %3026 = vmatpush.bf16.msra.mxu0 0
      %3027 = vmatpush.bf16.msra.mxu0 0
      %3028 = vmatpush.bf16.msra.mxu0 %v1939
      %3029 = vmatmul.bf16.gmra.mxu0 %v3019
      %v3030 = vpop.f32.mrf.mxu0
      %v3031 = vadd.f32 0.0, %v3030
      %v3032 = vpop.f32.mrf.mxu0
      %v3033 = vadd.f32 0.0, %v3032
      %3034 = vdwg.mxu0
      %3037 = vrot.lane.b32.xlu0 %v2995, 8
      %v3038 = vpop.permute.xlu0 %3037
      %3039 = vrot.lane.b32.xlu0 %v2997, 8
      %v3040 = vpop.permute.xlu0 %3039
      %3045 = vrot.lane.b32.xlu0 %v3013, 16
      %v3046 = vpop.permute.xlu0 %3045
      %3047 = vrot.lane.b32.xlu0 %v3015, 16
      %v3048 = vpop.permute.xlu0 %3047
      %3053 = vrot.lane.b32.xlu0 %v3031, 24
      %v3054 = vpop.permute.xlu0 %3053
      %3055 = vrot.lane.b32.xlu0 %v3033, 24
      %v3056 = vpop.permute.xlu0 %3055
      %v3059 = vsel %vm1435, %v2977, %v3038
      %v3060 = vsel %vm1435, %v2979, %v3040
      %v3061 = vsel %vm1981, %v3059, %v3046
      %v3062 = vsel %vm1981, %v3060, %v3048
      %v3063 = vsel %vm1984, %v3061, %v3054
      %v3064 = vsel %vm1984, %v3062, %v3056
      %v3065 = vpack.c.bf16 %v3064, %v3063
      %v3067 = vsel %vm1480, %v3065, 0
      %3069 = vmatpush.bf16.msra.mxu0 0
      %3070 = vmatpush.bf16.msra.mxu0 0
      %3071 = vmatpush.bf16.msra.mxu0 0
      %3072 = vmatpush.bf16.msra.mxu0 0
      %3073 = vmatpush.bf16.msra.mxu0 0
      %3074 = vmatpush.bf16.msra.mxu0 0
      %3075 = vmatpush.bf16.msra.mxu0 %v2001
      %3076 = vmatpush.bf16.msra.mxu0 %v2000
      %3077 = vmatmul.bf16.gmra.mxu0 %v3067
      %v3078 = vpop.f32.mrf.mxu0
      %v3079 = vadd.f32 0.0, %v3078
      %v3080 = vpop.f32.mrf.mxu0
      %v3081 = vadd.f32 0.0, %v3080
      %3082 = vdwg.mxu0
      %v3083 = vadd.f32 %v2613, %v3079
      %v3084 = vadd.f32 %v2614, %v3081
      %v3085 = vadd.f32 %v3083, %v2025
      %v3086 = vadd.f32 %v3084, %v2025
      %v3087 = vadd.f32 %v3085, %v1494
      %v3088 = vadd.f32 %v3086, %v1496
      %s3089 = scalar_lea.vmem %s43, 16
      %v3090 = vld [vmem:[%s3089] sm:$0xf]
      %v3091 = vld [vmem:[%s3089 + $0x4] sm:$0xf]
      %v3092 = vld [vmem:[%s3089 + $0x8] sm:$0xf]
      %v3093 = vld [vmem:[%s3089 + $0xc] sm:$0xf]
      %v3094 = vpack.c.bf16 %v3088, %v3087
      %s3095 = scalar_lea.vmem %s45, 1
      %v3096 = vld [vmem:[%s3095] sm:$0x1]
      %v3098 = vperm.slane %v3096, 0
      %v3104 = vunpack.c.l.b16 %v3090
      %v3105 = vunpack.c.l.b16 %v3091
      %v3106 = vunpack.c.l.b16 %v3092
      %v3107 = vunpack.c.l.b16 %v3093
      %v3108 = vpack.c.b16 %v3105, %v3104
      %v3109 = vpack.c.b16 %v3107, %v3106
      %v3113 = vsel %vm1480, %v3094, 0
      %3115 = vmatpush.bf16.msra.mxu0 0
      %3116 = vmatpush.bf16.msra.mxu0 0
      %3117 = vmatpush.bf16.msra.mxu0 0
      %3118 = vmatpush.bf16.msra.mxu0 0
      %3119 = vmatpush.bf16.msra.mxu0 0
      %3120 = vmatpush.bf16.msra.mxu0 0
      %3121 = vmatpush.bf16.msra.mxu0 %v3109
      %3122 = vmatpush.bf16.msra.mxu0 %v3108
      %3123 = vmatmul.bf16.gmra.mxu0 %v3113
      %v3124 = vpop.f32.mrf.mxu0
      %v3125 = vadd.f32 %v3098, %v3124
      %v3126 = vpop.f32.mrf.mxu0
      %v3127 = vadd.f32 %v3098, %v3126
      %3128 = vdwg.mxu0
      %s3129 = scalar_lea.vmem %s47, 16
      %v3130 = vld [vmem:[%s3129] sm:$0xf]
      %v3131 = vld [vmem:[%s3129 + $0x4] sm:$0xf]
      %v3132 = vld [vmem:[%s3129 + $0x8] sm:$0xf]
      %v3133 = vld [vmem:[%s3129 + $0xc] sm:$0xf]
      %s3134 = scalar_lea.vmem %s49, 1
      %v3135 = vld [vmem:[%s3134] sm:$0x1]
      %v3137 = vperm.slane %v3135, 0
      %v3143 = vunpack.c.l.b16 %v3130
      %v3144 = vunpack.c.l.b16 %v3131
      %v3145 = vunpack.c.l.b16 %v3132
      %v3146 = vunpack.c.l.b16 %v3133
      %v3147 = vpack.c.b16 %v3144, %v3143
      %v3148 = vpack.c.b16 %v3146, %v3145
      %3151 = vmatpush.bf16.msra.mxu0 0
      %3152 = vmatpush.bf16.msra.mxu0 0
      %3153 = vmatpush.bf16.msra.mxu0 0
      %3154 = vmatpush.bf16.msra.mxu0 0
      %3155 = vmatpush.bf16.msra.mxu0 0
      %3156 = vmatpush.bf16.msra.mxu0 0
      %3157 = vmatpush.bf16.msra.mxu0 %v3148
      %3158 = vmatpush.bf16.msra.mxu0 %v3147
      %3159 = vmatmul.bf16.gmra.mxu0 %v3113
      %v3160 = vpop.f32.mrf.mxu0
      %v3161 = vadd.f32 %v3137, %v3160
      %v3162 = vpop.f32.mrf.mxu0
      %v3163 = vadd.f32 %v3137, %v3162
      %3164 = vdwg.mxu0
      %s3165 = scalar_lea.vmem %s51, 16
      %v3166 = vld [vmem:[%s3165] sm:$0xf]
      %v3167 = vld [vmem:[%s3165 + $0x4] sm:$0xf]
      %v3168 = vld [vmem:[%s3165 + $0x8] sm:$0xf]
      %v3169 = vld [vmem:[%s3165 + $0xc] sm:$0xf]
      %v3170 = vpack.c.bf16 %v3086, %v3085
      %s3171 = scalar_lea.vmem %s53, 1
      %v3172 = vld [vmem:[%s3171] sm:$0x1]
      %v3174 = vperm.slane %v3172, 0
      %v3180 = vunpack.c.l.b16 %v3166
      %v3181 = vunpack.c.l.b16 %v3167
      %v3182 = vunpack.c.l.b16 %v3168
      %v3183 = vunpack.c.l.b16 %v3169
      %v3184 = vpack.c.b16 %v3181, %v3180
      %v3185 = vpack.c.b16 %v3183, %v3182
      %v3189 = vsel %vm1480, %v3170, 0
      %3191 = vmatpush.bf16.msra.mxu0 0
      %3192 = vmatpush.bf16.msra.mxu0 0
      %3193 = vmatpush.bf16.msra.mxu0 0
      %3194 = vmatpush.bf16.msra.mxu0 0
      %3195 = vmatpush.bf16.msra.mxu0 0
      %3196 = vmatpush.bf16.msra.mxu0 0
      %3197 = vmatpush.bf16.msra.mxu0 %v3185
      %3198 = vmatpush.bf16.msra.mxu0 %v3184
      %3199 = vmatmul.bf16.gmra.mxu0 %v3189
      %v3200 = vpop.f32.mrf.mxu0
      %v3201 = vadd.f32 %v3174, %v3200
      %v3202 = vpop.f32.mrf.mxu0
      %v3203 = vadd.f32 %v3174, %v3202
      %3204 = vdwg.mxu0
      %v3205 = vpack.c.bf16 %v3127, %v3125
      %v3206 = vpack.c.bf16 %v3163, %v3161
      %v3208 = vsel %vm1435, %v3205, 0
      %v3211 = vsel %vm1435, %v3206, 0
      %3213 = vmatpush.bf16.xpose.msra.mxu0 0
      %3214 = vmatpush.bf16.xpose.msra.mxu0 0
      %3215 = vmatpush.bf16.xpose.msra.mxu0 0
      %3216 = vmatpush.bf16.xpose.msra.mxu0 0
      %3217 = vmatpush.bf16.xpose.msra.mxu0 0
      %3218 = vmatpush.bf16.xpose.msra.mxu0 0
      %3219 = vmatpush.bf16.xpose.msra.mxu0 0
      %3220 = vmatpush.bf16.xpose.msra.mxu0 %v3211
      %3221 = vmatmul.bf16.gmra.mxu0 %v3208
      %v3222 = vpop.f32.mrf.mxu0
      %v3223 = vadd.f32 0.0, %v3222
      %v3224 = vpop.f32.mrf.mxu0
      %v3225 = vadd.f32 0.0, %v3224
      %3226 = vdwg.mxu0
      %3228 = vrot.lane.b32.xlu0 %v3205, 120
      %v3229 = vpop.permute.xlu0 %3228
      %3231 = vrot.lane.b32.xlu0 %v3206, 120
      %v3232 = vpop.permute.xlu0 %3231
      %v3234 = vsel %vm1435, %v3229, 0
      %v3237 = vsel %vm1435, %v3232, 0
      %3239 = vmatpush.bf16.xpose.msra.mxu0 0
      %3240 = vmatpush.bf16.xpose.msra.mxu0 0
      %3241 = vmatpush.bf16.xpose.msra.mxu0 0
      %3242 = vmatpush.bf16.xpose.msra.mxu0 0
      %3243 = vmatpush.bf16.xpose.msra.mxu0 0
      %3244 = vmatpush.bf16.xpose.msra.mxu0 0
      %3245 = vmatpush.bf16.xpose.msra.mxu0 0
      %3246 = vmatpush.bf16.xpose.msra.mxu0 %v3237
      %3247 = vmatmul.bf16.gmra.mxu0 %v3234
      %v3248 = vpop.f32.mrf.mxu0
      %v3249 = vadd.f32 0.0, %v3248
      %v3250 = vpop.f32.mrf.mxu0
      %v3251 = vadd.f32 0.0, %v3250
      %3252 = vdwg.mxu0
      %3253 = vrot.lane.b32.xlu0 %v3205, 112
      %v3254 = vpop.permute.xlu0 %3253
      %3255 = vrot.lane.b32.xlu0 %v3206, 112
      %v3256 = vpop.permute.xlu0 %3255
      %v3258 = vsel %vm1435, %v3254, 0
      %v3261 = vsel %vm1435, %v3256, 0
      %3263 = vmatpush.bf16.xpose.msra.mxu0 0
      %3264 = vmatpush.bf16.xpose.msra.mxu0 0
      %3265 = vmatpush.bf16.xpose.msra.mxu0 0
      %3266 = vmatpush.bf16.xpose.msra.mxu0 0
      %3267 = vmatpush.bf16.xpose.msra.mxu0 0
      %3268 = vmatpush.bf16.xpose.msra.mxu0 0
      %3269 = vmatpush.bf16.xpose.msra.mxu0 0
      %3270 = vmatpush.bf16.xpose.msra.mxu0 %v3261
      %3271 = vmatmul.bf16.gmra.mxu0 %v3258
      %v3272 = vpop.f32.mrf.mxu0
      %v3273 = vadd.f32 0.0, %v3272
      %v3274 = vpop.f32.mrf.mxu0
      %v3275 = vadd.f32 0.0, %v3274
      %3276 = vdwg.mxu0
      %3277 = vrot.lane.b32.xlu0 %v3205, 104
      %v3278 = vpop.permute.xlu0 %3277
      %3279 = vrot.lane.b32.xlu0 %v3206, 104
      %v3280 = vpop.permute.xlu0 %3279
      %v3282 = vsel %vm1435, %v3278, 0
      %v3285 = vsel %vm1435, %v3280, 0
      %3287 = vmatpush.bf16.xpose.msra.mxu0 0
      %3288 = vmatpush.bf16.xpose.msra.mxu0 0
      %3289 = vmatpush.bf16.xpose.msra.mxu0 0
      %3290 = vmatpush.bf16.xpose.msra.mxu0 0
      %3291 = vmatpush.bf16.xpose.msra.mxu0 0
      %3292 = vmatpush.bf16.xpose.msra.mxu0 0
      %3293 = vmatpush.bf16.xpose.msra.mxu0 0
      %3294 = vmatpush.bf16.xpose.msra.mxu0 %v3285
      %3295 = vmatmul.bf16.gmra.mxu0 %v3282
      %v3296 = vpop.f32.mrf.mxu0
      %v3297 = vadd.f32 0.0, %v3296
      %v3298 = vpop.f32.mrf.mxu0
      %v3299 = vadd.f32 0.0, %v3298
      %3300 = vdwg.mxu0
      %v3301 = vmul.f32 %v3223, 0.35355338
      %v3302 = vmul.f32 %v3225, 0.35355338
      %v3303 = vmul.f32 %v3249, 0.35355338
      %v3304 = vmul.f32 %v3251, 0.35355338
      %v3305 = vmul.f32 %v3273, 0.35355338
      %v3306 = vmul.f32 %v3275, 0.35355338
      %v3307 = vmul.f32 %v3297, 0.35355338
      %v3308 = vmul.f32 %v3299, 0.35355338
      %v3309 = vsel %vm1981, %v3301, -inf
      %3310 = vmax.xlane.f32.xlu0 %v3309
      %v3311 = vpop.xlane.xlu0 %3310
      %v3312 = vsel %vm1981, %v3302, -inf
      %3313 = vmax.xlane.f32.xlu0 %v3312
      %v3314 = vpop.xlane.xlu0 %3313
      %v3315 = vsel %vm1981, %v3303, -inf
      %3316 = vmax.xlane.f32.xlu0 %v3315
      %v3317 = vpop.xlane.xlu0 %3316
      %v3318 = vsel %vm1981, %v3304, -inf
      %3319 = vmax.xlane.f32.xlu0 %v3318
      %v3320 = vpop.xlane.xlu0 %3319
      %v3321 = vsel %vm1981, %v3305, -inf
      %3322 = vmax.xlane.f32.xlu0 %v3321
      %v3323 = vpop.xlane.xlu0 %3322
      %v3324 = vsel %vm1981, %v3306, -inf
      %3325 = vmax.xlane.f32.xlu0 %v3324
      %v3326 = vpop.xlane.xlu0 %3325
      %v3327 = vsel %vm1981, %v3307, -inf
      %3328 = vmax.xlane.f32.xlu0 %v3327
      %v3329 = vpop.xlane.xlu0 %3328
      %v3330 = vsel %vm1981, %v3308, -inf
      %3331 = vmax.xlane.f32.xlu0 %v3330
      %v3332 = vpop.xlane.xlu0 %3331
      %v3333 = vsub.f32 %v3301, %v3311
      %v3334 = vsub.f32 %v3302, %v3314
      %v3335 = vsub.f32 %v3303, %v3317
      %v3336 = vsub.f32 %v3304, %v3320
      %v3337 = vsub.f32 %v3305, %v3323
      %v3338 = vsub.f32 %v3306, %v3326
      %v3339 = vsub.f32 %v3307, %v3329
      %v3340 = vsub.f32 %v3308, %v3332
      %v3341 = vmul.f32 %v3333, 1.442695
      %v3342 = vpow.pop %v3341
      %v3343 = vmul.f32 %v3334, 1.442695
      %v3344 = vpow.pop %v3343
      %v3345 = vmul.f32 %v3335, 1.442695
      %v3346 = vpow.pop %v3345
      %v3347 = vmul.f32 %v3336, 1.442695
      %v3348 = vpow.pop %v3347
      %v3349 = vmul.f32 %v3337, 1.442695
      %v3350 = vpow.pop %v3349
      %v3351 = vmul.f32 %v3338, 1.442695
      %v3352 = vpow.pop %v3351
      %v3353 = vmul.f32 %v3339, 1.442695
      %v3354 = vpow.pop %v3353
      %v3355 = vmul.f32 %v3340, 1.442695
      %v3356 = vpow.pop %v3355
      %v3357 = vsel %vm1981, %v3342, 0.0
      %3358 = vadd.xlane.f32.xlu0 %v3357
      %v3359 = vpop.xlane.xlu0 %3358
      %v3360 = vsel %vm1981, %v3344, 0.0
      %3361 = vadd.xlane.f32.xlu0 %v3360
      %v3362 = vpop.xlane.xlu0 %3361
      %v3363 = vsel %vm1981, %v3346, 0.0
      %3364 = vadd.xlane.f32.xlu0 %v3363
      %v3365 = vpop.xlane.xlu0 %3364
      %v3366 = vsel %vm1981, %v3348, 0.0
      %3367 = vadd.xlane.f32.xlu0 %v3366
      %v3368 = vpop.xlane.xlu0 %3367
      %v3369 = vsel %vm1981, %v3350, 0.0
      %3370 = vadd.xlane.f32.xlu0 %v3369
      %v3371 = vpop.xlane.xlu0 %3370
      %v3372 = vsel %vm1981, %v3352, 0.0
      %3373 = vadd.xlane.f32.xlu0 %v3372
      %v3374 = vpop.xlane.xlu0 %3373
      %v3375 = vsel %vm1981, %v3354, 0.0
      %3376 = vadd.xlane.f32.xlu0 %v3375
      %v3377 = vpop.xlane.xlu0 %3376
      %v3378 = vsel %vm1981, %v3356, 0.0
      %3379 = vadd.xlane.f32.xlu0 %v3378
      %v3380 = vpop.xlane.xlu0 %3379
      %v3381 = vrcp.pop %v3359
      %v3382 = vrcp.pop %v3362
      %v3383 = vrcp.pop %v3365
      %v3384 = vrcp.pop %v3368
      %v3385 = vrcp.pop %v3371
      %v3386 = vrcp.pop %v3374
      %v3387 = vrcp.pop %v3377
      %v3388 = vrcp.pop %v3380
      %v3389 = vmul.f32 %v3342, %v3381
      %v3390 = vmul.f32 %v3344, %v3382
      %v3391 = vmul.f32 %v3346, %v3383
      %v3392 = vmul.f32 %v3348, %v3384
      %v3393 = vmul.f32 %v3350, %v3385
      %v3394 = vmul.f32 %v3352, %v3386
      %v3395 = vmul.f32 %v3354, %v3387
      %v3396 = vmul.f32 %v3356, %v3388
      %v3397 = vpack.c.bf16 %v3390, %v3389
      %v3398 = vpack.c.bf16 %v3203, %v3201
      %v3400 = vsel %vm1981, %v3397, 0
      %3402 = vmatpush.bf16.msra.mxu0 0
      %3403 = vmatpush.bf16.msra.mxu0 0
      %3404 = vmatpush.bf16.msra.mxu0 0
      %3405 = vmatpush.bf16.msra.mxu0 0
      %3406 = vmatpush.bf16.msra.mxu0 0
      %3407 = vmatpush.bf16.msra.mxu0 0
      %3408 = vmatpush.bf16.msra.mxu0 0
      %3409 = vmatpush.bf16.msra.mxu0 %v3398
      %3410 = vmatmul.bf16.gmra.mxu0 %v3400
      %v3411 = vpop.f32.mrf.mxu0
      %v3412 = vadd.f32 0.0, %v3411
      %v3413 = vpop.f32.mrf.mxu0
      %v3414 = vadd.f32 0.0, %v3413
      %3415 = vdwg.mxu0
      %v3416 = vpack.c.bf16 %v3392, %v3391
      %3418 = vrot.lane.b32.xlu0 %v3398, 120
      %v3419 = vpop.permute.xlu0 %3418
      %v3422 = vsel %vm1981, %v3416, 0
      %3424 = vmatpush.bf16.msra.mxu0 0
      %3425 = vmatpush.bf16.msra.mxu0 0
      %3426 = vmatpush.bf16.msra.mxu0 0
      %3427 = vmatpush.bf16.msra.mxu0 0
      %3428 = vmatpush.bf16.msra.mxu0 0
      %3429 = vmatpush.bf16.msra.mxu0 0
      %3430 = vmatpush.bf16.msra.mxu0 0
      %3431 = vmatpush.bf16.msra.mxu0 %v3419
      %3432 = vmatmul.bf16.gmra.mxu0 %v3422
      %v3433 = vpop.f32.mrf.mxu0
      %v3434 = vadd.f32 0.0, %v3433
      %v3435 = vpop.f32.mrf.mxu0
      %v3436 = vadd.f32 0.0, %v3435
      %3437 = vdwg.mxu0
      %v3438 = vpack.c.bf16 %v3394, %v3393
      %3439 = vrot.lane.b32.xlu0 %v3398, 112
      %v3440 = vpop.permute.xlu0 %3439
      %v3443 = vsel %vm1981, %v3438, 0
      %3445 = vmatpush.bf16.msra.mxu0 0
      %3446 = vmatpush.bf16.msra.mxu0 0
      %3447 = vmatpush.bf16.msra.mxu0 0
      %3448 = vmatpush.bf16.msra.mxu0 0
      %3449 = vmatpush.bf16.msra.mxu0 0
      %3450 = vmatpush.bf16.msra.mxu0 0
      %3451 = vmatpush.bf16.msra.mxu0 0
      %3452 = vmatpush.bf16.msra.mxu0 %v3440
      %3453 = vmatmul.bf16.gmra.mxu0 %v3443
      %v3454 = vpop.f32.mrf.mxu0
      %v3455 = vadd.f32 0.0, %v3454
      %v3456 = vpop.f32.mrf.mxu0
      %v3457 = vadd.f32 0.0, %v3456
      %3458 = vdwg.mxu0
      %v3459 = vpack.c.bf16 %v3396, %v3395
      %3460 = vrot.lane.b32.xlu0 %v3398, 104
      %v3461 = vpop.permute.xlu0 %3460
      %v3464 = vsel %vm1981, %v3459, 0
      %3466 = vmatpush.bf16.msra.mxu0 0
      %3467 = vmatpush.bf16.msra.mxu0 0
      %3468 = vmatpush.bf16.msra.mxu0 0
      %3469 = vmatpush.bf16.msra.mxu0 0
      %3470 = vmatpush.bf16.msra.mxu0 0
      %3471 = vmatpush.bf16.msra.mxu0 0
      %3472 = vmatpush.bf16.msra.mxu0 0
      %3473 = vmatpush.bf16.msra.mxu0 %v3461
      %3474 = vmatmul.bf16.gmra.mxu0 %v3464
      %v3475 = vpop.f32.mrf.mxu0
      %v3476 = vadd.f32 0.0, %v3475
      %v3477 = vpop.f32.mrf.mxu0
      %v3478 = vadd.f32 0.0, %v3477
      %3479 = vdwg.mxu0
      %3482 = vrot.lane.b32.xlu0 %v3434, 8
      %v3483 = vpop.permute.xlu0 %3482
      %3484 = vrot.lane.b32.xlu0 %v3436, 8
      %v3485 = vpop.permute.xlu0 %3484
      %3490 = vrot.lane.b32.xlu0 %v3455, 16
      %v3491 = vpop.permute.xlu0 %3490
      %3492 = vrot.lane.b32.xlu0 %v3457, 16
      %v3493 = vpop.permute.xlu0 %3492
      %3498 = vrot.lane.b32.xlu0 %v3476, 24
      %v3499 = vpop.permute.xlu0 %3498
      %3500 = vrot.lane.b32.xlu0 %v3478, 24
      %v3501 = vpop.permute.xlu0 %3500
      %v3504 = vsel %vm1435, %v3412, %v3483
      %v3505 = vsel %vm1435, %v3414, %v3485
      %v3506 = vsel %vm1981, %v3504, %v3491
      %v3507 = vsel %vm1981, %v3505, %v3493
      %v3508 = vsel %vm1984, %v3506, %v3499
      %v3509 = vsel %vm1984, %v3507, %v3501
      %s3510 = scalar_lea.vmem %s55, 16
      %v3511 = vld [vmem:[%s3510] sm:$0xf]
      %v3512 = vld [vmem:[%s3510 + $0x4] sm:$0xf]
      %v3513 = vld [vmem:[%s3510 + $0x8] sm:$0xf]
      %v3514 = vld [vmem:[%s3510 + $0xc] sm:$0xf]
      %v3515 = vpack.c.bf16 %v3509, %v3508
      %v3520 = vunpack.c.l.b16 %v3511
      %v3521 = vunpack.c.l.b16 %v3512
      %v3522 = vunpack.c.l.b16 %v3513
      %v3523 = vunpack.c.l.b16 %v3514
      %v3524 = vpack.c.b16 %v3521, %v3520
      %v3525 = vpack.c.b16 %v3523, %v3522
      %v3529 = vsel %vm1480, %v3515, 0
      %3531 = vmatpush.bf16.msra.mxu0 0
      %3532 = vmatpush.bf16.msra.mxu0 0
      %3533 = vmatpush.bf16.msra.mxu0 0
      %3534 = vmatpush.bf16.msra.mxu0 0
      %3535 = vmatpush.bf16.msra.mxu0 0
      %3536 = vmatpush.bf16.msra.mxu0 0
      %3537 = vmatpush.bf16.msra.mxu0 %v3525
      %3538 = vmatpush.bf16.msra.mxu0 %v3524
      %3539 = vmatmul.bf16.gmra.mxu0 %v3529
      %v3540 = vpop.f32.mrf.mxu0
      %v3541 = vadd.f32 0.0, %v3540
      %v3542 = vpop.f32.mrf.mxu0
      %v3543 = vadd.f32 0.0, %v3542
      %3544 = vdwg.mxu0
      %v3545 = vadd.f32 %v3085, %v3541
      %v3546 = vadd.f32 %v3086, %v3543
      %s3547 = scalar_lea.vmem %s57, 1
      %v3548 = vld [vmem:[%s3547] sm:$0x1]
      %v3550 = vperm.slane %v3548, 0
      %v3552 = vadd.f32 %v3545, %v3550
      %v3553 = vadd.f32 %v3546, %v3550
      %s3554 = scalar_lea.vmem %s59, 16
      %v3555 = vld [vmem:[%s3554] sm:$0xf]
      %v3556 = vld [vmem:[%s3554 + $0x4] sm:$0xf]
      %v3557 = vld [vmem:[%s3554 + $0x8] sm:$0xf]
      %v3558 = vld [vmem:[%s3554 + $0xc] sm:$0xf]
      %v3559 = vpack.c.bf16 %v3553, %v3552
      %s3560 = scalar_lea.vmem %s61, 1
      %v3561 = vld [vmem:[%s3560] sm:$0x1]
      %v3563 = vperm.slane %v3561, 0
      %v3569 = vunpack.c.l.b16 %v3555
      %v3570 = vunpack.c.l.b16 %v3556
      %v3571 = vunpack.c.l.b16 %v3557
      %v3572 = vunpack.c.l.b16 %v3558
      %v3573 = vpack.c.b16 %v3570, %v3569
      %v3574 = vpack.c.b16 %v3572, %v3571
      %v3578 = vsel %vm1480, %v3559, 0
      %3580 = vmatpush.bf16.msra.mxu0 0
      %3581 = vmatpush.bf16.msra.mxu0 0
      %3582 = vmatpush.bf16.msra.mxu0 0
      %3583 = vmatpush.bf16.msra.mxu0 0
      %3584 = vmatpush.bf16.msra.mxu0 0
      %3585 = vmatpush.bf16.msra.mxu0 0
      %3586 = vmatpush.bf16.msra.mxu0 %v3574
      %3587 = vmatpush.bf16.msra.mxu0 %v3573
      %3588 = vmatmul.bf16.gmra.mxu0 %v3578
      %v3589 = vpop.f32.mrf.mxu0
      %v3590 = vadd.f32 %v3563, %v3589
      %v3591 = vpop.f32.mrf.mxu0
      %v3592 = vadd.f32 %v3563, %v3591
      %3593 = vdwg.mxu0
      %v3594 = vmax.f32 %v3590, 0.0
      %v3595 = vmax.f32 %v3592, 0.0
      %s3596 = scalar_lea.vmem %s63, 64
      %v3597 = vld [vmem:[%s3596] sm:$0xf]
      %v3598 = vld [vmem:[%s3596 + $0x4] sm:$0xf]
      %v3599 = vld [vmem:[%s3596 + $0x8] sm:$0xf]
      %v3600 = vld [vmem:[%s3596 + $0xc] sm:$0xf]
      %v3601 = vld [vmem:[%s3596 + $0x10] sm:$0xf]
      %v3602 = vld [vmem:[%s3596 + $0x14] sm:$0xf]
      %v3603 = vld [vmem:[%s3596 + $0x18] sm:$0xf]
      %v3604 = vld [vmem:[%s3596 + $0x1c] sm:$0xf]
      %v3605 = vld [vmem:[%s3596 + $0x20] sm:$0xf]
      %v3606 = vld [vmem:[%s3596 + $0x24] sm:$0xf]
      %v3607 = vld [vmem:[%s3596 + $0x28] sm:$0xf]
      %v3608 = vld [vmem:[%s3596 + $0x2c] sm:$0xf]
      %v3609 = vld [vmem:[%s3596 + $0x30] sm:$0xf]
      %v3610 = vld [vmem:[%s3596 + $0x34] sm:$0xf]
      %v3611 = vld [vmem:[%s3596 + $0x38] sm:$0xf]
      %v3612 = vld [vmem:[%s3596 + $0x3c] sm:$0xf]
      %v3613 = vpack.c.bf16 %v3595, %v3594
      %v3630 = vunpack.c.l.b16 %v3597
      %v3631 = vunpack.c.l.b16 %v3598
      %v3632 = vunpack.c.l.b16 %v3599
      %v3633 = vunpack.c.l.b16 %v3600
      %v3634 = vunpack.c.l.b16 %v3601
      %v3635 = vunpack.c.l.b16 %v3602
      %v3636 = vunpack.c.l.b16 %v3603
      %v3637 = vunpack.c.l.b16 %v3604
      %v3638 = vunpack.c.l.b16 %v3605
      %v3639 = vunpack.c.l.b16 %v3606
      %v3640 = vunpack.c.l.b16 %v3607
      %v3641 = vunpack.c.l.b16 %v3608
      %v3642 = vunpack.c.l.b16 %v3609
      %v3643 = vunpack.c.l.b16 %v3610
      %v3644 = vunpack.c.l.b16 %v3611
      %v3645 = vunpack.c.l.b16 %v3612
      %v3646 = vpack.c.b16 %v3631, %v3630
      %v3647 = vpack.c.b16 %v3633, %v3632
      %v3648 = vpack.c.b16 %v3635, %v3634
      %v3649 = vpack.c.b16 %v3637, %v3636
      %v3650 = vpack.c.b16 %v3639, %v3638
      %v3651 = vpack.c.b16 %v3641, %v3640
      %v3652 = vpack.c.b16 %v3643, %v3642
      %v3653 = vpack.c.b16 %v3645, %v3644
      %3662 = vmatpush.bf16.msra.mxu0 %v3653
      %3663 = vmatpush.bf16.msra.mxu0 %v3652
      %3664 = vmatpush.bf16.msra.mxu0 %v3651
      %3665 = vmatpush.bf16.msra.mxu0 %v3650
      %3666 = vmatpush.bf16.msra.mxu0 %v3649
      %3667 = vmatpush.bf16.msra.mxu0 %v3648
      %3668 = vmatpush.bf16.msra.mxu0 %v3647
      %3669 = vmatpush.bf16.msra.mxu0 %v3646
      %3670 = vmatmul.bf16.gmra.mxu0 %v3613
      %v3671 = vpop.f32.mrf.mxu0
      %v3672 = vadd.f32 0.0, %v3671
      %v3673 = vpop.f32.mrf.mxu0
      %v3674 = vadd.f32 0.0, %v3673
      %3675 = vdwg.mxu0
      %v3676 = vadd.f32 %v3552, %v3672
      %v3677 = vadd.f32 %v3553, %v3674
      %s3678 = scalar_lea.vmem %s65, 1
      %v3679 = vld [vmem:[%s3678] sm:$0x1]
      %v3681 = vperm.slane %v3679, 0
      %v3683 = vadd.f32 %v3676, %v3681
      %v3684 = vadd.f32 %v3677, %v3681
      %v3685 = vadd.f32 %v3683, %v1494
      %v3686 = vadd.f32 %v3684, %v1496
      %s3687 = scalar_lea.vmem %s67, 16
      %v3688 = vld [vmem:[%s3687] sm:$0xf]
      %v3689 = vld [vmem:[%s3687 + $0x4] sm:$0xf]
      %v3690 = vld [vmem:[%s3687 + $0x8] sm:$0xf]
      %v3691 = vld [vmem:[%s3687 + $0xc] sm:$0xf]
      %v3692 = vpack.c.bf16 %v3686, %v3685
      %s3693 = scalar_lea.vmem %s69, 1
      %v3694 = vld [vmem:[%s3693] sm:$0x1]
      %v3696 = vperm.slane %v3694, 0
      %v3702 = vunpack.c.l.b16 %v3688
      %v3703 = vunpack.c.l.b16 %v3689
      %v3704 = vunpack.c.l.b16 %v3690
      %v3705 = vunpack.c.l.b16 %v3691
      %v3706 = vpack.c.b16 %v3703, %v3702
      %v3707 = vpack.c.b16 %v3705, %v3704
      %v3711 = vsel %vm1480, %v3692, 0
      %3713 = vmatpush.bf16.msra.mxu0 0
      %3714 = vmatpush.bf16.msra.mxu0 0
      %3715 = vmatpush.bf16.msra.mxu0 0
      %3716 = vmatpush.bf16.msra.mxu0 0
      %3717 = vmatpush.bf16.msra.mxu0 0
      %3718 = vmatpush.bf16.msra.mxu0 0
      %3719 = vmatpush.bf16.msra.mxu0 %v3707
      %3720 = vmatpush.bf16.msra.mxu0 %v3706
      %3721 = vmatmul.bf16.gmra.mxu0 %v3711
      %v3722 = vpop.f32.mrf.mxu0
      %v3723 = vadd.f32 %v3696, %v3722
      %v3724 = vpop.f32.mrf.mxu0
      %v3725 = vadd.f32 %v3696, %v3724
      %3726 = vdwg.mxu0
      %v3727 = vmax.f32 %v3723, 0.0
      %v3728 = vmax.f32 %v3725, 0.0
      %s3729 = scalar_lea.vmem %s71, 16
      %v3730 = vld [vmem:[%s3729] sm:$0xf]
      %v3731 = vld [vmem:[%s3729 + $0x4] sm:$0xf]
      %v3732 = vld [vmem:[%s3729 + $0x8] sm:$0xf]
      %v3733 = vld [vmem:[%s3729 + $0xc] sm:$0xf]
      %v3734 = vpack.c.bf16 %v3728, %v3727
      %v3739 = vunpack.c.l.b16 %v3730
      %v3740 = vunpack.c.l.b16 %v3731
      %v3741 = vunpack.c.l.b16 %v3732
      %v3742 = vunpack.c.l.b16 %v3733
      %v3743 = vpack.c.b16 %v3740, %v3739
      %v3744 = vpack.c.b16 %v3742, %v3741
      %v3748 = vsel %vm1480, %v3734, 0
      %3750 = vmatpush.bf16.msra.mxu0 0
      %3751 = vmatpush.bf16.msra.mxu0 0
      %3752 = vmatpush.bf16.msra.mxu0 0
      %3753 = vmatpush.bf16.msra.mxu0 0
      %3754 = vmatpush.bf16.msra.mxu0 0
      %3755 = vmatpush.bf16.msra.mxu0 0
      %3756 = vmatpush.bf16.msra.mxu0 %v3744
      %3757 = vmatpush.bf16.msra.mxu0 %v3743
      %3758 = vmatmul.bf16.gmra.mxu0 %v3748
      %v3759 = vpop.f32.mrf.mxu0
      %v3760 = vadd.f32 0.0, %v3759
      %v3761 = vpop.f32.mrf.mxu0
      %v3762 = vadd.f32 0.0, %v3761
      %3763 = vdwg.mxu0
      %v3764 = vadd.f32 %v2697, %v3760
      %v3765 = vadd.f32 %v2698, %v3762
      %s3766 = scalar_lea.vmem %s73, 1
      %v3767 = vld [vmem:[%s3766] sm:$0x1]
      %v3769 = vperm.slane %v3767, 0
      %v3771 = vadd.f32 %v3764, %v3769
      %v3772 = vadd.f32 %v3765, %v3769
      %s3773 = scalar_lea.vmem %s75, 16
      %v3774 = vld [vmem:[%s3773] sm:$0xf]
      %v3775 = vld [vmem:[%s3773 + $0x4] sm:$0xf]
      %v3776 = vld [vmem:[%s3773 + $0x8] sm:$0xf]
      %v3777 = vld [vmem:[%s3773 + $0xc] sm:$0xf]
      %s3778 = scalar_lea.vmem %s77, 1
      %v3779 = vld [vmem:[%s3778] sm:$0x1]
      %v3781 = vperm.slane %v3779, 0
      %v3787 = vunpack.c.l.b16 %v3774
      %v3788 = vunpack.c.l.b16 %v3775
      %v3789 = vunpack.c.l.b16 %v3776
      %v3790 = vunpack.c.l.b16 %v3777
      %v3791 = vpack.c.b16 %v3788, %v3787
      %v3792 = vpack.c.b16 %v3790, %v3789
      %3795 = vmatpush.bf16.msra.mxu0 0
      %3796 = vmatpush.bf16.msra.mxu0 0
      %3797 = vmatpush.bf16.msra.mxu0 0
      %3798 = vmatpush.bf16.msra.mxu0 0
      %3799 = vmatpush.bf16.msra.mxu0 0
      %3800 = vmatpush.bf16.msra.mxu0 0
      %3801 = vmatpush.bf16.msra.mxu0 %v3792
      %3802 = vmatpush.bf16.msra.mxu0 %v3791
      %3803 = vmatmul.bf16.gmra.mxu0 %v3748
      %v3804 = vpop.f32.mrf.mxu0
      %v3805 = vadd.f32 %v3781, %v3804
      %v3806 = vpop.f32.mrf.mxu0
      %v3807 = vadd.f32 %v3781, %v3806
      %3808 = vdwg.mxu0
      %3811 = vrot.lane.b32.xlu0 %v3805, 8
      %v3812 = vpop.permute.xlu0 %3811
      %3813 = vrot.lane.b32.xlu0 %v3807, 8
      %v3814 = vpop.permute.xlu0 %3813
      %3819 = vrot.lane.b32.xlu0 %v2775, 10
      %v3820 = vpop.permute.xlu0 %3819
      %3821 = vrot.lane.b32.xlu0 %v2776, 10
      %v3822 = vpop.permute.xlu0 %3821
      %v3825 = vsel %vm1435, %v3771, %v3812
      %v3826 = vsel %vm1435, %v3772, %v3814
      %v3827 = vsel %vm2751, %v3825, %v3820
      %v3828 = vsel %vm2751, %v3826, %v3822
      %v3829 = vsel %vm2754, %v3827, 0.0
      %v3830 = vsel %vm2754, %v3828, 0.0
      %3833 = vrot.lane.b32.xlu0 %v3829, 16
      %v3834 = vpop.permute.xlu0 %3833
      %3835 = vrot.lane.b32.xlu0 %v3830, 16
      %v3836 = vpop.permute.xlu0 %3835
      %v3839 = vsel %vm1981, %v2755, %v3834
      %v3840 = vsel %vm1981, %v2756, %v3836
      %3841 = vst.msk [vmem:[%s1182] sm:$0xff] %vm1480, %v3839
      %3842 = vst.msk [vmem:[%s1182 + $0x8] sm:$0xff] %vm1480, %v3840
      %p3843 = scmp.lt.s32.totalorder %s90, 1
      %s3844 = scalar_select %p3843, %s90, 1
      %s3845 = smul.addr %s3844, 2
      %s3846 = smul.addr %s3845, 8
      %s3847 = scalar_lea.vmem %s79, %s3846
      // Predicated region
      $region177: #{sparse4d_forward.1} parent=175 // pred_check
        %p3848 = pneg %p932
      $region178: #{sparse4d_forward.1} parent=175 // pred_check_branch
        %3850 = sbr.rel (%p3848) target = $region180
      $region179: #{sparse4d_forward.1} parent=175 // pred_region
        _
      $region180: #{sparse4d_forward.1} parent=175 // pred_fallthru
        _
    $region176: #{sparse4d_forward.1} parent=5 // pred_fallthru
      _
    %p3851 = scmp.le.s32.totalorder 2, %s85
    // Predicated region
    $region181: #{sparse4d_forward.1} parent=5 // pred_check
      %p3852 = pneg %p3851
    $region182: #{sparse4d_forward.1} parent=5 // pred_check_branch
      %3854 = sbr.rel (%p3852) target = $region184
    $region183: #{sparse4d_forward.1} parent=5 // pred_region
      %s3855 = ssub.s32 %s85, 2
      // Predicated region
      $region185: #{sparse4d_forward.1} parent=183 // pred_check
        %p3856 = pneg %p938
      $region186: #{sparse4d_forward.1} parent=183 // pred_check_branch
        %3858 = sbr.rel (%p3856) target = $region188
      $region187: #{sparse4d_forward.1} parent=183 // pred_region
        %p3859 = scmp.lt.s32.totalorder %s91, 1
        %s3860 = scalar_select %p3859, %s91, 1
        %s3861 = smul.addr %s3860, 2
        %s3862 = smul.addr %s3861, 8
        %s3863 = scalar_lea.vmem %s79, %s3862
      $region188: #{sparse4d_forward.1} parent=183 // pred_fallthru
        _
    $region184: #{sparse4d_forward.1} parent=5 // pred_fallthru
      _
  $region6: #{sparse4d_forward.1} parent=0 // loop_footer
    %s89 = sadd.s32 1, %s85
  $region7: #{sparse4d_forward.1} parent=0 // loop_footer_branch
    %84 = sbr.rel target = $region3
  $region8: #{sparse4d_forward.1} parent=0 // loop_exit
    _

</llo_original>
